<compile_context>
chip_gen: v7x
topology: tpu7x:2x2x1
jax: 0.10.0
libtpu: 0.0.40
codegen_flags: <defaults>
</compile_context>

<pallas_src>
import functools

import jax
import jax.numpy as jnp
import numpy as np
from jax.experimental import pallas as pl
from jax.experimental.pallas import tpu as pltpu


# ----------------------------- Pallas kernel ------------------------------- #
def _rnn_kernel(x_ref, wih_ref, whh_ref, b_ref, wout_ref, bout_ref,   # inputs
                o_ref,                                                # output
                gx_ref, seq_ref,                                      # scratch
                *, num_layers, hidden_size):
    """Multi-layer LSTM + last-step Linear + Tanh, fully inside one kernel.

    x_ref    : (T, B, D)   time-major input sequence (bf16)
    wih_ref  : (L, D, 4H)  input->gates weights, gate order (i, f, o, g) (bf16)
    whh_ref  : (L, H, 4H)  hidden->gates weights, gate order (i, f, o, g) (bf16)
    b_ref    : (L, 1, 4H)  combined bias b_ih + b_hh, reordered (f32)
    wout_ref : (H, O)      final Linear weight, transposed (bf16)
    bout_ref : (1, O)      final Linear bias (f32)
    o_ref    : (B, O)      output (f32)
    gx_ref   : (T, B, 4H)  scratch: hoisted input->gate projections (f32)
    seq_ref  : (T, B, H)   scratch: per-layer output sequence (f32)
    """
    T, B, _ = x_ref.shape
    H = hidden_size

    h = jnp.zeros((B, H), jnp.float32)

    for layer in range(num_layers):                     # static unroll (L small)
        # ---- hoisted input->gates projection for all T steps at once ------
        if layer == 0:
            inp = x_ref[...]                            # (T, B, D) bf16
        else:
            inp = seq_ref[...].astype(jnp.bfloat16)     # (T, B, H)
        d_in = inp.shape[-1]
        gx = jnp.dot(inp.reshape(T * B, d_in), wih_ref[layer],
                     preferred_element_type=jnp.float32)
        gx = gx + b_ref[layer]                          # (T*B, 4H) + (1, 4H)
        gx_ref[...] = gx.reshape(T, B, 4 * H)

        # ---- recurrence: only h @ W_hh remains on the serial path ---------
        h = jnp.zeros((B, H), jnp.float32)
        c = jnp.zeros((B, H), jnp.float32)

        for t in range(T):                              # fully unrolled, T=8
            gates = gx_ref[t] + jnp.dot(
                h.astype(jnp.bfloat16), whh_ref[layer],
                preferred_element_type=jnp.float32)     # (B, 4H), f32

            # gate order is (i, f, o, g): one contiguous sigmoid slab + one tanh
            ifo = jax.nn.sigmoid(gates[:, :3 * H])
            g_g = jnp.tanh(gates[:, 3 * H:])
            i_g = ifo[:, 0 * H:1 * H]
            f_g = ifo[:, 1 * H:2 * H]
            o_g = ifo[:, 2 * H:3 * H]

            c = f_g * c + i_g * g_g
            h = o_g * jnp.tanh(c)

            if layer < num_layers - 1:                  # top layer: never read
                seq_ref[t] = h

    # h == LSTM output[:, -1, :] of the top layer.  Linear + Tanh head.
    out = jnp.dot(h.astype(jnp.bfloat16), wout_ref[...],
                  preferred_element_type=jnp.float32) + bout_ref[...]
    o_ref[...] = jnp.tanh(out)


# ------------------------------ wrapper ------------------------------------ #
def recurrent_nn_forward(x_btd, w_ih, w_hh, b_ih, b_hh, w_out, b_out):
    """Forward pass matching the (intended) PyTorch module.

    x_btd : (B, T, D)   batch-first input
    w_ih  : (L, 4H, D)  PyTorch LSTM weight_ih, gate order (i, f, g, o)
    w_hh  : (L, 4H, H)  PyTorch LSTM weight_hh
    b_ih  : (L, 4H)     PyTorch LSTM bias_ih
    b_hh  : (L, 4H)     PyTorch LSTM bias_hh
    w_out : (O, H)      Linear weight   (requires hiddenSize == inputSize)
    b_out : (O,)        Linear bias
    """
    B, T, D = x_btd.shape
    L, H4, _ = w_ih.shape
    H = H4 // 4
    O = w_out.shape[0]

    assert D == H, "module requires hiddenSize == inputSize (Linear(inputSize, ...))"
    assert B % 8 == 0 and D % 128 == 0 and H % 128 == 0 and O % 128 == 0, \
        "shapes must align to the TPU (8, 128) tile"

    def reorder_gates(w):
        # last axis is 4H in PyTorch order (i, f, g, o) -> kernel order (i, f, o, g)
        i, f, g, o = jnp.split(w, 4, axis=-1)
        return jnp.concatenate([i, f, o, g], axis=-1)

    # Right-multiply form + gate reorder; weights in bf16 (f32 MXU accumulation),
    # biases stay f32 (added after the matmul).
    wih_t = reorder_gates(jnp.transpose(w_ih, (0, 2, 1))).astype(jnp.bfloat16)  # (L, D, 4H)
    whh_t = reorder_gates(jnp.transpose(w_hh, (0, 2, 1))).astype(jnp.bfloat16)  # (L, H, 4H)
    bias = reorder_gates(b_ih + b_hh)[:, None, :].astype(jnp.float32)           # (L, 1, 4H)
    wout_t = jnp.transpose(w_out).astype(jnp.bfloat16)                          # (H, O)
    bout = b_out[None, :].astype(jnp.float32)                                   # (1, O)

    x_tbd = jnp.transpose(x_btd, (1, 0, 2)).astype(jnp.bfloat16)                # (T, B, D)

    kernel = functools.partial(_rnn_kernel, num_layers=L, hidden_size=H)
    vmem = pl.BlockSpec(memory_space=pltpu.MemorySpace.VMEM)

    # Everything (weights + sequence) is fully VMEM-resident (< 1 MiB at these
    # shapes), so no grid / pipelining is needed.
    # TODO(synk): if H or L scales up, block the layer axis and double-buffer
    # the next layer's weights behind the recurrence (v7x has only 64 MiB VMEM).
    return pl.pallas_call(
        kernel,
        out_shape=jax.ShapeDtypeStruct((B, O), jnp.float32),
        in_specs=[vmem] * 6,
        out_specs=vmem,
        scratch_shapes=[
            pltpu.VMEM((T, B, 4 * H), jnp.float32),   # hoisted x->gate projections
            pltpu.VMEM((T, B, H), jnp.float32),       # per-layer output sequence
        ],
    )(x_tbd, wih_t, whh_t, bias, wout_t, bout)


# --------------------------- pure-JAX reference ----------------------------- #
def recurrent_nn_reference(x, w_ih, w_hh, b_ih, b_hh, w_out, b_out):
    """f32 reference with PyTorch LSTM semantics / layout (gate order i,f,g,o)."""
    B, T, D = x.shape
    L, H4, _ = w_ih.shape
    H = H4 // 4
    seq = x
    h = jnp.zeros((B, H), jnp.float32)
    for layer in range(L):
        h = jnp.zeros((B, H), jnp.float32)
        c = jnp.zeros((B, H), jnp.float32)
        outs = []
        for t in range(T):
            g = (seq[:, t, :] @ w_ih[layer].T + h @ w_hh[layer].T
                 + b_ih[layer] + b_hh[layer])
            i_g = jax.nn.sigmoid(g[:, :H])
            f_g = jax.nn.sigmoid(g[:, H:2 * H])
            g_g = jnp.tanh(g[:, 2 * H:3 * H])
            o_g = jax.nn.sigmoid(g[:, 3 * H:])
            c = f_g * c + i_g * g_g
            h = o_g * jnp.tanh(c)
            outs.append(h)
        seq = jnp.stack(outs, axis=1)
    return jnp.tanh(h @ w_out.T + b_out)


# --------------------------------- main ------------------------------------ #
if __name__ == "__main__":
    # Module hyper-parameters (hiddenSize == inputSize required by the Linear).
    B, T = 8, 8
    INPUT = HIDDEN = 128
    OUTPUT = 128
    LAYERS = 2

    key = jax.random.PRNGKey(0)
    ks = jax.random.split(key, 8)
    bound = 1.0 / np.sqrt(HIDDEN)            # PyTorch LSTM/Linear init scale

    x = jax.random.normal(ks[0], (B, T, INPUT), dtype=jnp.float32)
    w_ih = jax.random.uniform(ks[1], (LAYERS, 4 * HIDDEN, INPUT),
                              minval=-bound, maxval=bound, dtype=jnp.float32)
    w_hh = jax.random.uniform(ks[2], (LAYERS, 4 * HIDDEN, HIDDEN),
                              minval=-bound, maxval=bound, dtype=jnp.float32)
    b_ih = jax.random.uniform(ks[3], (LAYERS, 4 * HIDDEN),
                              minval=-bound, maxval=bound, dtype=jnp.float32)
    b_hh = jax.random.uniform(ks[4], (LAYERS, 4 * HIDDEN),
                              minval=-bound, maxval=bound, dtype=jnp.float32)
    w_out = jax.random.uniform(ks[5], (OUTPUT, HIDDEN),
                               minval=-bound, maxval=bound, dtype=jnp.float32)
    b_out = jax.random.uniform(ks[6], (OUTPUT,),
                               minval=-bound, maxval=bound, dtype=jnp.float32)

    out = recurrent_nn_forward(x, w_ih, w_hh, b_ih, b_hh, w_out, b_out)
    out = jax.block_until_ready(out)

    ref = recurrent_nn_reference(x, w_ih, w_hh, b_ih, b_hh, w_out, b_out)
    # bf16 weights + f32 accumulation: small deliberate quantization vs. the
    # pure-f32 reference, so use a slightly relaxed tolerance.
    np.testing.assert_allclose(np.asarray(out), np.asarray(ref),
                               rtol=2e-2, atol=2e-2)

    assert out.shape == (B, OUTPUT)
    print("KERNEL_OK")
</pallas_src>

<mosaic_0001>
module attributes {stable_mosaic.version = 11 : i64} {
  func.func @_rnn_kernel(%arg0: memref<8x8x128xbf16, #tpu.memory_space<vmem>>, %arg1: memref<2x128x512xbf16, #tpu.memory_space<vmem>>, %arg2: memref<2x128x512xbf16, #tpu.memory_space<vmem>>, %arg3: memref<2x1x512xf32, #tpu.memory_space<vmem>>, %arg4: memref<128x128xbf16, #tpu.memory_space<vmem>>, %arg5: memref<1x128xf32, #tpu.memory_space<vmem>>, %arg6: memref<8x128xf32, #tpu.memory_space<vmem>>, %arg7: memref<8x8x512xf32, #tpu.memory_space<vmem>>, %arg8: memref<8x8x128xf32, #tpu.memory_space<vmem>>) attributes {dimension_semantics = [], scalar_prefetch = 0 : i64, scratch_operands = 2 : i64, tpu.core_type = #tpu.core_type<tc>} {
    %c0 = arith.constant 0 : index
    %c0_0 = arith.constant 0 : index
    %c0_1 = arith.constant 0 : index
    %0 = vector.load %arg0[%c0, %c0_0, %c0_1] : memref<8x8x128xbf16, #tpu.memory_space<vmem>>, vector<8x8x128xbf16>
    %1 = vector.shape_cast %0 : vector<8x8x128xbf16> to vector<64x128xbf16>
    %c0_2 = arith.constant 0 : index
    %c0_3 = arith.constant 0 : index
    %c0_4 = arith.constant 0 : index
    %2 = vector.load %arg1[%c0_2, %c0_3, %c0_4] : memref<2x128x512xbf16, #tpu.memory_space<vmem>>, vector<1x128x512xbf16>
    %3 = vector.shape_cast %2 : vector<1x128x512xbf16> to vector<128x512xbf16>
    %cst = arith.constant dense<0.000000e+00> : vector<64x512xf32>
    %4 = tpu.matmul %1, %3, %cst {dimension_numbers = #tpu.dot_dimension_numbers<[1], [0], [0], [1], [0, 0, 1, 1], [], []>} : vector<64x128xbf16>, vector<128x512xbf16>, vector<64x512xf32> -> vector<64x512xf32>
    %c0_5 = arith.constant 0 : index
    %c0_6 = arith.constant 0 : index
    %c0_7 = arith.constant 0 : index
    %5 = vector.load %arg3[%c0_5, %c0_6, %c0_7] : memref<2x1x512xf32, #tpu.memory_space<vmem>>, vector<1x1x512xf32>
    %6 = vector.shape_cast %5 : vector<1x1x512xf32> to vector<1x512xf32>
    %7 = vector.broadcast %6 : vector<1x512xf32> to vector<64x512xf32>
    %8 = arith.addf %4, %7 : vector<64x512xf32>
    %9 = vector.shape_cast %8 : vector<64x512xf32> to vector<8x8x512xf32>
    %c0_8 = arith.constant 0 : index
    %c0_9 = arith.constant 0 : index
    %c0_10 = arith.constant 0 : index
    %10 = vector.load %arg7[%c0_8, %c0_9, %c0_10] : memref<8x8x512xf32, #tpu.memory_space<vmem>>, vector<8x8x512xf32>
    tpu.vector_store %arg7[%c0_8, %c0_9, %c0_10], %9 {strides = array<i32>} : memref<8x8x512xf32, #tpu.memory_space<vmem>>, vector<8x8x512xf32>,
    %cst_11 = arith.constant 0.000000e+00 : f32
    %11 = vector.broadcast %cst_11 : f32 to vector<8x128xf32>
    %cst_12 = arith.constant 0.000000e+00 : f32
    %12 = vector.broadcast %cst_12 : f32 to vector<8x128xf32>
    %c0_13 = arith.constant 0 : index
    %c0_14 = arith.constant 0 : index
    %c0_15 = arith.constant 0 : index
    %13 = vector.load %arg7[%c0_13, %c0_14, %c0_15] : memref<8x8x512xf32, #tpu.memory_space<vmem>>, vector<1x8x512xf32>
    %14 = vector.shape_cast %13 : vector<1x8x512xf32> to vector<8x512xf32>
    %15 = arith.truncf %11 : vector<8x128xf32> to vector<8x128xbf16>
    %c0_16 = arith.constant 0 : index
    %c0_17 = arith.constant 0 : index
    %c0_18 = arith.constant 0 : index
    %16 = vector.load %arg2[%c0_16, %c0_17, %c0_18] : memref<2x128x512xbf16, #tpu.memory_space<vmem>>, vector<1x128x512xbf16>
    %17 = vector.shape_cast %16 : vector<1x128x512xbf16> to vector<128x512xbf16>
    %cst_19 = arith.constant dense<0.000000e+00> : vector<8x512xf32>
    %18 = tpu.matmul %15, %17, %cst_19 {dimension_numbers = #tpu.dot_dimension_numbers<[1], [0], [0], [1], [0, 0, 1, 1], [], []>} : vector<8x128xbf16>, vector<128x512xbf16>, vector<8x512xf32> -> vector<8x512xf32>
    %19 = arith.addf %14, %18 : vector<8x512xf32>
    %20 = vector.extract_strided_slice %19 {offsets = [0, 0], sizes = [8, 384], strides = [1, 1]} : vector<8x512xf32> to vector<8x384xf32>
    %21 = arith.negf %20 : vector<8x384xf32>
    %22 = math.exp %21 : vector<8x384xf32>
    %cst_20 = arith.constant 1.000000e+00 : f32
    %23 = vector.broadcast %cst_20 : f32 to vector<8x384xf32>
    %24 = arith.addf %23, %22 : vector<8x384xf32>
    %25 = arith.divf %23, %24 : vector<8x384xf32>
    %26 = vector.extract_strided_slice %19 {offsets = [0, 384], sizes = [8, 128], strides = [1, 1]} : vector<8x512xf32> to vector<8x128xf32>
    %27 = math.tanh %26 : vector<8x128xf32>
    %28 = vector.extract_strided_slice %25 {offsets = [0, 0], sizes = [8, 128], strides = [1, 1]} : vector<8x384xf32> to vector<8x128xf32>
    %29 = vector.extract_strided_slice %25 {offsets = [0, 128], sizes = [8, 128], strides = [1, 1]} : vector<8x384xf32> to vector<8x128xf32>
    %30 = vector.extract_strided_slice %25 {offsets = [0, 256], sizes = [8, 128], strides = [1, 1]} : vector<8x384xf32> to vector<8x128xf32>
    %31 = arith.mulf %29, %12 : vector<8x128xf32>
    %32 = arith.mulf %28, %27 : vector<8x128xf32>
    %33 = arith.addf %31, %32 : vector<8x128xf32>
    %34 = math.tanh %33 : vector<8x128xf32>
    %35 = arith.mulf %30, %34 : vector<8x128xf32>
    %c0_21 = arith.constant 0 : index
    %c0_22 = arith.constant 0 : index
    %c0_23 = arith.constant 0 : index
    %36 = vector.load %arg8[%c0_21, %c0_22, %c0_23] : memref<8x8x128xf32, #tpu.memory_space<vmem>>, vector<1x8x128xf32>
    %37 = vector.shape_cast %36 : vector<1x8x128xf32> to vector<8x128xf32>
    %38 = vector.shape_cast %35 : vector<8x128xf32> to vector<1x8x128xf32>
    tpu.vector_store %arg8[%c0_21, %c0_22, %c0_23], %38 {strides = array<i32>} : memref<8x8x128xf32, #tpu.memory_space<vmem>>, vector<1x8x128xf32>,
    %c1 = arith.constant 1 : index
    %c0_24 = arith.constant 0 : index
    %c0_25 = arith.constant 0 : index
    %39 = vector.load %arg7[%c1, %c0_24, %c0_25] : memref<8x8x512xf32, #tpu.memory_space<vmem>>, vector<1x8x512xf32>
    %40 = vector.shape_cast %39 : vector<1x8x512xf32> to vector<8x512xf32>
    %41 = arith.truncf %35 : vector<8x128xf32> to vector<8x128xbf16>
    %c0_26 = arith.constant 0 : index
    %c0_27 = arith.constant 0 : index
    %c0_28 = arith.constant 0 : index
    %42 = vector.load %arg2[%c0_26, %c0_27, %c0_28] : memref<2x128x512xbf16, #tpu.memory_space<vmem>>, vector<1x128x512xbf16>
    %43 = vector.shape_cast %42 : vector<1x128x512xbf16> to vector<128x512xbf16>
    %cst_29 = arith.constant dense<0.000000e+00> : vector<8x512xf32>
    %44 = tpu.matmul %41, %43, %cst_29 {dimension_numbers = #tpu.dot_dimension_numbers<[1], [0], [0], [1], [0, 0, 1, 1], [], []>} : vector<8x128xbf16>, vector<128x512xbf16>, vector<8x512xf32> -> vector<8x512xf32>
    %45 = arith.addf %40, %44 : vector<8x512xf32>
    %46 = vector.extract_strided_slice %45 {offsets = [0, 0], sizes = [8, 384], strides = [1, 1]} : vector<8x512xf32> to vector<8x384xf32>
    %47 = arith.negf %46 : vector<8x384xf32>
    %48 = math.exp %47 : vector<8x384xf32>
    %cst_30 = arith.constant 1.000000e+00 : f32
    %49 = vector.broadcast %cst_30 : f32 to vector<8x384xf32>
    %50 = arith.addf %49, %48 : vector<8x384xf32>
    %51 = arith.divf %49, %50 : vector<8x384xf32>
    %52 = vector.extract_strided_slice %45 {offsets = [0, 384], sizes = [8, 128], strides = [1, 1]} : vector<8x512xf32> to vector<8x128xf32>
    %53 = math.tanh %52 : vector<8x128xf32>
    %54 = vector.extract_strided_slice %51 {offsets = [0, 0], sizes = [8, 128], strides = [1, 1]} : vector<8x384xf32> to vector<8x128xf32>
    %55 = vector.extract_strided_slice %51 {offsets = [0, 128], sizes = [8, 128], strides = [1, 1]} : vector<8x384xf32> to vector<8x128xf32>
    %56 = vector.extract_strided_slice %51 {offsets = [0, 256], sizes = [8, 128], strides = [1, 1]} : vector<8x384xf32> to vector<8x128xf32>
    %57 = arith.mulf %55, %33 : vector<8x128xf32>
    %58 = arith.mulf %54, %53 : vector<8x128xf32>
    %59 = arith.addf %57, %58 : vector<8x128xf32>
    %60 = math.tanh %59 : vector<8x128xf32>
    %61 = arith.mulf %56, %60 : vector<8x128xf32>
    %c1_31 = arith.constant 1 : index
    %c0_32 = arith.constant 0 : index
    %c0_33 = arith.constant 0 : index
    %62 = vector.load %arg8[%c1_31, %c0_32, %c0_33] : memref<8x8x128xf32, #tpu.memory_space<vmem>>, vector<1x8x128xf32>
    %63 = vector.shape_cast %62 : vector<1x8x128xf32> to vector<8x128xf32>
    %64 = vector.shape_cast %61 : vector<8x128xf32> to vector<1x8x128xf32>
    tpu.vector_store %arg8[%c1_31, %c0_32, %c0_33], %64 {strides = array<i32>} : memref<8x8x128xf32, #tpu.memory_space<vmem>>, vector<1x8x128xf32>,
    %c2 = arith.constant 2 : index
    %c0_34 = arith.constant 0 : index
    %c0_35 = arith.constant 0 : index
    %65 = vector.load %arg7[%c2, %c0_34, %c0_35] : memref<8x8x512xf32, #tpu.memory_space<vmem>>, vector<1x8x512xf32>
    %66 = vector.shape_cast %65 : vector<1x8x512xf32> to vector<8x512xf32>
    %67 = arith.truncf %61 : vector<8x128xf32> to vector<8x128xbf16>
    %c0_36 = arith.constant 0 : index
    %c0_37 = arith.constant 0 : index
    %c0_38 = arith.constant 0 : index
    %68 = vector.load %arg2[%c0_36, %c0_37, %c0_38] : memref<2x128x512xbf16, #tpu.memory_space<vmem>>, vector<1x128x512xbf16>
    %69 = vector.shape_cast %68 : vector<1x128x512xbf16> to vector<128x512xbf16>
    %cst_39 = arith.constant dense<0.000000e+00> : vector<8x512xf32>
    %70 = tpu.matmul %67, %69, %cst_39 {dimension_numbers = #tpu.dot_dimension_numbers<[1], [0], [0], [1], [0, 0, 1, 1], [], []>} : vector<8x128xbf16>, vector<128x512xbf16>, vector<8x512xf32> -> vector<8x512xf32>
    %71 = arith.addf %66, %70 : vector<8x512xf32>
    %72 = vector.extract_strided_slice %71 {offsets = [0, 0], sizes = [8, 384], strides = [1, 1]} : vector<8x512xf32> to vector<8x384xf32>
    %73 = arith.negf %72 : vector<8x384xf32>
    %74 = math.exp %73 : vector<8x384xf32>
    %cst_40 = arith.constant 1.000000e+00 : f32
    %75 = vector.broadcast %cst_40 : f32 to vector<8x384xf32>
    %76 = arith.addf %75, %74 : vector<8x384xf32>
    %77 = arith.divf %75, %76 : vector<8x384xf32>
    %78 = vector.extract_strided_slice %71 {offsets = [0, 384], sizes = [8, 128], strides = [1, 1]} : vector<8x512xf32> to vector<8x128xf32>
    %79 = math.tanh %78 : vector<8x128xf32>
    %80 = vector.extract_strided_slice %77 {offsets = [0, 0], sizes = [8, 128], strides = [1, 1]} : vector<8x384xf32> to vector<8x128xf32>
    %81 = vector.extract_strided_slice %77 {offsets = [0, 128], sizes = [8, 128], strides = [1, 1]} : vector<8x384xf32> to vector<8x128xf32>
    %82 = vector.extract_strided_slice %77 {offsets = [0, 256], sizes = [8, 128], strides = [1, 1]} : vector<8x384xf32> to vector<8x128xf32>
    %83 = arith.mulf %81, %59 : vector<8x128xf32>
    %84 = arith.mulf %80, %79 : vector<8x128xf32>
    %85 = arith.addf %83, %84 : vector<8x128xf32>
    %86 = math.tanh %85 : vector<8x128xf32>
    %87 = arith.mulf %82, %86 : vector<8x128xf32>
    %c2_41 = arith.constant 2 : index
    %c0_42 = arith.constant 0 : index
    %c0_43 = arith.constant 0 : index
    %88 = vector.load %arg8[%c2_41, %c0_42, %c0_43] : memref<8x8x128xf32, #tpu.memory_space<vmem>>, vector<1x8x128xf32>
    %89 = vector.shape_cast %88 : vector<1x8x128xf32> to vector<8x128xf32>
    %90 = vector.shape_cast %87 : vector<8x128xf32> to vector<1x8x128xf32>
    tpu.vector_store %arg8[%c2_41, %c0_42, %c0_43], %90 {strides = array<i32>} : memref<8x8x128xf32, #tpu.memory_space<vmem>>, vector<1x8x128xf32>,
    %c3 = arith.constant 3 : index
    %c0_44 = arith.constant 0 : index
    %c0_45 = arith.constant 0 : index
    %91 = vector.load %arg7[%c3, %c0_44, %c0_45] : memref<8x8x512xf32, #tpu.memory_space<vmem>>, vector<1x8x512xf32>
    %92 = vector.shape_cast %91 : vector<1x8x512xf32> to vector<8x512xf32>
    %93 = arith.truncf %87 : vector<8x128xf32> to vector<8x128xbf16>
    %c0_46 = arith.constant 0 : index
    %c0_47 = arith.constant 0 : index
    %c0_48 = arith.constant 0 : index
    %94 = vector.load %arg2[%c0_46, %c0_47, %c0_48] : memref<2x128x512xbf16, #tpu.memory_space<vmem>>, vector<1x128x512xbf16>
    %95 = vector.shape_cast %94 : vector<1x128x512xbf16> to vector<128x512xbf16>
    %cst_49 = arith.constant dense<0.000000e+00> : vector<8x512xf32>
    %96 = tpu.matmul %93, %95, %cst_49 {dimension_numbers = #tpu.dot_dimension_numbers<[1], [0], [0], [1], [0, 0, 1, 1], [], []>} : vector<8x128xbf16>, vector<128x512xbf16>, vector<8x512xf32> -> vector<8x512xf32>
    %97 = arith.addf %92, %96 : vector<8x512xf32>
    %98 = vector.extract_strided_slice %97 {offsets = [0, 0], sizes = [8, 384], strides = [1, 1]} : vector<8x512xf32> to vector<8x384xf32>
    %99 = arith.negf %98 : vector<8x384xf32>
    %100 = math.exp %99 : vector<8x384xf32>
    %cst_50 = arith.constant 1.000000e+00 : f32
    %101 = vector.broadcast %cst_50 : f32 to vector<8x384xf32>
    %102 = arith.addf %101, %100 : vector<8x384xf32>
    %103 = arith.divf %101, %102 : vector<8x384xf32>
    %104 = vector.extract_strided_slice %97 {offsets = [0, 384], sizes = [8, 128], strides = [1, 1]} : vector<8x512xf32> to vector<8x128xf32>
    %105 = math.tanh %104 : vector<8x128xf32>
    %106 = vector.extract_strided_slice %103 {offsets = [0, 0], sizes = [8, 128], strides = [1, 1]} : vector<8x384xf32> to vector<8x128xf32>
    %107 = vector.extract_strided_slice %103 {offsets = [0, 128], sizes = [8, 128], strides = [1, 1]} : vector<8x384xf32> to vector<8x128xf32>
    %108 = vector.extract_strided_slice %103 {offsets = [0, 256], sizes = [8, 128], strides = [1, 1]} : vector<8x384xf32> to vector<8x128xf32>
    %109 = arith.mulf %107, %85 : vector<8x128xf32>
    %110 = arith.mulf %106, %105 : vector<8x128xf32>
    %111 = arith.addf %109, %110 : vector<8x128xf32>
    %112 = math.tanh %111 : vector<8x128xf32>
    %113 = arith.mulf %108, %112 : vector<8x128xf32>
    %c3_51 = arith.constant 3 : index
    %c0_52 = arith.constant 0 : index
    %c0_53 = arith.constant 0 : index
    %114 = vector.load %arg8[%c3_51, %c0_52, %c0_53] : memref<8x8x128xf32, #tpu.memory_space<vmem>>, vector<1x8x128xf32>
    %115 = vector.shape_cast %114 : vector<1x8x128xf32> to vector<8x128xf32>
    %116 = vector.shape_cast %113 : vector<8x128xf32> to vector<1x8x128xf32>
    tpu.vector_store %arg8[%c3_51, %c0_52, %c0_53], %116 {strides = array<i32>} : memref<8x8x128xf32, #tpu.memory_space<vmem>>, vector<1x8x128xf32>,
    %c4 = arith.constant 4 : index
    %c0_54 = arith.constant 0 : index
    %c0_55 = arith.constant 0 : index
    %117 = vector.load %arg7[%c4, %c0_54, %c0_55] : memref<8x8x512xf32, #tpu.memory_space<vmem>>, vector<1x8x512xf32>
    %118 = vector.shape_cast %117 : vector<1x8x512xf32> to vector<8x512xf32>
    %119 = arith.truncf %113 : vector<8x128xf32> to vector<8x128xbf16>
    %c0_56 = arith.constant 0 : index
    %c0_57 = arith.constant 0 : index
    %c0_58 = arith.constant 0 : index
    %120 = vector.load %arg2[%c0_56, %c0_57, %c0_58] : memref<2x128x512xbf16, #tpu.memory_space<vmem>>, vector<1x128x512xbf16>
    %121 = vector.shape_cast %120 : vector<1x128x512xbf16> to vector<128x512xbf16>
    %cst_59 = arith.constant dense<0.000000e+00> : vector<8x512xf32>
    %122 = tpu.matmul %119, %121, %cst_59 {dimension_numbers = #tpu.dot_dimension_numbers<[1], [0], [0], [1], [0, 0, 1, 1], [], []>} : vector<8x128xbf16>, vector<128x512xbf16>, vector<8x512xf32> -> vector<8x512xf32>
    %123 = arith.addf %118, %122 : vector<8x512xf32>
    %124 = vector.extract_strided_slice %123 {offsets = [0, 0], sizes = [8, 384], strides = [1, 1]} : vector<8x512xf32> to vector<8x384xf32>
    %125 = arith.negf %124 : vector<8x384xf32>
    %126 = math.exp %125 : vector<8x384xf32>
    %cst_60 = arith.constant 1.000000e+00 : f32
    %127 = vector.broadcast %cst_60 : f32 to vector<8x384xf32>
    %128 = arith.addf %127, %126 : vector<8x384xf32>
    %129 = arith.divf %127, %128 : vector<8x384xf32>
    %130 = vector.extract_strided_slice %123 {offsets = [0, 384], sizes = [8, 128], strides = [1, 1]} : vector<8x512xf32> to vector<8x128xf32>
    %131 = math.tanh %130 : vector<8x128xf32>
    %132 = vector.extract_strided_slice %129 {offsets = [0, 0], sizes = [8, 128], strides = [1, 1]} : vector<8x384xf32> to vector<8x128xf32>
    %133 = vector.extract_strided_slice %129 {offsets = [0, 128], sizes = [8, 128], strides = [1, 1]} : vector<8x384xf32> to vector<8x128xf32>
    %134 = vector.extract_strided_slice %129 {offsets = [0, 256], sizes = [8, 128], strides = [1, 1]} : vector<8x384xf32> to vector<8x128xf32>
    %135 = arith.mulf %133, %111 : vector<8x128xf32>
    %136 = arith.mulf %132, %131 : vector<8x128xf32>
    %137 = arith.addf %135, %136 : vector<8x128xf32>
    %138 = math.tanh %137 : vector<8x128xf32>
    %139 = arith.mulf %134, %138 : vector<8x128xf32>
    %c4_61 = arith.constant 4 : index
    %c0_62 = arith.constant 0 : index
    %c0_63 = arith.constant 0 : index
    %140 = vector.load %arg8[%c4_61, %c0_62, %c0_63] : memref<8x8x128xf32, #tpu.memory_space<vmem>>, vector<1x8x128xf32>
    %141 = vector.shape_cast %140 : vector<1x8x128xf32> to vector<8x128xf32>
    %142 = vector.shape_cast %139 : vector<8x128xf32> to vector<1x8x128xf32>
    tpu.vector_store %arg8[%c4_61, %c0_62, %c0_63], %142 {strides = array<i32>} : memref<8x8x128xf32, #tpu.memory_space<vmem>>, vector<1x8x128xf32>,
    %c5 = arith.constant 5 : index
    %c0_64 = arith.constant 0 : index
    %c0_65 = arith.constant 0 : index
    %143 = vector.load %arg7[%c5, %c0_64, %c0_65] : memref<8x8x512xf32, #tpu.memory_space<vmem>>, vector<1x8x512xf32>
    %144 = vector.shape_cast %143 : vector<1x8x512xf32> to vector<8x512xf32>
    %145 = arith.truncf %139 : vector<8x128xf32> to vector<8x128xbf16>
    %c0_66 = arith.constant 0 : index
    %c0_67 = arith.constant 0 : index
    %c0_68 = arith.constant 0 : index
    %146 = vector.load %arg2[%c0_66, %c0_67, %c0_68] : memref<2x128x512xbf16, #tpu.memory_space<vmem>>, vector<1x128x512xbf16>
    %147 = vector.shape_cast %146 : vector<1x128x512xbf16> to vector<128x512xbf16>
    %cst_69 = arith.constant dense<0.000000e+00> : vector<8x512xf32>
    %148 = tpu.matmul %145, %147, %cst_69 {dimension_numbers = #tpu.dot_dimension_numbers<[1], [0], [0], [1], [0, 0, 1, 1], [], []>} : vector<8x128xbf16>, vector<128x512xbf16>, vector<8x512xf32> -> vector<8x512xf32>
    %149 = arith.addf %144, %148 : vector<8x512xf32>
    %150 = vector.extract_strided_slice %149 {offsets = [0, 0], sizes = [8, 384], strides = [1, 1]} : vector<8x512xf32> to vector<8x384xf32>
    %151 = arith.negf %150 : vector<8x384xf32>
    %152 = math.exp %151 : vector<8x384xf32>
    %cst_70 = arith.constant 1.000000e+00 : f32
    %153 = vector.broadcast %cst_70 : f32 to vector<8x384xf32>
    %154 = arith.addf %153, %152 : vector<8x384xf32>
    %155 = arith.divf %153, %154 : vector<8x384xf32>
    %156 = vector.extract_strided_slice %149 {offsets = [0, 384], sizes = [8, 128], strides = [1, 1]} : vector<8x512xf32> to vector<8x128xf32>
    %157 = math.tanh %156 : vector<8x128xf32>
    %158 = vector.extract_strided_slice %155 {offsets = [0, 0], sizes = [8, 128], strides = [1, 1]} : vector<8x384xf32> to vector<8x128xf32>
    %159 = vector.extract_strided_slice %155 {offsets = [0, 128], sizes = [8, 128], strides = [1, 1]} : vector<8x384xf32> to vector<8x128xf32>
    %160 = vector.extract_strided_slice %155 {offsets = [0, 256], sizes = [8, 128], strides = [1, 1]} : vector<8x384xf32> to vector<8x128xf32>
    %161 = arith.mulf %159, %137 : vector<8x128xf32>
    %162 = arith.mulf %158, %157 : vector<8x128xf32>
    %163 = arith.addf %161, %162 : vector<8x128xf32>
    %164 = math.tanh %163 : vector<8x128xf32>
    %165 = arith.mulf %160, %164 : vector<8x128xf32>
    %c5_71 = arith.constant 5 : index
    %c0_72 = arith.constant 0 : index
    %c0_73 = arith.constant 0 : index
    %166 = vector.load %arg8[%c5_71, %c0_72, %c0_73] : memref<8x8x128xf32, #tpu.memory_space<vmem>>, vector<1x8x128xf32>
    %167 = vector.shape_cast %166 : vector<1x8x128xf32> to vector<8x128xf32>
    %168 = vector.shape_cast %165 : vector<8x128xf32> to vector<1x8x128xf32>
    tpu.vector_store %arg8[%c5_71, %c0_72, %c0_73], %168 {strides = array<i32>} : memref<8x8x128xf32, #tpu.memory_space<vmem>>, vector<1x8x128xf32>,
    %c6 = arith.constant 6 : index
    %c0_74 = arith.constant 0 : index
    %c0_75 = arith.constant 0 : index
    %169 = vector.load %arg7[%c6, %c0_74, %c0_75] : memref<8x8x512xf32, #tpu.memory_space<vmem>>, vector<1x8x512xf32>
    %170 = vector.shape_cast %169 : vector<1x8x512xf32> to vector<8x512xf32>
    %171 = arith.truncf %165 : vector<8x128xf32> to vector<8x128xbf16>
    %c0_76 = arith.constant 0 : index
    %c0_77 = arith.constant 0 : index
    %c0_78 = arith.constant 0 : index
    %172 = vector.load %arg2[%c0_76, %c0_77, %c0_78] : memref<2x128x512xbf16, #tpu.memory_space<vmem>>, vector<1x128x512xbf16>
    %173 = vector.shape_cast %172 : vector<1x128x512xbf16> to vector<128x512xbf16>
    %cst_79 = arith.constant dense<0.000000e+00> : vector<8x512xf32>
    %174 = tpu.matmul %171, %173, %cst_79 {dimension_numbers = #tpu.dot_dimension_numbers<[1], [0], [0], [1], [0, 0, 1, 1], [], []>} : vector<8x128xbf16>, vector<128x512xbf16>, vector<8x512xf32> -> vector<8x512xf32>
    %175 = arith.addf %170, %174 : vector<8x512xf32>
    %176 = vector.extract_strided_slice %175 {offsets = [0, 0], sizes = [8, 384], strides = [1, 1]} : vector<8x512xf32> to vector<8x384xf32>
    %177 = arith.negf %176 : vector<8x384xf32>
    %178 = math.exp %177 : vector<8x384xf32>
    %cst_80 = arith.constant 1.000000e+00 : f32
    %179 = vector.broadcast %cst_80 : f32 to vector<8x384xf32>
    %180 = arith.addf %179, %178 : vector<8x384xf32>
    %181 = arith.divf %179, %180 : vector<8x384xf32>
    %182 = vector.extract_strided_slice %175 {offsets = [0, 384], sizes = [8, 128], strides = [1, 1]} : vector<8x512xf32> to vector<8x128xf32>
    %183 = math.tanh %182 : vector<8x128xf32>
    %184 = vector.extract_strided_slice %181 {offsets = [0, 0], sizes = [8, 128], strides = [1, 1]} : vector<8x384xf32> to vector<8x128xf32>
    %185 = vector.extract_strided_slice %181 {offsets = [0, 128], sizes = [8, 128], strides = [1, 1]} : vector<8x384xf32> to vector<8x128xf32>
    %186 = vector.extract_strided_slice %181 {offsets = [0, 256], sizes = [8, 128], strides = [1, 1]} : vector<8x384xf32> to vector<8x128xf32>
    %187 = arith.mulf %185, %163 : vector<8x128xf32>
    %188 = arith.mulf %184, %183 : vector<8x128xf32>
    %189 = arith.addf %187, %188 : vector<8x128xf32>
    %190 = math.tanh %189 : vector<8x128xf32>
    %191 = arith.mulf %186, %190 : vector<8x128xf32>
    %c6_81 = arith.constant 6 : index
    %c0_82 = arith.constant 0 : index
    %c0_83 = arith.constant 0 : index
    %192 = vector.load %arg8[%c6_81, %c0_82, %c0_83] : memref<8x8x128xf32, #tpu.memory_space<vmem>>, vector<1x8x128xf32>
    %193 = vector.shape_cast %192 : vector<1x8x128xf32> to vector<8x128xf32>
    %194 = vector.shape_cast %191 : vector<8x128xf32> to vector<1x8x128xf32>
    tpu.vector_store %arg8[%c6_81, %c0_82, %c0_83], %194 {strides = array<i32>} : memref<8x8x128xf32, #tpu.memory_space<vmem>>, vector<1x8x128xf32>,
    %c7 = arith.constant 7 : index
    %c0_84 = arith.constant 0 : index
    %c0_85 = arith.constant 0 : index
    %195 = vector.load %arg7[%c7, %c0_84, %c0_85] : memref<8x8x512xf32, #tpu.memory_space<vmem>>, vector<1x8x512xf32>
    %196 = vector.shape_cast %195 : vector<1x8x512xf32> to vector<8x512xf32>
    %197 = arith.truncf %191 : vector<8x128xf32> to vector<8x128xbf16>
    %c0_86 = arith.constant 0 : index
    %c0_87 = arith.constant 0 : index
    %c0_88 = arith.constant 0 : index
    %198 = vector.load %arg2[%c0_86, %c0_87, %c0_88] : memref<2x128x512xbf16, #tpu.memory_space<vmem>>, vector<1x128x512xbf16>
    %199 = vector.shape_cast %198 : vector<1x128x512xbf16> to vector<128x512xbf16>
    %cst_89 = arith.constant dense<0.000000e+00> : vector<8x512xf32>
    %200 = tpu.matmul %197, %199, %cst_89 {dimension_numbers = #tpu.dot_dimension_numbers<[1], [0], [0], [1], [0, 0, 1, 1], [], []>} : vector<8x128xbf16>, vector<128x512xbf16>, vector<8x512xf32> -> vector<8x512xf32>
    %201 = arith.addf %196, %200 : vector<8x512xf32>
    %202 = vector.extract_strided_slice %201 {offsets = [0, 0], sizes = [8, 384], strides = [1, 1]} : vector<8x512xf32> to vector<8x384xf32>
    %203 = arith.negf %202 : vector<8x384xf32>
    %204 = math.exp %203 : vector<8x384xf32>
    %cst_90 = arith.constant 1.000000e+00 : f32
    %205 = vector.broadcast %cst_90 : f32 to vector<8x384xf32>
    %206 = arith.addf %205, %204 : vector<8x384xf32>
    %207 = arith.divf %205, %206 : vector<8x384xf32>
    %208 = vector.extract_strided_slice %201 {offsets = [0, 384], sizes = [8, 128], strides = [1, 1]} : vector<8x512xf32> to vector<8x128xf32>
    %209 = math.tanh %208 : vector<8x128xf32>
    %210 = vector.extract_strided_slice %207 {offsets = [0, 0], sizes = [8, 128], strides = [1, 1]} : vector<8x384xf32> to vector<8x128xf32>
    %211 = vector.extract_strided_slice %207 {offsets = [0, 128], sizes = [8, 128], strides = [1, 1]} : vector<8x384xf32> to vector<8x128xf32>
    %212 = vector.extract_strided_slice %207 {offsets = [0, 256], sizes = [8, 128], strides = [1, 1]} : vector<8x384xf32> to vector<8x128xf32>
    %213 = arith.mulf %211, %189 : vector<8x128xf32>
    %214 = arith.mulf %210, %209 : vector<8x128xf32>
    %215 = arith.addf %213, %214 : vector<8x128xf32>
    %216 = math.tanh %215 : vector<8x128xf32>
    %217 = arith.mulf %212, %216 : vector<8x128xf32>
    %c7_91 = arith.constant 7 : index
    %c0_92 = arith.constant 0 : index
    %c0_93 = arith.constant 0 : index
    %218 = vector.load %arg8[%c7_91, %c0_92, %c0_93] : memref<8x8x128xf32, #tpu.memory_space<vmem>>, vector<1x8x128xf32>
    %219 = vector.shape_cast %218 : vector<1x8x128xf32> to vector<8x128xf32>
    %220 = vector.shape_cast %217 : vector<8x128xf32> to vector<1x8x128xf32>
    tpu.vector_store %arg8[%c7_91, %c0_92, %c0_93], %220 {strides = array<i32>} : memref<8x8x128xf32, #tpu.memory_space<vmem>>, vector<1x8x128xf32>,
    %c0_94 = arith.constant 0 : index
    %c0_95 = arith.constant 0 : index
    %c0_96 = arith.constant 0 : index
    %221 = vector.load %arg8[%c0_94, %c0_95, %c0_96] : memref<8x8x128xf32, #tpu.memory_space<vmem>>, vector<8x8x128xf32>
    %222 = arith.truncf %221 : vector<8x8x128xf32> to vector<8x8x128xbf16>
    %223 = vector.shape_cast %222 : vector<8x8x128xbf16> to vector<64x128xbf16>
    %c1_97 = arith.constant 1 : index
    %c0_98 = arith.constant 0 : index
    %c0_99 = arith.constant 0 : index
    %224 = vector.load %arg1[%c1_97, %c0_98, %c0_99] : memref<2x128x512xbf16, #tpu.memory_space<vmem>>, vector<1x128x512xbf16>
    %225 = vector.shape_cast %224 : vector<1x128x512xbf16> to vector<128x512xbf16>
    %cst_100 = arith.constant dense<0.000000e+00> : vector<64x512xf32>
    %226 = tpu.matmul %223, %225, %cst_100 {dimension_numbers = #tpu.dot_dimension_numbers<[1], [0], [0], [1], [0, 0, 1, 1], [], []>} : vector<64x128xbf16>, vector<128x512xbf16>, vector<64x512xf32> -> vector<64x512xf32>
    %c1_101 = arith.constant 1 : index
    %c0_102 = arith.constant 0 : index
    %c0_103 = arith.constant 0 : index
    %227 = vector.load %arg3[%c1_101, %c0_102, %c0_103] : memref<2x1x512xf32, #tpu.memory_space<vmem>>, vector<1x1x512xf32>
    %228 = vector.shape_cast %227 : vector<1x1x512xf32> to vector<1x512xf32>
    %229 = vector.broadcast %228 : vector<1x512xf32> to vector<64x512xf32>
    %230 = arith.addf %226, %229 : vector<64x512xf32>
    %231 = vector.shape_cast %230 : vector<64x512xf32> to vector<8x8x512xf32>
    %c0_104 = arith.constant 0 : index
    %c0_105 = arith.constant 0 : index
    %c0_106 = arith.constant 0 : index
    %232 = vector.load %arg7[%c0_104, %c0_105, %c0_106] : memref<8x8x512xf32, #tpu.memory_space<vmem>>, vector<8x8x512xf32>
    tpu.vector_store %arg7[%c0_104, %c0_105, %c0_106], %231 {strides = array<i32>} : memref<8x8x512xf32, #tpu.memory_space<vmem>>, vector<8x8x512xf32>,
    %cst_107 = arith.constant 0.000000e+00 : f32
    %233 = vector.broadcast %cst_107 : f32 to vector<8x128xf32>
    %cst_108 = arith.constant 0.000000e+00 : f32
    %234 = vector.broadcast %cst_108 : f32 to vector<8x128xf32>
    %c0_109 = arith.constant 0 : index
    %c0_110 = arith.constant 0 : index
    %c0_111 = arith.constant 0 : index
    %235 = vector.load %arg7[%c0_109, %c0_110, %c0_111] : memref<8x8x512xf32, #tpu.memory_space<vmem>>, vector<1x8x512xf32>
    %236 = vector.shape_cast %235 : vector<1x8x512xf32> to vector<8x512xf32>
    %237 = arith.truncf %233 : vector<8x128xf32> to vector<8x128xbf16>
    %c1_112 = arith.constant 1 : index
    %c0_113 = arith.constant 0 : index
    %c0_114 = arith.constant 0 : index
    %238 = vector.load %arg2[%c1_112, %c0_113, %c0_114] : memref<2x128x512xbf16, #tpu.memory_space<vmem>>, vector<1x128x512xbf16>
    %239 = vector.shape_cast %238 : vector<1x128x512xbf16> to vector<128x512xbf16>
    %cst_115 = arith.constant dense<0.000000e+00> : vector<8x512xf32>
    %240 = tpu.matmul %237, %239, %cst_115 {dimension_numbers = #tpu.dot_dimension_numbers<[1], [0], [0], [1], [0, 0, 1, 1], [], []>} : vector<8x128xbf16>, vector<128x512xbf16>, vector<8x512xf32> -> vector<8x512xf32>
    %241 = arith.addf %236, %240 : vector<8x512xf32>
    %242 = vector.extract_strided_slice %241 {offsets = [0, 0], sizes = [8, 384], strides = [1, 1]} : vector<8x512xf32> to vector<8x384xf32>
    %243 = arith.negf %242 : vector<8x384xf32>
    %244 = math.exp %243 : vector<8x384xf32>
    %cst_116 = arith.constant 1.000000e+00 : f32
    %245 = vector.broadcast %cst_116 : f32 to vector<8x384xf32>
    %246 = arith.addf %245, %244 : vector<8x384xf32>
    %247 = arith.divf %245, %246 : vector<8x384xf32>
    %248 = vector.extract_strided_slice %241 {offsets = [0, 384], sizes = [8, 128], strides = [1, 1]} : vector<8x512xf32> to vector<8x128xf32>
    %249 = math.tanh %248 : vector<8x128xf32>
    %250 = vector.extract_strided_slice %247 {offsets = [0, 0], sizes = [8, 128], strides = [1, 1]} : vector<8x384xf32> to vector<8x128xf32>
    %251 = vector.extract_strided_slice %247 {offsets = [0, 128], sizes = [8, 128], strides = [1, 1]} : vector<8x384xf32> to vector<8x128xf32>
    %252 = vector.extract_strided_slice %247 {offsets = [0, 256], sizes = [8, 128], strides = [1, 1]} : vector<8x384xf32> to vector<8x128xf32>
    %253 = arith.mulf %251, %234 : vector<8x128xf32>
    %254 = arith.mulf %250, %249 : vector<8x128xf32>
    %255 = arith.addf %253, %254 : vector<8x128xf32>
    %256 = math.tanh %255 : vector<8x128xf32>
    %257 = arith.mulf %252, %256 : vector<8x128xf32>
    %c1_117 = arith.constant 1 : index
    %c0_118 = arith.constant 0 : index
    %c0_119 = arith.constant 0 : index
    %258 = vector.load %arg7[%c1_117, %c0_118, %c0_119] : memref<8x8x512xf32, #tpu.memory_space<vmem>>, vector<1x8x512xf32>
    %259 = vector.shape_cast %258 : vector<1x8x512xf32> to vector<8x512xf32>
    %260 = arith.truncf %257 : vector<8x128xf32> to vector<8x128xbf16>
    %c1_120 = arith.constant 1 : index
    %c0_121 = arith.constant 0 : index
    %c0_122 = arith.constant 0 : index
    %261 = vector.load %arg2[%c1_120, %c0_121, %c0_122] : memref<2x128x512xbf16, #tpu.memory_space<vmem>>, vector<1x128x512xbf16>
    %262 = vector.shape_cast %261 : vector<1x128x512xbf16> to vector<128x512xbf16>
    %cst_123 = arith.constant dense<0.000000e+00> : vector<8x512xf32>
    %263 = tpu.matmul %260, %262, %cst_123 {dimension_numbers = #tpu.dot_dimension_numbers<[1], [0], [0], [1], [0, 0, 1, 1], [], []>} : vector<8x128xbf16>, vector<128x512xbf16>, vector<8x512xf32> -> vector<8x512xf32>
    %264 = arith.addf %259, %263 : vector<8x512xf32>
    %265 = vector.extract_strided_slice %264 {offsets = [0, 0], sizes = [8, 384], strides = [1, 1]} : vector<8x512xf32> to vector<8x384xf32>
    %266 = arith.negf %265 : vector<8x384xf32>
    %267 = math.exp %266 : vector<8x384xf32>
    %cst_124 = arith.constant 1.000000e+00 : f32
    %268 = vector.broadcast %cst_124 : f32 to vector<8x384xf32>
    %269 = arith.addf %268, %267 : vector<8x384xf32>
    %270 = arith.divf %268, %269 : vector<8x384xf32>
    %271 = vector.extract_strided_slice %264 {offsets = [0, 384], sizes = [8, 128], strides = [1, 1]} : vector<8x512xf32> to vector<8x128xf32>
    %272 = math.tanh %271 : vector<8x128xf32>
    %273 = vector.extract_strided_slice %270 {offsets = [0, 0], sizes = [8, 128], strides = [1, 1]} : vector<8x384xf32> to vector<8x128xf32>
    %274 = vector.extract_strided_slice %270 {offsets = [0, 128], sizes = [8, 128], strides = [1, 1]} : vector<8x384xf32> to vector<8x128xf32>
    %275 = vector.extract_strided_slice %270 {offsets = [0, 256], sizes = [8, 128], strides = [1, 1]} : vector<8x384xf32> to vector<8x128xf32>
    %276 = arith.mulf %274, %255 : vector<8x128xf32>
    %277 = arith.mulf %273, %272 : vector<8x128xf32>
    %278 = arith.addf %276, %277 : vector<8x128xf32>
    %279 = math.tanh %278 : vector<8x128xf32>
    %280 = arith.mulf %275, %279 : vector<8x128xf32>
    %c2_125 = arith.constant 2 : index
    %c0_126 = arith.constant 0 : index
    %c0_127 = arith.constant 0 : index
    %281 = vector.load %arg7[%c2_125, %c0_126, %c0_127] : memref<8x8x512xf32, #tpu.memory_space<vmem>>, vector<1x8x512xf32>
    %282 = vector.shape_cast %281 : vector<1x8x512xf32> to vector<8x512xf32>
    %283 = arith.truncf %280 : vector<8x128xf32> to vector<8x128xbf16>
    %c1_128 = arith.constant 1 : index
    %c0_129 = arith.constant 0 : index
    %c0_130 = arith.constant 0 : index
    %284 = vector.load %arg2[%c1_128, %c0_129, %c0_130] : memref<2x128x512xbf16, #tpu.memory_space<vmem>>, vector<1x128x512xbf16>
    %285 = vector.shape_cast %284 : vector<1x128x512xbf16> to vector<128x512xbf16>
    %cst_131 = arith.constant dense<0.000000e+00> : vector<8x512xf32>
    %286 = tpu.matmul %283, %285, %cst_131 {dimension_numbers = #tpu.dot_dimension_numbers<[1], [0], [0], [1], [0, 0, 1, 1], [], []>} : vector<8x128xbf16>, vector<128x512xbf16>, vector<8x512xf32> -> vector<8x512xf32>
    %287 = arith.addf %282, %286 : vector<8x512xf32>
    %288 = vector.extract_strided_slice %287 {offsets = [0, 0], sizes = [8, 384], strides = [1, 1]} : vector<8x512xf32> to vector<8x384xf32>
    %289 = arith.negf %288 : vector<8x384xf32>
    %290 = math.exp %289 : vector<8x384xf32>
    %cst_132 = arith.constant 1.000000e+00 : f32
    %291 = vector.broadcast %cst_132 : f32 to vector<8x384xf32>
    %292 = arith.addf %291, %290 : vector<8x384xf32>
    %293 = arith.divf %291, %292 : vector<8x384xf32>
    %294 = vector.extract_strided_slice %287 {offsets = [0, 384], sizes = [8, 128], strides = [1, 1]} : vector<8x512xf32> to vector<8x128xf32>
    %295 = math.tanh %294 : vector<8x128xf32>
    %296 = vector.extract_strided_slice %293 {offsets = [0, 0], sizes = [8, 128], strides = [1, 1]} : vector<8x384xf32> to vector<8x128xf32>
    %297 = vector.extract_strided_slice %293 {offsets = [0, 128], sizes = [8, 128], strides = [1, 1]} : vector<8x384xf32> to vector<8x128xf32>
    %298 = vector.extract_strided_slice %293 {offsets = [0, 256], sizes = [8, 128], strides = [1, 1]} : vector<8x384xf32> to vector<8x128xf32>
    %299 = arith.mulf %297, %278 : vector<8x128xf32>
    %300 = arith.mulf %296, %295 : vector<8x128xf32>
    %301 = arith.addf %299, %300 : vector<8x128xf32>
    %302 = math.tanh %301 : vector<8x128xf32>
    %303 = arith.mulf %298, %302 : vector<8x128xf32>
    %c3_133 = arith.constant 3 : index
    %c0_134 = arith.constant 0 : index
    %c0_135 = arith.constant 0 : index
    %304 = vector.load %arg7[%c3_133, %c0_134, %c0_135] : memref<8x8x512xf32, #tpu.memory_space<vmem>>, vector<1x8x512xf32>
    %305 = vector.shape_cast %304 : vector<1x8x512xf32> to vector<8x512xf32>
    %306 = arith.truncf %303 : vector<8x128xf32> to vector<8x128xbf16>
    %c1_136 = arith.constant 1 : index
    %c0_137 = arith.constant 0 : index
    %c0_138 = arith.constant 0 : index
    %307 = vector.load %arg2[%c1_136, %c0_137, %c0_138] : memref<2x128x512xbf16, #tpu.memory_space<vmem>>, vector<1x128x512xbf16>
    %308 = vector.shape_cast %307 : vector<1x128x512xbf16> to vector<128x512xbf16>
    %cst_139 = arith.constant dense<0.000000e+00> : vector<8x512xf32>
    %309 = tpu.matmul %306, %308, %cst_139 {dimension_numbers = #tpu.dot_dimension_numbers<[1], [0], [0], [1], [0, 0, 1, 1], [], []>} : vector<8x128xbf16>, vector<128x512xbf16>, vector<8x512xf32> -> vector<8x512xf32>
    %310 = arith.addf %305, %309 : vector<8x512xf32>
    %311 = vector.extract_strided_slice %310 {offsets = [0, 0], sizes = [8, 384], strides = [1, 1]} : vector<8x512xf32> to vector<8x384xf32>
    %312 = arith.negf %311 : vector<8x384xf32>
    %313 = math.exp %312 : vector<8x384xf32>
    %cst_140 = arith.constant 1.000000e+00 : f32
    %314 = vector.broadcast %cst_140 : f32 to vector<8x384xf32>
    %315 = arith.addf %314, %313 : vector<8x384xf32>
    %316 = arith.divf %314, %315 : vector<8x384xf32>
    %317 = vector.extract_strided_slice %310 {offsets = [0, 384], sizes = [8, 128], strides = [1, 1]} : vector<8x512xf32> to vector<8x128xf32>
    %318 = math.tanh %317 : vector<8x128xf32>
    %319 = vector.extract_strided_slice %316 {offsets = [0, 0], sizes = [8, 128], strides = [1, 1]} : vector<8x384xf32> to vector<8x128xf32>
    %320 = vector.extract_strided_slice %316 {offsets = [0, 128], sizes = [8, 128], strides = [1, 1]} : vector<8x384xf32> to vector<8x128xf32>
    %321 = vector.extract_strided_slice %316 {offsets = [0, 256], sizes = [8, 128], strides = [1, 1]} : vector<8x384xf32> to vector<8x128xf32>
    %322 = arith.mulf %320, %301 : vector<8x128xf32>
    %323 = arith.mulf %319, %318 : vector<8x128xf32>
    %324 = arith.addf %322, %323 : vector<8x128xf32>
    %325 = math.tanh %324 : vector<8x128xf32>
    %326 = arith.mulf %321, %325 : vector<8x128xf32>
    %c4_141 = arith.constant 4 : index
    %c0_142 = arith.constant 0 : index
    %c0_143 = arith.constant 0 : index
    %327 = vector.load %arg7[%c4_141, %c0_142, %c0_143] : memref<8x8x512xf32, #tpu.memory_space<vmem>>, vector<1x8x512xf32>
    %328 = vector.shape_cast %327 : vector<1x8x512xf32> to vector<8x512xf32>
    %329 = arith.truncf %326 : vector<8x128xf32> to vector<8x128xbf16>
    %c1_144 = arith.constant 1 : index
    %c0_145 = arith.constant 0 : index
    %c0_146 = arith.constant 0 : index
    %330 = vector.load %arg2[%c1_144, %c0_145, %c0_146] : memref<2x128x512xbf16, #tpu.memory_space<vmem>>, vector<1x128x512xbf16>
    %331 = vector.shape_cast %330 : vector<1x128x512xbf16> to vector<128x512xbf16>
    %cst_147 = arith.constant dense<0.000000e+00> : vector<8x512xf32>
    %332 = tpu.matmul %329, %331, %cst_147 {dimension_numbers = #tpu.dot_dimension_numbers<[1], [0], [0], [1], [0, 0, 1, 1], [], []>} : vector<8x128xbf16>, vector<128x512xbf16>, vector<8x512xf32> -> vector<8x512xf32>
    %333 = arith.addf %328, %332 : vector<8x512xf32>
    %334 = vector.extract_strided_slice %333 {offsets = [0, 0], sizes = [8, 384], strides = [1, 1]} : vector<8x512xf32> to vector<8x384xf32>
    %335 = arith.negf %334 : vector<8x384xf32>
    %336 = math.exp %335 : vector<8x384xf32>
    %cst_148 = arith.constant 1.000000e+00 : f32
    %337 = vector.broadcast %cst_148 : f32 to vector<8x384xf32>
    %338 = arith.addf %337, %336 : vector<8x384xf32>
    %339 = arith.divf %337, %338 : vector<8x384xf32>
    %340 = vector.extract_strided_slice %333 {offsets = [0, 384], sizes = [8, 128], strides = [1, 1]} : vector<8x512xf32> to vector<8x128xf32>
    %341 = math.tanh %340 : vector<8x128xf32>
    %342 = vector.extract_strided_slice %339 {offsets = [0, 0], sizes = [8, 128], strides = [1, 1]} : vector<8x384xf32> to vector<8x128xf32>
    %343 = vector.extract_strided_slice %339 {offsets = [0, 128], sizes = [8, 128], strides = [1, 1]} : vector<8x384xf32> to vector<8x128xf32>
    %344 = vector.extract_strided_slice %339 {offsets = [0, 256], sizes = [8, 128], strides = [1, 1]} : vector<8x384xf32> to vector<8x128xf32>
    %345 = arith.mulf %343, %324 : vector<8x128xf32>
    %346 = arith.mulf %342, %341 : vector<8x128xf32>
    %347 = arith.addf %345, %346 : vector<8x128xf32>
    %348 = math.tanh %347 : vector<8x128xf32>
    %349 = arith.mulf %344, %348 : vector<8x128xf32>
    %c5_149 = arith.constant 5 : index
    %c0_150 = arith.constant 0 : index
    %c0_151 = arith.constant 0 : index
    %350 = vector.load %arg7[%c5_149, %c0_150, %c0_151] : memref<8x8x512xf32, #tpu.memory_space<vmem>>, vector<1x8x512xf32>
    %351 = vector.shape_cast %350 : vector<1x8x512xf32> to vector<8x512xf32>
    %352 = arith.truncf %349 : vector<8x128xf32> to vector<8x128xbf16>
    %c1_152 = arith.constant 1 : index
    %c0_153 = arith.constant 0 : index
    %c0_154 = arith.constant 0 : index
    %353 = vector.load %arg2[%c1_152, %c0_153, %c0_154] : memref<2x128x512xbf16, #tpu.memory_space<vmem>>, vector<1x128x512xbf16>
    %354 = vector.shape_cast %353 : vector<1x128x512xbf16> to vector<128x512xbf16>
    %cst_155 = arith.constant dense<0.000000e+00> : vector<8x512xf32>
    %355 = tpu.matmul %352, %354, %cst_155 {dimension_numbers = #tpu.dot_dimension_numbers<[1], [0], [0], [1], [0, 0, 1, 1], [], []>} : vector<8x128xbf16>, vector<128x512xbf16>, vector<8x512xf32> -> vector<8x512xf32>
    %356 = arith.addf %351, %355 : vector<8x512xf32>
    %357 = vector.extract_strided_slice %356 {offsets = [0, 0], sizes = [8, 384], strides = [1, 1]} : vector<8x512xf32> to vector<8x384xf32>
    %358 = arith.negf %357 : vector<8x384xf32>
    %359 = math.exp %358 : vector<8x384xf32>
    %cst_156 = arith.constant 1.000000e+00 : f32
    %360 = vector.broadcast %cst_156 : f32 to vector<8x384xf32>
    %361 = arith.addf %360, %359 : vector<8x384xf32>
    %362 = arith.divf %360, %361 : vector<8x384xf32>
    %363 = vector.extract_strided_slice %356 {offsets = [0, 384], sizes = [8, 128], strides = [1, 1]} : vector<8x512xf32> to vector<8x128xf32>
    %364 = math.tanh %363 : vector<8x128xf32>
    %365 = vector.extract_strided_slice %362 {offsets = [0, 0], sizes = [8, 128], strides = [1, 1]} : vector<8x384xf32> to vector<8x128xf32>
    %366 = vector.extract_strided_slice %362 {offsets = [0, 128], sizes = [8, 128], strides = [1, 1]} : vector<8x384xf32> to vector<8x128xf32>
    %367 = vector.extract_strided_slice %362 {offsets = [0, 256], sizes = [8, 128], strides = [1, 1]} : vector<8x384xf32> to vector<8x128xf32>
    %368 = arith.mulf %366, %347 : vector<8x128xf32>
    %369 = arith.mulf %365, %364 : vector<8x128xf32>
    %370 = arith.addf %368, %369 : vector<8x128xf32>
    %371 = math.tanh %370 : vector<8x128xf32>
    %372 = arith.mulf %367, %371 : vector<8x128xf32>
    %c6_157 = arith.constant 6 : index
    %c0_158 = arith.constant 0 : index
    %c0_159 = arith.constant 0 : index
    %373 = vector.load %arg7[%c6_157, %c0_158, %c0_159] : memref<8x8x512xf32, #tpu.memory_space<vmem>>, vector<1x8x512xf32>
    %374 = vector.shape_cast %373 : vector<1x8x512xf32> to vector<8x512xf32>
    %375 = arith.truncf %372 : vector<8x128xf32> to vector<8x128xbf16>
    %c1_160 = arith.constant 1 : index
    %c0_161 = arith.constant 0 : index
    %c0_162 = arith.constant 0 : index
    %376 = vector.load %arg2[%c1_160, %c0_161, %c0_162] : memref<2x128x512xbf16, #tpu.memory_space<vmem>>, vector<1x128x512xbf16>
    %377 = vector.shape_cast %376 : vector<1x128x512xbf16> to vector<128x512xbf16>
    %cst_163 = arith.constant dense<0.000000e+00> : vector<8x512xf32>
    %378 = tpu.matmul %375, %377, %cst_163 {dimension_numbers = #tpu.dot_dimension_numbers<[1], [0], [0], [1], [0, 0, 1, 1], [], []>} : vector<8x128xbf16>, vector<128x512xbf16>, vector<8x512xf32> -> vector<8x512xf32>
    %379 = arith.addf %374, %378 : vector<8x512xf32>
    %380 = vector.extract_strided_slice %379 {offsets = [0, 0], sizes = [8, 384], strides = [1, 1]} : vector<8x512xf32> to vector<8x384xf32>
    %381 = arith.negf %380 : vector<8x384xf32>
    %382 = math.exp %381 : vector<8x384xf32>
    %cst_164 = arith.constant 1.000000e+00 : f32
    %383 = vector.broadcast %cst_164 : f32 to vector<8x384xf32>
    %384 = arith.addf %383, %382 : vector<8x384xf32>
    %385 = arith.divf %383, %384 : vector<8x384xf32>
    %386 = vector.extract_strided_slice %379 {offsets = [0, 384], sizes = [8, 128], strides = [1, 1]} : vector<8x512xf32> to vector<8x128xf32>
    %387 = math.tanh %386 : vector<8x128xf32>
    %388 = vector.extract_strided_slice %385 {offsets = [0, 0], sizes = [8, 128], strides = [1, 1]} : vector<8x384xf32> to vector<8x128xf32>
    %389 = vector.extract_strided_slice %385 {offsets = [0, 128], sizes = [8, 128], strides = [1, 1]} : vector<8x384xf32> to vector<8x128xf32>
    %390 = vector.extract_strided_slice %385 {offsets = [0, 256], sizes = [8, 128], strides = [1, 1]} : vector<8x384xf32> to vector<8x128xf32>
    %391 = arith.mulf %389, %370 : vector<8x128xf32>
    %392 = arith.mulf %388, %387 : vector<8x128xf32>
    %393 = arith.addf %391, %392 : vector<8x128xf32>
    %394 = math.tanh %393 : vector<8x128xf32>
    %395 = arith.mulf %390, %394 : vector<8x128xf32>
    %c7_165 = arith.constant 7 : index
    %c0_166 = arith.constant 0 : index
    %c0_167 = arith.constant 0 : index
    %396 = vector.load %arg7[%c7_165, %c0_166, %c0_167] : memref<8x8x512xf32, #tpu.memory_space<vmem>>, vector<1x8x512xf32>
    %397 = vector.shape_cast %396 : vector<1x8x512xf32> to vector<8x512xf32>
    %398 = arith.truncf %395 : vector<8x128xf32> to vector<8x128xbf16>
    %c1_168 = arith.constant 1 : index
    %c0_169 = arith.constant 0 : index
    %c0_170 = arith.constant 0 : index
    %399 = vector.load %arg2[%c1_168, %c0_169, %c0_170] : memref<2x128x512xbf16, #tpu.memory_space<vmem>>, vector<1x128x512xbf16>
    %400 = vector.shape_cast %399 : vector<1x128x512xbf16> to vector<128x512xbf16>
    %cst_171 = arith.constant dense<0.000000e+00> : vector<8x512xf32>
    %401 = tpu.matmul %398, %400, %cst_171 {dimension_numbers = #tpu.dot_dimension_numbers<[1], [0], [0], [1], [0, 0, 1, 1], [], []>} : vector<8x128xbf16>, vector<128x512xbf16>, vector<8x512xf32> -> vector<8x512xf32>
    %402 = arith.addf %397, %401 : vector<8x512xf32>
    %403 = vector.extract_strided_slice %402 {offsets = [0, 0], sizes = [8, 384], strides = [1, 1]} : vector<8x512xf32> to vector<8x384xf32>
    %404 = arith.negf %403 : vector<8x384xf32>
    %405 = math.exp %404 : vector<8x384xf32>
    %cst_172 = arith.constant 1.000000e+00 : f32
    %406 = vector.broadcast %cst_172 : f32 to vector<8x384xf32>
    %407 = arith.addf %406, %405 : vector<8x384xf32>
    %408 = arith.divf %406, %407 : vector<8x384xf32>
    %409 = vector.extract_strided_slice %402 {offsets = [0, 384], sizes = [8, 128], strides = [1, 1]} : vector<8x512xf32> to vector<8x128xf32>
    %410 = math.tanh %409 : vector<8x128xf32>
    %411 = vector.extract_strided_slice %408 {offsets = [0, 0], sizes = [8, 128], strides = [1, 1]} : vector<8x384xf32> to vector<8x128xf32>
    %412 = vector.extract_strided_slice %408 {offsets = [0, 128], sizes = [8, 128], strides = [1, 1]} : vector<8x384xf32> to vector<8x128xf32>
    %413 = vector.extract_strided_slice %408 {offsets = [0, 256], sizes = [8, 128], strides = [1, 1]} : vector<8x384xf32> to vector<8x128xf32>
    %414 = arith.mulf %412, %393 : vector<8x128xf32>
    %415 = arith.mulf %411, %410 : vector<8x128xf32>
    %416 = arith.addf %414, %415 : vector<8x128xf32>
    %417 = math.tanh %416 : vector<8x128xf32>
    %418 = arith.mulf %413, %417 : vector<8x128xf32>
    %419 = arith.truncf %418 : vector<8x128xf32> to vector<8x128xbf16>
    %c0_173 = arith.constant 0 : index
    %c0_174 = arith.constant 0 : index
    %420 = vector.load %arg4[%c0_173, %c0_174] : memref<128x128xbf16, #tpu.memory_space<vmem>>, vector<128x128xbf16>
    %cst_175 = arith.constant dense<0.000000e+00> : vector<8x128xf32>
    %421 = tpu.matmul %419, %420, %cst_175 {dimension_numbers = #tpu.dot_dimension_numbers<[1], [0], [0], [1], [0, 0, 1, 1], [], []>} : vector<8x128xbf16>, vector<128x128xbf16>, vector<8x128xf32> -> vector<8x128xf32>
    %c0_176 = arith.constant 0 : index
    %c0_177 = arith.constant 0 : index
    %422 = vector.load %arg5[%c0_176, %c0_177] : memref<1x128xf32, #tpu.memory_space<vmem>>, vector<1x128xf32>
    %423 = vector.broadcast %422 : vector<1x128xf32> to vector<8x128xf32>
    %424 = arith.addf %421, %423 : vector<8x128xf32>
    %425 = math.tanh %424 : vector<8x128xf32>
    %c0_178 = arith.constant 0 : index
    %c0_179 = arith.constant 0 : index
    %426 = vector.load %arg6[%c0_178, %c0_179] : memref<8x128xf32, #tpu.memory_space<vmem>>, vector<8x128xf32>
    tpu.vector_store %arg6[%c0_178, %c0_179], %425 {strides = array<i32>} : memref<8x128xf32, #tpu.memory_space<vmem>>, vector<8x128xf32>,
    return
  }
}

</mosaic_0001>

<llo_original>
// kernel: tpu_custom_call.1
$region0: #{tpu_custom_call.1}
  #allocation0 [shape = 'u32[]', space=smem, size = 0x4, offset = 0x4, fixed_abs, tag = 'smem constant byte address 0x4 - core index']
  #allocation1 [shape = 'u32[144,128]{1,0:T(1,128)}', space=vmem, size = 0x12000, scoped, tag = 'internal scratch']
  #allocation2 [shape = 'f32[8,8,512]{2,1,0:T(8,128)}', space=vmem, size = 0x20000, scoped, tag = 'scratch operand']
  #allocation3 [shape = 'f32[8,8,128]{2,1,0:T(8,128)}', space=vmem, size = 0x8000, scoped, tag = 'scratch operand']
  %s0 = inlined_call_operand.hbm [shape: bf16[8,8,128], index: 0, kind: input, shape index: {}]
  %s1 = inlined_call_operand.hbm [shape: bf16[2,128,512], index: 1, kind: input, shape index: {}]
  %s2 = inlined_call_operand.hbm [shape: bf16[2,128,512], index: 2, kind: input, shape index: {}]
  %s3 = inlined_call_operand.vmem [shape: f32[2,1,512], index: 3, kind: input, shape index: {}]
  %s4 = inlined_call_operand.hbm [shape: bf16[128,128], index: 4, kind: input, shape index: {}]
  %s5 = inlined_call_operand.vmem [shape: f32[1,128], index: 5, kind: input, shape index: {}]
  %s6 = inlined_call_operand.hbm [shape: f32[8,128], index: 6, kind: output, shape index: {}]
  %s7 = sld [smem:[#allocation0]]
  $region50: #{tpu_custom_call.1} parent=0
    _
  %s9 = ssub.s32 1, %s7
  %s10 = scalar_select 0, %s9, %s7
  $region1: #{tpu_custom_call.1} parent=0
    #allocation4 [shape = 'u8[16384]{0}', space=vmem, size = 0x4000, scoped, tag = 'input window, operand 0, single buffered']
    #allocation5 [shape = 's32[1]{0}', space=sflag, size = 0x4, scoped, tag = 'scoped memory for tpu_custom_call.1']
    #allocation6 [shape = 's32[1]{0}', space=sflag, size = 0x4, scoped, tag = 'scoped memory for tpu_custom_call.1']
    #allocation7 [shape = 'u8[262144]{0}', space=vmem, size = 0x40000, scoped, tag = 'input window, operand 1, single buffered']
    #allocation8 [shape = 's32[1]{0}', space=sflag, size = 0x4, scoped, tag = 'scoped memory for tpu_custom_call.1']
    #allocation9 [shape = 'u8[262144]{0}', space=vmem, size = 0x40000, scoped, tag = 'input window, operand 2, single buffered']
    #allocation10 [shape = 'u8[32768]{0}', space=vmem, size = 0x8000, scoped, tag = 'input window, operand 4, single buffered']
    #allocation11 [shape = 's32[1]{0}', space=sflag, size = 0x4, scoped, tag = 'scoped memory for tpu_custom_call.1']
    #allocation12 [shape = 'u8[4096]{0}', space=vmem, size = 0x1000, scoped, tag = 'output window, operand 0, single buffered']
    %11 = vsyncpa [#allocation5], 0
    %12 = vsyncpa [#allocation8], 0
    %13 = vsyncpa [#allocation11], 0
    %14 = vsyncpa [#allocation6], 0
    // Predicated region
    $region2: #{tpu_custom_call.1} parent=1 // pred_check
      _
    $region3: #{tpu_custom_call.1} parent=1 // pred_check_branch
      %16 = sbr.rel (0) target = $region5
    $region4: #{tpu_custom_call.1} parent=1 // pred_region
      %s18 = ssub.s32 512, 512
      %19 = vsyncadd [#allocation5], %s18
      %s20 = sshll.u32 [#allocation4], 4
      %s21 = int_to_ptr.vmem [resolvable:$true] %s20
      %26 = dma.hbm_to_vmem [thread:$0]  %s0, 512, %s21, [#allocation5], 64, 64, 4
    $region5: #{tpu_custom_call.1} parent=1 // pred_fallthru
      _
    // Predicated region
    $region6: #{tpu_custom_call.1} parent=1 // pred_check
      _
    $region7: #{tpu_custom_call.1} parent=1 // pred_check_branch
      %28 = sbr.rel (0) target = $region9
    $region8: #{tpu_custom_call.1} parent=1 // pred_region
      %s30 = ssub.s32 8192, 8192
      %31 = vsyncadd [#allocation8], %s30
      %s32 = sshll.u32 [#allocation7], 4
      %s33 = int_to_ptr.vmem [resolvable:$true] %s32
      %38 = dma.hbm_to_vmem [thread:$0]  %s1, 8192, %s33, [#allocation8], 256, 256, 16
    $region9: #{tpu_custom_call.1} parent=1 // pred_fallthru
      _
    // Predicated region
    $region10: #{tpu_custom_call.1} parent=1 // pred_check
      _
    $region11: #{tpu_custom_call.1} parent=1 // pred_check_branch
      %40 = sbr.rel (0) target = $region13
    $region12: #{tpu_custom_call.1} parent=1 // pred_region
      %s42 = ssub.s32 8192, 8192
      %43 = vsyncadd [#allocation8], %s42
      %s44 = sshll.u32 [#allocation9], 4
      %s45 = int_to_ptr.vmem [resolvable:$true] %s44
      %50 = dma.hbm_to_vmem [thread:$0]  %s2, 8192, %s45, [#allocation8], 256, 256, 16
    $region13: #{tpu_custom_call.1} parent=1 // pred_fallthru
      _
    // Predicated region
    $region14: #{tpu_custom_call.1} parent=1 // pred_check
      _
    $region15: #{tpu_custom_call.1} parent=1 // pred_check_branch
      %52 = sbr.rel (0) target = $region17
    $region16: #{tpu_custom_call.1} parent=1 // pred_region
      _
    $region17: #{tpu_custom_call.1} parent=1 // pred_fallthru
      _
    // Predicated region
    $region18: #{tpu_custom_call.1} parent=1 // pred_check
      _
    $region19: #{tpu_custom_call.1} parent=1 // pred_check_branch
      %54 = sbr.rel (0) target = $region21
    $region20: #{tpu_custom_call.1} parent=1 // pred_region
      %s56 = ssub.s32 1024, 1024
      %57 = vsyncadd [#allocation11], %s56
      %s58 = sshll.u32 [#allocation10], 4
      %s59 = int_to_ptr.vmem [resolvable:$true] %s58
      %64 = dma.hbm_to_vmem [thread:$0]  %s4, 1024, %s59, [#allocation11], 64, 64, 4
    $region21: #{tpu_custom_call.1} parent=1 // pred_fallthru
      _
    // Predicated region
    $region22: #{tpu_custom_call.1} parent=1 // pred_check
      _
    $region23: #{tpu_custom_call.1} parent=1 // pred_check_branch
      %66 = sbr.rel (0) target = $region25
    $region24: #{tpu_custom_call.1} parent=1 // pred_region
      _
    $region25: #{tpu_custom_call.1} parent=1 // pred_fallthru
      _
    // Predicated region
    $region26: #{tpu_custom_call.1} parent=1 // pred_check
      _
    $region27: #{tpu_custom_call.1} parent=1 // pred_check_branch
      %68 = sbr.rel (0) target = $region29
    $region28: #{tpu_custom_call.1} parent=1 // pred_region
      %69 = dma.done [#allocation5], 512
    $region29: #{tpu_custom_call.1} parent=1 // pred_fallthru
      _
    // Predicated region
    $region30: #{tpu_custom_call.1} parent=1 // pred_check
      _
    $region31: #{tpu_custom_call.1} parent=1 // pred_check_branch
      %71 = sbr.rel (0) target = $region33
    $region32: #{tpu_custom_call.1} parent=1 // pred_region
      %72 = dma.done [#allocation8], 8192
    $region33: #{tpu_custom_call.1} parent=1 // pred_fallthru
      _
    // Predicated region
    $region34: #{tpu_custom_call.1} parent=1 // pred_check
      _
    $region35: #{tpu_custom_call.1} parent=1 // pred_check_branch
      %74 = sbr.rel (0) target = $region37
    $region36: #{tpu_custom_call.1} parent=1 // pred_region
      %75 = dma.done [#allocation8], 8192
    $region37: #{tpu_custom_call.1} parent=1 // pred_fallthru
      _
    // Predicated region
    $region38: #{tpu_custom_call.1} parent=1 // pred_check
      _
    $region39: #{tpu_custom_call.1} parent=1 // pred_check_branch
      %77 = sbr.rel (0) target = $region41
    $region40: #{tpu_custom_call.1} parent=1 // pred_region
      %78 = dma.done [#allocation11], 1024
    $region41: #{tpu_custom_call.1} parent=1 // pred_fallthru
      _
    %v80 = vld [vmem:[#allocation4] sm:$0xf]
    %v81 = vld [vmem:[#allocation4 + $0x4] sm:$0xf]
    %v82 = vld [vmem:[#allocation4 + $0x8] sm:$0xf]
    %v83 = vld [vmem:[#allocation4 + $0xc] sm:$0xf]
    %v84 = vld [vmem:[#allocation4 + $0x10] sm:$0xf]
    %v85 = vld [vmem:[#allocation4 + $0x14] sm:$0xf]
    %v86 = vld [vmem:[#allocation4 + $0x18] sm:$0xf]
    %v87 = vld [vmem:[#allocation4 + $0x1c] sm:$0xf]
    %v88 = vld [vmem:[#allocation7] sm:$0xff]
    %v89 = vld [vmem:[#allocation7 + $0x8] sm:$0xff]
    %v90 = vld [vmem:[#allocation7 + $0x10] sm:$0xff]
    %v91 = vld [vmem:[#allocation7 + $0x18] sm:$0xff]
    %v92 = vld [vmem:[#allocation7 + $0x20] sm:$0xff]
    %v93 = vld [vmem:[#allocation7 + $0x28] sm:$0xff]
    %v94 = vld [vmem:[#allocation7 + $0x30] sm:$0xff]
    %v95 = vld [vmem:[#allocation7 + $0x38] sm:$0xff]
    %v96 = vld [vmem:[#allocation7 + $0x40] sm:$0xff]
    %v97 = vld [vmem:[#allocation7 + $0x48] sm:$0xff]
    %v98 = vld [vmem:[#allocation7 + $0x50] sm:$0xff]
    %v99 = vld [vmem:[#allocation7 + $0x58] sm:$0xff]
    %v100 = vld [vmem:[#allocation7 + $0x60] sm:$0xff]
    %v101 = vld [vmem:[#allocation7 + $0x68] sm:$0xff]
    %v102 = vld [vmem:[#allocation7 + $0x70] sm:$0xff]
    %v103 = vld [vmem:[#allocation7 + $0x78] sm:$0xff]
    %v104 = vld [vmem:[#allocation7 + $0x80] sm:$0xff]
    %v105 = vld [vmem:[#allocation7 + $0x88] sm:$0xff]
    %v106 = vld [vmem:[#allocation7 + $0x90] sm:$0xff]
    %v107 = vld [vmem:[#allocation7 + $0x98] sm:$0xff]
    %v108 = vld [vmem:[#allocation7 + $0xa0] sm:$0xff]
    %v109 = vld [vmem:[#allocation7 + $0xa8] sm:$0xff]
    %v110 = vld [vmem:[#allocation7 + $0xb0] sm:$0xff]
    %v111 = vld [vmem:[#allocation7 + $0xb8] sm:$0xff]
    %v112 = vld [vmem:[#allocation7 + $0xc0] sm:$0xff]
    %v113 = vld [vmem:[#allocation7 + $0xc8] sm:$0xff]
    %v114 = vld [vmem:[#allocation7 + $0xd0] sm:$0xff]
    %v115 = vld [vmem:[#allocation7 + $0xd8] sm:$0xff]
    %v116 = vld [vmem:[#allocation7 + $0xe0] sm:$0xff]
    %v117 = vld [vmem:[#allocation7 + $0xe8] sm:$0xff]
    %v118 = vld [vmem:[#allocation7 + $0xf0] sm:$0xff]
    %v119 = vld [vmem:[#allocation7 + $0xf8] sm:$0xff]
    %v120 = vld [vmem:[%s3] sm:$0xf]
    %v122 = vlaneseq
    %v123 = vshrl.u32 %v122, 7
    %v124 = vsub.s32 0, %v123
    %v125 = vrot.slane %v120, %v124
    %v126 = vlaneseq
    %v127 = vshrl.u32 %v126, 7
    %v128 = vsub.s32 1, %v127
    %v129 = vrot.slane %v120, %v128
    %v130 = vlaneseq
    %v131 = vshrl.u32 %v130, 7
    %v132 = vsub.s32 2, %v131
    %v133 = vrot.slane %v120, %v132
    %v134 = vlaneseq
    %v135 = vshrl.u32 %v134, 7
    %v136 = vsub.s32 3, %v135
    %v137 = vrot.slane %v120, %v136
    %v150 = vunpack.c.l.b16 %v80
    %v151 = vunpack.c.l.b16 %v81
    %v152 = vunpack.c.l.b16 %v82
    %v153 = vunpack.c.l.b16 %v83
    %v154 = vunpack.c.l.b16 %v84
    %v155 = vunpack.c.l.b16 %v85
    %v156 = vunpack.c.l.b16 %v86
    %v157 = vunpack.c.l.b16 %v87
    %v158 = vpack.c.b16 %v151, %v150
    %v159 = vpack.c.b16 %v153, %v152
    %v160 = vpack.c.b16 %v155, %v154
    %v161 = vpack.c.b16 %v157, %v156
    %v198 = vunpack.c.l.b16 %v88
    %v199 = vunpack.c.h.b16 %v88
    %v200 = vunpack.c.l.b16 %v89
    %v201 = vunpack.c.h.b16 %v89
    %v202 = vunpack.c.l.b16 %v90
    %v203 = vunpack.c.h.b16 %v90
    %v204 = vunpack.c.l.b16 %v91
    %v205 = vunpack.c.h.b16 %v91
    %v206 = vunpack.c.l.b16 %v92
    %v207 = vunpack.c.h.b16 %v92
    %v208 = vunpack.c.l.b16 %v93
    %v209 = vunpack.c.h.b16 %v93
    %v210 = vunpack.c.l.b16 %v94
    %v211 = vunpack.c.h.b16 %v94
    %v212 = vunpack.c.l.b16 %v95
    %v213 = vunpack.c.h.b16 %v95
    %v214 = vunpack.c.l.b16 %v96
    %v215 = vunpack.c.h.b16 %v96
    %v216 = vunpack.c.l.b16 %v97
    %v217 = vunpack.c.h.b16 %v97
    %v218 = vunpack.c.l.b16 %v98
    %v219 = vunpack.c.h.b16 %v98
    %v220 = vunpack.c.l.b16 %v99
    %v221 = vunpack.c.h.b16 %v99
    %v222 = vunpack.c.l.b16 %v100
    %v223 = vunpack.c.h.b16 %v100
    %v224 = vunpack.c.l.b16 %v101
    %v225 = vunpack.c.h.b16 %v101
    %v226 = vunpack.c.l.b16 %v102
    %v227 = vunpack.c.h.b16 %v102
    %v228 = vunpack.c.l.b16 %v103
    %v229 = vunpack.c.h.b16 %v103
    %v230 = vunpack.c.l.b16 %v104
    %v231 = vunpack.c.h.b16 %v104
    %v232 = vunpack.c.l.b16 %v105
    %v233 = vunpack.c.h.b16 %v105
    %v234 = vunpack.c.l.b16 %v106
    %v235 = vunpack.c.h.b16 %v106
    %v236 = vunpack.c.l.b16 %v107
    %v237 = vunpack.c.h.b16 %v107
    %v238 = vunpack.c.l.b16 %v108
    %v239 = vunpack.c.h.b16 %v108
    %v240 = vunpack.c.l.b16 %v109
    %v241 = vunpack.c.h.b16 %v109
    %v242 = vunpack.c.l.b16 %v110
    %v243 = vunpack.c.h.b16 %v110
    %v244 = vunpack.c.l.b16 %v111
    %v245 = vunpack.c.h.b16 %v111
    %v246 = vunpack.c.l.b16 %v112
    %v247 = vunpack.c.h.b16 %v112
    %v248 = vunpack.c.l.b16 %v113
    %v249 = vunpack.c.h.b16 %v113
    %v250 = vunpack.c.l.b16 %v114
    %v251 = vunpack.c.h.b16 %v114
    %v252 = vunpack.c.l.b16 %v115
    %v253 = vunpack.c.h.b16 %v115
    %v254 = vunpack.c.l.b16 %v116
    %v255 = vunpack.c.h.b16 %v116
    %v256 = vunpack.c.l.b16 %v117
    %v257 = vunpack.c.h.b16 %v117
    %v258 = vunpack.c.l.b16 %v118
    %v259 = vunpack.c.h.b16 %v118
    %v260 = vunpack.c.l.b16 %v119
    %v261 = vunpack.c.h.b16 %v119
    %v262 = vpack.c.b16 %v202, %v198
    %v263 = vpack.c.b16 %v203, %v199
    %v264 = vpack.c.b16 %v204, %v200
    %v265 = vpack.c.b16 %v205, %v201
    %v266 = vpack.c.b16 %v210, %v206
    %v267 = vpack.c.b16 %v211, %v207
    %v268 = vpack.c.b16 %v212, %v208
    %v269 = vpack.c.b16 %v213, %v209
    %v270 = vpack.c.b16 %v218, %v214
    %v271 = vpack.c.b16 %v219, %v215
    %v272 = vpack.c.b16 %v220, %v216
    %v273 = vpack.c.b16 %v221, %v217
    %v274 = vpack.c.b16 %v226, %v222
    %v275 = vpack.c.b16 %v227, %v223
    %v276 = vpack.c.b16 %v228, %v224
    %v277 = vpack.c.b16 %v229, %v225
    %v278 = vpack.c.b16 %v234, %v230
    %v279 = vpack.c.b16 %v235, %v231
    %v280 = vpack.c.b16 %v236, %v232
    %v281 = vpack.c.b16 %v237, %v233
    %v282 = vpack.c.b16 %v242, %v238
    %v283 = vpack.c.b16 %v243, %v239
    %v284 = vpack.c.b16 %v244, %v240
    %v285 = vpack.c.b16 %v245, %v241
    %v286 = vpack.c.b16 %v250, %v246
    %v287 = vpack.c.b16 %v251, %v247
    %v288 = vpack.c.b16 %v252, %v248
    %v289 = vpack.c.b16 %v253, %v249
    %v290 = vpack.c.b16 %v258, %v254
    %v291 = vpack.c.b16 %v259, %v255
    %v292 = vpack.c.b16 %v260, %v256
    %v293 = vpack.c.b16 %v261, %v257
    %326 = vmatprep.subr.bf16.mxu0 %v263
    %327 = vmatpush1.bf16.msra.mxu0 %v262
    %328 = vmatprep.subr.bf16.mxu0 %v267
    %329 = vmatpush1.bf16.msra.mxu0 %v266
    %330 = vmatprep.subr.bf16.mxu0 %v271
    %331 = vmatpush1.bf16.msra.mxu0 %v270
    %332 = vmatprep.subr.bf16.mxu0 %v275
    %333 = vmatpush1.bf16.msra.mxu0 %v274
    %334 = vmatprep.subr.bf16.mxu0 %v279
    %335 = vmatpush1.bf16.msra.mxu0 %v278
    %336 = vmatprep.subr.bf16.mxu0 %v283
    %337 = vmatpush1.bf16.msra.mxu0 %v282
    %338 = vmatprep.subr.bf16.mxu0 %v287
    %339 = vmatpush1.bf16.msra.mxu0 %v286
    %340 = vmatprep.subr.bf16.mxu0 %v291
    %341 = vmatpush1.bf16.msra.mxu0 %v290
    %342 = vmatprep.subr.bf16.mxu0 0
    %343 = vmatpush1.bf16.msra.mxu0 0
    %344 = vmatprep.subr.bf16.mxu0 0
    %345 = vmatpush1.bf16.msra.mxu0 0
    %346 = vmatprep.subr.bf16.mxu0 0
    %347 = vmatpush1.bf16.msra.mxu0 0
    %348 = vmatprep.subr.bf16.mxu0 0
    %349 = vmatpush1.bf16.msra.mxu0 0
    %350 = vmatprep.subr.bf16.mxu0 0
    %351 = vmatpush1.bf16.msra.mxu0 0
    %352 = vmatprep.subr.bf16.mxu0 0
    %353 = vmatpush1.bf16.msra.mxu0 0
    %354 = vmatprep.subr.bf16.mxu0 0
    %355 = vmatpush1.bf16.msra.mxu0 0
    %356 = vmatprep.subr.bf16.mxu0 0
    %357 = vmatpush1.bf16.msra.mxu0 0
    %358 = vmatprep.mubr.bf16.mxu0 0
    %359 = vmatmul.mubr.bf16.gmra.mrb[0].mxu0 %v158
    %v360 = vpop.f32.mrb[0].mxu0
    %v361 = vadd.f32 %v125, %v360
    %v362 = vpop.f32.mrb[0].mxu0
    %v363 = vadd.f32 %v129, %v362
    %v364 = vpop.f32.mrb[0].mxu0
    %v365 = vadd.f32 %v125, %v364
    %v366 = vpop.f32.mrb[0].mxu0
    %v367 = vadd.f32 %v129, %v366
    %368 = vmatprep.mubr.bf16.mxu0 0
    %369 = vmatmul.mubr.bf16.gmra.mrb[0].mxu0 %v159
    %v370 = vpop.f32.mrb[0].mxu0
    %v371 = vadd.f32 %v125, %v370
    %v372 = vpop.f32.mrb[0].mxu0
    %v373 = vadd.f32 %v129, %v372
    %v374 = vpop.f32.mrb[0].mxu0
    %v375 = vadd.f32 %v125, %v374
    %v376 = vpop.f32.mrb[0].mxu0
    %v377 = vadd.f32 %v129, %v376
    %378 = vmatprep.mubr.bf16.mxu0 0
    %379 = vmatmul.mubr.bf16.gmra.mrb[0].mxu0 %v160
    %v380 = vpop.f32.mrb[0].mxu0
    %v381 = vadd.f32 %v125, %v380
    %v382 = vpop.f32.mrb[0].mxu0
    %v383 = vadd.f32 %v129, %v382
    %v384 = vpop.f32.mrb[0].mxu0
    %v385 = vadd.f32 %v125, %v384
    %v386 = vpop.f32.mrb[0].mxu0
    %v387 = vadd.f32 %v129, %v386
    %388 = vmatprep.mubr.bf16.mxu0 0
    %389 = vmatmul.mubr.bf16.gmra.mrb[0].mxu0 %v161
    %v390 = vpop.f32.mrb[0].mxu0
    %v391 = vadd.f32 %v125, %v390
    %v392 = vpop.f32.mrb[0].mxu0
    %v393 = vadd.f32 %v129, %v392
    %v394 = vpop.f32.mrb[0].mxu0
    %v395 = vadd.f32 %v125, %v394
    %v396 = vpop.f32.mrb[0].mxu0
    %v397 = vadd.f32 %v129, %v396
    %398 = vdwg.mxu0
    %399 = vmatprep.subr.bf16.mxu0 %v265
    %400 = vmatpush1.bf16.msra.mxu0 %v264
    %401 = vmatprep.subr.bf16.mxu0 %v269
    %402 = vmatpush1.bf16.msra.mxu0 %v268
    %403 = vmatprep.subr.bf16.mxu0 %v273
    %404 = vmatpush1.bf16.msra.mxu0 %v272
    %405 = vmatprep.subr.bf16.mxu0 %v277
    %406 = vmatpush1.bf16.msra.mxu0 %v276
    %407 = vmatprep.subr.bf16.mxu0 %v281
    %408 = vmatpush1.bf16.msra.mxu0 %v280
    %409 = vmatprep.subr.bf16.mxu0 %v285
    %410 = vmatpush1.bf16.msra.mxu0 %v284
    %411 = vmatprep.subr.bf16.mxu0 %v289
    %412 = vmatpush1.bf16.msra.mxu0 %v288
    %413 = vmatprep.subr.bf16.mxu0 %v293
    %414 = vmatpush1.bf16.msra.mxu0 %v292
    %415 = vmatprep.subr.bf16.mxu0 0
    %416 = vmatpush1.bf16.msra.mxu0 0
    %417 = vmatprep.subr.bf16.mxu0 0
    %418 = vmatpush1.bf16.msra.mxu0 0
    %419 = vmatprep.subr.bf16.mxu0 0
    %420 = vmatpush1.bf16.msra.mxu0 0
    %421 = vmatprep.subr.bf16.mxu0 0
    %422 = vmatpush1.bf16.msra.mxu0 0
    %423 = vmatprep.subr.bf16.mxu0 0
    %424 = vmatpush1.bf16.msra.mxu0 0
    %425 = vmatprep.subr.bf16.mxu0 0
    %426 = vmatpush1.bf16.msra.mxu0 0
    %427 = vmatprep.subr.bf16.mxu0 0
    %428 = vmatpush1.bf16.msra.mxu0 0
    %429 = vmatprep.subr.bf16.mxu0 0
    %430 = vmatpush1.bf16.msra.mxu0 0
    %431 = vmatprep.mubr.bf16.mxu0 0
    %432 = vmatmul.mubr.bf16.gmra.mrb[0].mxu0 %v158
    %v433 = vpop.f32.mrb[0].mxu0
    %v434 = vadd.f32 %v133, %v433
    %v435 = vpop.f32.mrb[0].mxu0
    %v436 = vadd.f32 %v137, %v435
    %v437 = vpop.f32.mrb[0].mxu0
    %v438 = vadd.f32 %v133, %v437
    %v439 = vpop.f32.mrb[0].mxu0
    %v440 = vadd.f32 %v137, %v439
    %441 = vmatprep.mubr.bf16.mxu0 0
    %442 = vmatmul.mubr.bf16.gmra.mrb[0].mxu0 %v159
    %v443 = vpop.f32.mrb[0].mxu0
    %v444 = vadd.f32 %v133, %v443
    %v445 = vpop.f32.mrb[0].mxu0
    %v446 = vadd.f32 %v137, %v445
    %v447 = vpop.f32.mrb[0].mxu0
    %v448 = vadd.f32 %v133, %v447
    %v449 = vpop.f32.mrb[0].mxu0
    %v450 = vadd.f32 %v137, %v449
    %451 = vmatprep.mubr.bf16.mxu0 0
    %452 = vmatmul.mubr.bf16.gmra.mrb[0].mxu0 %v160
    %v453 = vpop.f32.mrb[0].mxu0
    %v454 = vadd.f32 %v133, %v453
    %v455 = vpop.f32.mrb[0].mxu0
    %v456 = vadd.f32 %v137, %v455
    %v457 = vpop.f32.mrb[0].mxu0
    %v458 = vadd.f32 %v133, %v457
    %v459 = vpop.f32.mrb[0].mxu0
    %v460 = vadd.f32 %v137, %v459
    %461 = vmatprep.mubr.bf16.mxu0 0
    %462 = vmatmul.mubr.bf16.gmra.mrb[0].mxu0 %v161
    %v463 = vpop.f32.mrb[0].mxu0
    %v464 = vadd.f32 %v133, %v463
    %v465 = vpop.f32.mrb[0].mxu0
    %v466 = vadd.f32 %v137, %v465
    %v467 = vpop.f32.mrb[0].mxu0
    %v468 = vadd.f32 %v133, %v467
    %v469 = vpop.f32.mrb[0].mxu0
    %v470 = vadd.f32 %v137, %v469
    %471 = vdwg.mxu0
    %472 = vst [vmem:[#allocation2] sm:$0xff] %v361
    %473 = vst [vmem:[#allocation2 + $0x8] sm:$0xff] %v363
    %474 = vst [vmem:[#allocation2 + $0x10] sm:$0xff] %v434
    %475 = vst [vmem:[#allocation2 + $0x18] sm:$0xff] %v436
    %476 = vst [vmem:[#allocation2 + $0x20] sm:$0xff] %v365
    %477 = vst [vmem:[#allocation2 + $0x28] sm:$0xff] %v367
    %478 = vst [vmem:[#allocation2 + $0x30] sm:$0xff] %v438
    %479 = vst [vmem:[#allocation2 + $0x38] sm:$0xff] %v440
    %480 = vst [vmem:[#allocation2 + $0x40] sm:$0xff] %v371
    %481 = vst [vmem:[#allocation2 + $0x48] sm:$0xff] %v373
    %482 = vst [vmem:[#allocation2 + $0x50] sm:$0xff] %v444
    %483 = vst [vmem:[#allocation2 + $0x58] sm:$0xff] %v446
    %484 = vst [vmem:[#allocation2 + $0x60] sm:$0xff] %v375
    %485 = vst [vmem:[#allocation2 + $0x68] sm:$0xff] %v377
    %486 = vst [vmem:[#allocation2 + $0x70] sm:$0xff] %v448
    %487 = vst [vmem:[#allocation2 + $0x78] sm:$0xff] %v450
    %488 = vst [vmem:[#allocation2 + $0x80] sm:$0xff] %v381
    %489 = vst [vmem:[#allocation2 + $0x88] sm:$0xff] %v383
    %490 = vst [vmem:[#allocation2 + $0x90] sm:$0xff] %v454
    %491 = vst [vmem:[#allocation2 + $0x98] sm:$0xff] %v456
    %492 = vst [vmem:[#allocation2 + $0xa0] sm:$0xff] %v385
    %493 = vst [vmem:[#allocation2 + $0xa8] sm:$0xff] %v387
    %494 = vst [vmem:[#allocation2 + $0xb0] sm:$0xff] %v458
    %495 = vst [vmem:[#allocation2 + $0xb8] sm:$0xff] %v460
    %496 = vst [vmem:[#allocation2 + $0xc0] sm:$0xff] %v391
    %497 = vst [vmem:[#allocation2 + $0xc8] sm:$0xff] %v393
    %498 = vst [vmem:[#allocation2 + $0xd0] sm:$0xff] %v464
    %499 = vst [vmem:[#allocation2 + $0xd8] sm:$0xff] %v466
    %500 = vst [vmem:[#allocation2 + $0xe0] sm:$0xff] %v395
    %501 = vst [vmem:[#allocation2 + $0xe8] sm:$0xff] %v397
    %502 = vst [vmem:[#allocation2 + $0xf0] sm:$0xff] %v468
    %503 = vst [vmem:[#allocation2 + $0xf8] sm:$0xff] %v470
    %v504 = vld [vmem:[#allocation2] sm:$0xff]
    %v505 = vld [vmem:[#allocation2 + $0x8] sm:$0xff]
    %v506 = vld [vmem:[#allocation2 + $0x10] sm:$0xff]
    %v507 = vld [vmem:[#allocation2 + $0x18] sm:$0xff]
    %v508 = vld [vmem:[#allocation9] sm:$0xff]
    %v509 = vld [vmem:[#allocation9 + $0x8] sm:$0xff]
    %v510 = vld [vmem:[#allocation9 + $0x10] sm:$0xff]
    %v511 = vld [vmem:[#allocation9 + $0x18] sm:$0xff]
    %v512 = vld [vmem:[#allocation9 + $0x20] sm:$0xff]
    %v513 = vld [vmem:[#allocation9 + $0x28] sm:$0xff]
    %v514 = vld [vmem:[#allocation9 + $0x30] sm:$0xff]
    %v515 = vld [vmem:[#allocation9 + $0x38] sm:$0xff]
    %v516 = vld [vmem:[#allocation9 + $0x40] sm:$0xff]
    %v517 = vld [vmem:[#allocation9 + $0x48] sm:$0xff]
    %v518 = vld [vmem:[#allocation9 + $0x50] sm:$0xff]
    %v519 = vld [vmem:[#allocation9 + $0x58] sm:$0xff]
    %v520 = vld [vmem:[#allocation9 + $0x60] sm:$0xff]
    %v521 = vld [vmem:[#allocation9 + $0x68] sm:$0xff]
    %v522 = vld [vmem:[#allocation9 + $0x70] sm:$0xff]
    %v523 = vld [vmem:[#allocation9 + $0x78] sm:$0xff]
    %v524 = vld [vmem:[#allocation9 + $0x80] sm:$0xff]
    %v525 = vld [vmem:[#allocation9 + $0x88] sm:$0xff]
    %v526 = vld [vmem:[#allocation9 + $0x90] sm:$0xff]
    %v527 = vld [vmem:[#allocation9 + $0x98] sm:$0xff]
    %v528 = vld [vmem:[#allocation9 + $0xa0] sm:$0xff]
    %v529 = vld [vmem:[#allocation9 + $0xa8] sm:$0xff]
    %v530 = vld [vmem:[#allocation9 + $0xb0] sm:$0xff]
    %v531 = vld [vmem:[#allocation9 + $0xb8] sm:$0xff]
    %v532 = vld [vmem:[#allocation9 + $0xc0] sm:$0xff]
    %v533 = vld [vmem:[#allocation9 + $0xc8] sm:$0xff]
    %v534 = vld [vmem:[#allocation9 + $0xd0] sm:$0xff]
    %v535 = vld [vmem:[#allocation9 + $0xd8] sm:$0xff]
    %v536 = vld [vmem:[#allocation9 + $0xe0] sm:$0xff]
    %v537 = vld [vmem:[#allocation9 + $0xe8] sm:$0xff]
    %v538 = vld [vmem:[#allocation9 + $0xf0] sm:$0xff]
    %v539 = vld [vmem:[#allocation9 + $0xf8] sm:$0xff]
    %v572 = vunpack.c.l.b16 %v508
    %v573 = vunpack.c.h.b16 %v508
    %v574 = vunpack.c.l.b16 %v509
    %v575 = vunpack.c.h.b16 %v509
    %v576 = vunpack.c.l.b16 %v510
    %v577 = vunpack.c.h.b16 %v510
    %v578 = vunpack.c.l.b16 %v511
    %v579 = vunpack.c.h.b16 %v511
    %v580 = vunpack.c.l.b16 %v512
    %v581 = vunpack.c.h.b16 %v512
    %v582 = vunpack.c.l.b16 %v513
    %v583 = vunpack.c.h.b16 %v513
    %v584 = vunpack.c.l.b16 %v514
    %v585 = vunpack.c.h.b16 %v514
    %v586 = vunpack.c.l.b16 %v515
    %v587 = vunpack.c.h.b16 %v515
    %v588 = vunpack.c.l.b16 %v516
    %v589 = vunpack.c.h.b16 %v516
    %v590 = vunpack.c.l.b16 %v517
    %v591 = vunpack.c.h.b16 %v517
    %v592 = vunpack.c.l.b16 %v518
    %v593 = vunpack.c.h.b16 %v518
    %v594 = vunpack.c.l.b16 %v519
    %v595 = vunpack.c.h.b16 %v519
    %v596 = vunpack.c.l.b16 %v520
    %v597 = vunpack.c.h.b16 %v520
    %v598 = vunpack.c.l.b16 %v521
    %v599 = vunpack.c.h.b16 %v521
    %v600 = vunpack.c.l.b16 %v522
    %v601 = vunpack.c.h.b16 %v522
    %v602 = vunpack.c.l.b16 %v523
    %v603 = vunpack.c.h.b16 %v523
    %v604 = vunpack.c.l.b16 %v524
    %v605 = vunpack.c.h.b16 %v524
    %v606 = vunpack.c.l.b16 %v525
    %v607 = vunpack.c.h.b16 %v525
    %v608 = vunpack.c.l.b16 %v526
    %v609 = vunpack.c.h.b16 %v526
    %v610 = vunpack.c.l.b16 %v527
    %v611 = vunpack.c.h.b16 %v527
    %v612 = vunpack.c.l.b16 %v528
    %v613 = vunpack.c.h.b16 %v528
    %v614 = vunpack.c.l.b16 %v529
    %v615 = vunpack.c.h.b16 %v529
    %v616 = vunpack.c.l.b16 %v530
    %v617 = vunpack.c.h.b16 %v530
    %v618 = vunpack.c.l.b16 %v531
    %v619 = vunpack.c.h.b16 %v531
    %v620 = vunpack.c.l.b16 %v532
    %v621 = vunpack.c.h.b16 %v532
    %v622 = vunpack.c.l.b16 %v533
    %v623 = vunpack.c.h.b16 %v533
    %v624 = vunpack.c.l.b16 %v534
    %v625 = vunpack.c.h.b16 %v534
    %v626 = vunpack.c.l.b16 %v535
    %v627 = vunpack.c.h.b16 %v535
    %v628 = vunpack.c.l.b16 %v536
    %v629 = vunpack.c.h.b16 %v536
    %v630 = vunpack.c.l.b16 %v537
    %v631 = vunpack.c.h.b16 %v537
    %v632 = vunpack.c.l.b16 %v538
    %v633 = vunpack.c.h.b16 %v538
    %v634 = vunpack.c.l.b16 %v539
    %v635 = vunpack.c.h.b16 %v539
    %v636 = vpack.c.b16 %v576, %v572
    %v637 = vpack.c.b16 %v577, %v573
    %v638 = vpack.c.b16 %v578, %v574
    %v639 = vpack.c.b16 %v579, %v575
    %v640 = vpack.c.b16 %v584, %v580
    %v641 = vpack.c.b16 %v585, %v581
    %v642 = vpack.c.b16 %v586, %v582
    %v643 = vpack.c.b16 %v587, %v583
    %v644 = vpack.c.b16 %v592, %v588
    %v645 = vpack.c.b16 %v593, %v589
    %v646 = vpack.c.b16 %v594, %v590
    %v647 = vpack.c.b16 %v595, %v591
    %v648 = vpack.c.b16 %v600, %v596
    %v649 = vpack.c.b16 %v601, %v597
    %v650 = vpack.c.b16 %v602, %v598
    %v651 = vpack.c.b16 %v603, %v599
    %v652 = vpack.c.b16 %v608, %v604
    %v653 = vpack.c.b16 %v609, %v605
    %v654 = vpack.c.b16 %v610, %v606
    %v655 = vpack.c.b16 %v611, %v607
    %v656 = vpack.c.b16 %v616, %v612
    %v657 = vpack.c.b16 %v617, %v613
    %v658 = vpack.c.b16 %v618, %v614
    %v659 = vpack.c.b16 %v619, %v615
    %v660 = vpack.c.b16 %v624, %v620
    %v661 = vpack.c.b16 %v625, %v621
    %v662 = vpack.c.b16 %v626, %v622
    %v663 = vpack.c.b16 %v627, %v623
    %v664 = vpack.c.b16 %v632, %v628
    %v665 = vpack.c.b16 %v633, %v629
    %v666 = vpack.c.b16 %v634, %v630
    %v667 = vpack.c.b16 %v635, %v631
    %700 = vmatprep.subr.bf16.mxu0 %v637
    %701 = vmatpush1.bf16.msra.mxu0 %v636
    %702 = vmatprep.subr.bf16.mxu0 %v641
    %703 = vmatpush1.bf16.msra.mxu0 %v640
    %704 = vmatprep.subr.bf16.mxu0 %v645
    %705 = vmatpush1.bf16.msra.mxu0 %v644
    %706 = vmatprep.subr.bf16.mxu0 %v649
    %707 = vmatpush1.bf16.msra.mxu0 %v648
    %708 = vmatprep.subr.bf16.mxu0 %v653
    %709 = vmatpush1.bf16.msra.mxu0 %v652
    %710 = vmatprep.subr.bf16.mxu0 %v657
    %711 = vmatpush1.bf16.msra.mxu0 %v656
    %712 = vmatprep.subr.bf16.mxu0 %v661
    %713 = vmatpush1.bf16.msra.mxu0 %v660
    %714 = vmatprep.subr.bf16.mxu0 %v665
    %715 = vmatpush1.bf16.msra.mxu0 %v664
    %716 = vmatprep.subr.bf16.mxu0 0
    %717 = vmatpush1.bf16.msra.mxu0 0
    %718 = vmatprep.subr.bf16.mxu0 0
    %719 = vmatpush1.bf16.msra.mxu0 0
    %720 = vmatprep.subr.bf16.mxu0 0
    %721 = vmatpush1.bf16.msra.mxu0 0
    %722 = vmatprep.subr.bf16.mxu0 0
    %723 = vmatpush1.bf16.msra.mxu0 0
    %724 = vmatprep.subr.bf16.mxu0 0
    %725 = vmatpush1.bf16.msra.mxu0 0
    %726 = vmatprep.subr.bf16.mxu0 0
    %727 = vmatpush1.bf16.msra.mxu0 0
    %728 = vmatprep.subr.bf16.mxu0 0
    %729 = vmatpush1.bf16.msra.mxu0 0
    %730 = vmatprep.subr.bf16.mxu0 0
    %731 = vmatpush1.bf16.msra.mxu0 0
    %732 = vmatprep.mubr.bf16.mxu0 0
    %733 = vmatmul.mubr.bf16.gmra.mrb[0].mxu0 0
    %v734 = vpop.f32.mrb[0].mxu0
    %v735 = vadd.f32 0.0, %v734
    %v736 = vpop.f32.mrb[0].mxu0
    %v737 = vadd.f32 0.0, %v736
    %v738 = vpop.f32.mrb[0].mxu0
    %v739 = vpop.f32.mrb[0].mxu0
    %740 = vdwg.mxu0
    %741 = vmatprep.subr.bf16.mxu0 %v639
    %742 = vmatpush1.bf16.msra.mxu0 %v638
    %743 = vmatprep.subr.bf16.mxu0 %v643
    %744 = vmatpush1.bf16.msra.mxu0 %v642
    %745 = vmatprep.subr.bf16.mxu0 %v647
    %746 = vmatpush1.bf16.msra.mxu0 %v646
    %747 = vmatprep.subr.bf16.mxu0 %v651
    %748 = vmatpush1.bf16.msra.mxu0 %v650
    %749 = vmatprep.subr.bf16.mxu0 %v655
    %750 = vmatpush1.bf16.msra.mxu0 %v654
    %751 = vmatprep.subr.bf16.mxu0 %v659
    %752 = vmatpush1.bf16.msra.mxu0 %v658
    %753 = vmatprep.subr.bf16.mxu0 %v663
    %754 = vmatpush1.bf16.msra.mxu0 %v662
    %755 = vmatprep.subr.bf16.mxu0 %v667
    %756 = vmatpush1.bf16.msra.mxu0 %v666
    %757 = vmatprep.subr.bf16.mxu0 0
    %758 = vmatpush1.bf16.msra.mxu0 0
    %759 = vmatprep.subr.bf16.mxu0 0
    %760 = vmatpush1.bf16.msra.mxu0 0
    %761 = vmatprep.subr.bf16.mxu0 0
    %762 = vmatpush1.bf16.msra.mxu0 0
    %763 = vmatprep.subr.bf16.mxu0 0
    %764 = vmatpush1.bf16.msra.mxu0 0
    %765 = vmatprep.subr.bf16.mxu0 0
    %766 = vmatpush1.bf16.msra.mxu0 0
    %767 = vmatprep.subr.bf16.mxu0 0
    %768 = vmatpush1.bf16.msra.mxu0 0
    %769 = vmatprep.subr.bf16.mxu0 0
    %770 = vmatpush1.bf16.msra.mxu0 0
    %771 = vmatprep.subr.bf16.mxu0 0
    %772 = vmatpush1.bf16.msra.mxu0 0
    %773 = vmatprep.mubr.bf16.mxu0 0
    %774 = vmatmul.mubr.bf16.gmra.mrb[0].mxu0 0
    %v775 = vpop.f32.mrb[0].mxu0
    %v776 = vadd.f32 0.0, %v775
    %v777 = vpop.f32.mrb[0].mxu0
    %v778 = vadd.f32 0.0, %v777
    %v779 = vpop.f32.mrb[0].mxu0
    %v780 = vpop.f32.mrb[0].mxu0
    %781 = vdwg.mxu0
    %v782 = vadd.f32 %v504, %v735
    %v783 = vadd.f32 %v505, %v737
    %v784 = vadd.f32 %v506, %v776
    %v785 = vadd.f32 %v507, %v778
    %v786 = vxor.u32 %v782, 2147483648
    %v787 = vxor.u32 %v783, 2147483648
    %v788 = vxor.u32 %v784, 2147483648
    %v789 = vmul.f32 %v786, 1.442695
    %v790 = vpow.pop %v789
    %v791 = vmul.f32 %v787, 1.442695
    %v792 = vpow.pop %v791
    %v793 = vmul.f32 %v788, 1.442695
    %v794 = vpow.pop %v793
    %v795 = vadd.f32 %v790, 1.0
    %v796 = vadd.f32 %v792, 1.0
    %v797 = vadd.f32 %v794, 1.0
    %v798 = vrcp.pop %v795
    %v799 = vmul.f32 1.0, %v798
    %v800 = vrcp.pop %v796
    %v801 = vmul.f32 1.0, %v800
    %v802 = vrcp.pop %v797
    %v803 = vmul.f32 1.0, %v802
    %v804 = vtanh.pop %v785
    %v805 = vmul.f32 %v801, 0.0
    %v806 = vmul.f32 %v799, %v804
    %v807 = vadd.f32 %v805, %v806
    %v808 = vtanh.pop %v807
    %v809 = vmul.f32 %v803, %v808
    %810 = vst [vmem:[#allocation3] sm:$0xff] %v809
    %s811 = scalar_lea.vmem [#allocation2], 32
    %v812 = vld [vmem:[%s811] sm:$0xff]
    %v813 = vld [vmem:[%s811 + $0x8] sm:$0xff]
    %v814 = vld [vmem:[%s811 + $0x10] sm:$0xff]
    %v815 = vld [vmem:[%s811 + $0x18] sm:$0xff]
    %v816 = vpack.c.bf16 %v809, %v809
    %v817 = vld [vmem:[#allocation9] sm:$0xff]
    %v818 = vld [vmem:[#allocation9 + $0x8] sm:$0xff]
    %v819 = vld [vmem:[#allocation9 + $0x10] sm:$0xff]
    %v820 = vld [vmem:[#allocation9 + $0x18] sm:$0xff]
    %v821 = vld [vmem:[#allocation9 + $0x20] sm:$0xff]
    %v822 = vld [vmem:[#allocation9 + $0x28] sm:$0xff]
    %v823 = vld [vmem:[#allocation9 + $0x30] sm:$0xff]
    %v824 = vld [vmem:[#allocation9 + $0x38] sm:$0xff]
    %v825 = vld [vmem:[#allocation9 + $0x40] sm:$0xff]
    %v826 = vld [vmem:[#allocation9 + $0x48] sm:$0xff]
    %v827 = vld [vmem:[#allocation9 + $0x50] sm:$0xff]
    %v828 = vld [vmem:[#allocation9 + $0x58] sm:$0xff]
    %v829 = vld [vmem:[#allocation9 + $0x60] sm:$0xff]
    %v830 = vld [vmem:[#allocation9 + $0x68] sm:$0xff]
    %v831 = vld [vmem:[#allocation9 + $0x70] sm:$0xff]
    %v832 = vld [vmem:[#allocation9 + $0x78] sm:$0xff]
    %v833 = vld [vmem:[#allocation9 + $0x80] sm:$0xff]
    %v834 = vld [vmem:[#allocation9 + $0x88] sm:$0xff]
    %v835 = vld [vmem:[#allocation9 + $0x90] sm:$0xff]
    %v836 = vld [vmem:[#allocation9 + $0x98] sm:$0xff]
    %v837 = vld [vmem:[#allocation9 + $0xa0] sm:$0xff]
    %v838 = vld [vmem:[#allocation9 + $0xa8] sm:$0xff]
    %v839 = vld [vmem:[#allocation9 + $0xb0] sm:$0xff]
    %v840 = vld [vmem:[#allocation9 + $0xb8] sm:$0xff]
    %v841 = vld [vmem:[#allocation9 + $0xc0] sm:$0xff]
    %v842 = vld [vmem:[#allocation9 + $0xc8] sm:$0xff]
    %v843 = vld [vmem:[#allocation9 + $0xd0] sm:$0xff]
    %v844 = vld [vmem:[#allocation9 + $0xd8] sm:$0xff]
    %v845 = vld [vmem:[#allocation9 + $0xe0] sm:$0xff]
    %v846 = vld [vmem:[#allocation9 + $0xe8] sm:$0xff]
    %v847 = vld [vmem:[#allocation9 + $0xf0] sm:$0xff]
    %v848 = vld [vmem:[#allocation9 + $0xf8] sm:$0xff]
    %v881 = vunpack.c.l.b16 %v817
    %v882 = vunpack.c.h.b16 %v817
    %v883 = vunpack.c.l.b16 %v818
    %v884 = vunpack.c.h.b16 %v818
    %v885 = vunpack.c.l.b16 %v819
    %v886 = vunpack.c.h.b16 %v819
    %v887 = vunpack.c.l.b16 %v820
    %v888 = vunpack.c.h.b16 %v820
    %v889 = vunpack.c.l.b16 %v821
    %v890 = vunpack.c.h.b16 %v821
    %v891 = vunpack.c.l.b16 %v822
    %v892 = vunpack.c.h.b16 %v822
    %v893 = vunpack.c.l.b16 %v823
    %v894 = vunpack.c.h.b16 %v823
    %v895 = vunpack.c.l.b16 %v824
    %v896 = vunpack.c.h.b16 %v824
    %v897 = vunpack.c.l.b16 %v825
    %v898 = vunpack.c.h.b16 %v825
    %v899 = vunpack.c.l.b16 %v826
    %v900 = vunpack.c.h.b16 %v826
    %v901 = vunpack.c.l.b16 %v827
    %v902 = vunpack.c.h.b16 %v827
    %v903 = vunpack.c.l.b16 %v828
    %v904 = vunpack.c.h.b16 %v828
    %v905 = vunpack.c.l.b16 %v829
    %v906 = vunpack.c.h.b16 %v829
    %v907 = vunpack.c.l.b16 %v830
    %v908 = vunpack.c.h.b16 %v830
    %v909 = vunpack.c.l.b16 %v831
    %v910 = vunpack.c.h.b16 %v831
    %v911 = vunpack.c.l.b16 %v832
    %v912 = vunpack.c.h.b16 %v832
    %v913 = vunpack.c.l.b16 %v833
    %v914 = vunpack.c.h.b16 %v833
    %v915 = vunpack.c.l.b16 %v834
    %v916 = vunpack.c.h.b16 %v834
    %v917 = vunpack.c.l.b16 %v835
    %v918 = vunpack.c.h.b16 %v835
    %v919 = vunpack.c.l.b16 %v836
    %v920 = vunpack.c.h.b16 %v836
    %v921 = vunpack.c.l.b16 %v837
    %v922 = vunpack.c.h.b16 %v837
    %v923 = vunpack.c.l.b16 %v838
    %v924 = vunpack.c.h.b16 %v838
    %v925 = vunpack.c.l.b16 %v839
    %v926 = vunpack.c.h.b16 %v839
    %v927 = vunpack.c.l.b16 %v840
    %v928 = vunpack.c.h.b16 %v840
    %v929 = vunpack.c.l.b16 %v841
    %v930 = vunpack.c.h.b16 %v841
    %v931 = vunpack.c.l.b16 %v842
    %v932 = vunpack.c.h.b16 %v842
    %v933 = vunpack.c.l.b16 %v843
    %v934 = vunpack.c.h.b16 %v843
    %v935 = vunpack.c.l.b16 %v844
    %v936 = vunpack.c.h.b16 %v844
    %v937 = vunpack.c.l.b16 %v845
    %v938 = vunpack.c.h.b16 %v845
    %v939 = vunpack.c.l.b16 %v846
    %v940 = vunpack.c.h.b16 %v846
    %v941 = vunpack.c.l.b16 %v847
    %v942 = vunpack.c.h.b16 %v847
    %v943 = vunpack.c.l.b16 %v848
    %v944 = vunpack.c.h.b16 %v848
    %v945 = vpack.c.b16 %v885, %v881
    %v946 = vpack.c.b16 %v886, %v882
    %v947 = vpack.c.b16 %v887, %v883
    %v948 = vpack.c.b16 %v888, %v884
    %v949 = vpack.c.b16 %v893, %v889
    %v950 = vpack.c.b16 %v894, %v890
    %v951 = vpack.c.b16 %v895, %v891
    %v952 = vpack.c.b16 %v896, %v892
    %v953 = vpack.c.b16 %v901, %v897
    %v954 = vpack.c.b16 %v902, %v898
    %v955 = vpack.c.b16 %v903, %v899
    %v956 = vpack.c.b16 %v904, %v900
    %v957 = vpack.c.b16 %v909, %v905
    %v958 = vpack.c.b16 %v910, %v906
    %v959 = vpack.c.b16 %v911, %v907
    %v960 = vpack.c.b16 %v912, %v908
    %v961 = vpack.c.b16 %v917, %v913
    %v962 = vpack.c.b16 %v918, %v914
    %v963 = vpack.c.b16 %v919, %v915
    %v964 = vpack.c.b16 %v920, %v916
    %v965 = vpack.c.b16 %v925, %v921
    %v966 = vpack.c.b16 %v926, %v922
    %v967 = vpack.c.b16 %v927, %v923
    %v968 = vpack.c.b16 %v928, %v924
    %v969 = vpack.c.b16 %v933, %v929
    %v970 = vpack.c.b16 %v934, %v930
    %v971 = vpack.c.b16 %v935, %v931
    %v972 = vpack.c.b16 %v936, %v932
    %v973 = vpack.c.b16 %v941, %v937
    %v974 = vpack.c.b16 %v942, %v938
    %v975 = vpack.c.b16 %v943, %v939
    %v976 = vpack.c.b16 %v944, %v940
    %1009 = vmatprep.subr.bf16.mxu0 %v946
    %1010 = vmatpush1.bf16.msra.mxu0 %v945
    %1011 = vmatprep.subr.bf16.mxu0 %v950
    %1012 = vmatpush1.bf16.msra.mxu0 %v949
    %1013 = vmatprep.subr.bf16.mxu0 %v954
    %1014 = vmatpush1.bf16.msra.mxu0 %v953
    %1015 = vmatprep.subr.bf16.mxu0 %v958
    %1016 = vmatpush1.bf16.msra.mxu0 %v957
    %1017 = vmatprep.subr.bf16.mxu0 %v962
    %1018 = vmatpush1.bf16.msra.mxu0 %v961
    %1019 = vmatprep.subr.bf16.mxu0 %v966
    %1020 = vmatpush1.bf16.msra.mxu0 %v965
    %1021 = vmatprep.subr.bf16.mxu0 %v970
    %1022 = vmatpush1.bf16.msra.mxu0 %v969
    %1023 = vmatprep.subr.bf16.mxu0 %v974
    %1024 = vmatpush1.bf16.msra.mxu0 %v973
    %1025 = vmatprep.subr.bf16.mxu0 0
    %1026 = vmatpush1.bf16.msra.mxu0 0
    %1027 = vmatprep.subr.bf16.mxu0 0
    %1028 = vmatpush1.bf16.msra.mxu0 0
    %1029 = vmatprep.subr.bf16.mxu0 0
    %1030 = vmatpush1.bf16.msra.mxu0 0
    %1031 = vmatprep.subr.bf16.mxu0 0
    %1032 = vmatpush1.bf16.msra.mxu0 0
    %1033 = vmatprep.subr.bf16.mxu0 0
    %1034 = vmatpush1.bf16.msra.mxu0 0
    %1035 = vmatprep.subr.bf16.mxu0 0
    %1036 = vmatpush1.bf16.msra.mxu0 0
    %1037 = vmatprep.subr.bf16.mxu0 0
    %1038 = vmatpush1.bf16.msra.mxu0 0
    %1039 = vmatprep.subr.bf16.mxu0 0
    %1040 = vmatpush1.bf16.msra.mxu0 0
    %1041 = vmatprep.mubr.bf16.mxu0 0
    %1042 = vmatmul.mubr.bf16.gmra.mrb[0].mxu0 %v816
    %v1043 = vpop.f32.mrb[0].mxu0
    %v1044 = vadd.f32 0.0, %v1043
    %v1045 = vpop.f32.mrb[0].mxu0
    %v1046 = vadd.f32 0.0, %v1045
    %v1047 = vpop.f32.mrb[0].mxu0
    %v1048 = vpop.f32.mrb[0].mxu0
    %1049 = vdwg.mxu0
    %1050 = vmatprep.subr.bf16.mxu0 %v948
    %1051 = vmatpush1.bf16.msra.mxu0 %v947
    %1052 = vmatprep.subr.bf16.mxu0 %v952
    %1053 = vmatpush1.bf16.msra.mxu0 %v951
    %1054 = vmatprep.subr.bf16.mxu0 %v956
    %1055 = vmatpush1.bf16.msra.mxu0 %v955
    %1056 = vmatprep.subr.bf16.mxu0 %v960
    %1057 = vmatpush1.bf16.msra.mxu0 %v959
    %1058 = vmatprep.subr.bf16.mxu0 %v964
    %1059 = vmatpush1.bf16.msra.mxu0 %v963
    %1060 = vmatprep.subr.bf16.mxu0 %v968
    %1061 = vmatpush1.bf16.msra.mxu0 %v967
    %1062 = vmatprep.subr.bf16.mxu0 %v972
    %1063 = vmatpush1.bf16.msra.mxu0 %v971
    %1064 = vmatprep.subr.bf16.mxu0 %v976
    %1065 = vmatpush1.bf16.msra.mxu0 %v975
    %1066 = vmatprep.subr.bf16.mxu0 0
    %1067 = vmatpush1.bf16.msra.mxu0 0
    %1068 = vmatprep.subr.bf16.mxu0 0
    %1069 = vmatpush1.bf16.msra.mxu0 0
    %1070 = vmatprep.subr.bf16.mxu0 0
    %1071 = vmatpush1.bf16.msra.mxu0 0
    %1072 = vmatprep.subr.bf16.mxu0 0
    %1073 = vmatpush1.bf16.msra.mxu0 0
    %1074 = vmatprep.subr.bf16.mxu0 0
    %1075 = vmatpush1.bf16.msra.mxu0 0
    %1076 = vmatprep.subr.bf16.mxu0 0
    %1077 = vmatpush1.bf16.msra.mxu0 0
    %1078 = vmatprep.subr.bf16.mxu0 0
    %1079 = vmatpush1.bf16.msra.mxu0 0
    %1080 = vmatprep.subr.bf16.mxu0 0
    %1081 = vmatpush1.bf16.msra.mxu0 0
    %1082 = vmatprep.mubr.bf16.mxu0 0
    %1083 = vmatmul.mubr.bf16.gmra.mrb[0].mxu0 %v816
    %v1084 = vpop.f32.mrb[0].mxu0
    %v1085 = vadd.f32 0.0, %v1084
    %v1086 = vpop.f32.mrb[0].mxu0
    %v1087 = vadd.f32 0.0, %v1086
    %v1088 = vpop.f32.mrb[0].mxu0
    %v1089 = vpop.f32.mrb[0].mxu0
    %1090 = vdwg.mxu0
    %v1091 = vadd.f32 %v812, %v1044
    %v1092 = vadd.f32 %v813, %v1046
    %v1093 = vadd.f32 %v814, %v1085
    %v1094 = vadd.f32 %v815, %v1087
    %v1095 = vxor.u32 %v1091, 2147483648
    %v1096 = vxor.u32 %v1092, 2147483648
    %v1097 = vxor.u32 %v1093, 2147483648
    %v1098 = vmul.f32 %v1095, 1.442695
    %v1099 = vpow.pop %v1098
    %v1100 = vmul.f32 %v1096, 1.442695
    %v1101 = vpow.pop %v1100
    %v1102 = vmul.f32 %v1097, 1.442695
    %v1103 = vpow.pop %v1102
    %v1104 = vadd.f32 %v1099, 1.0
    %v1105 = vadd.f32 %v1101, 1.0
    %v1106 = vadd.f32 %v1103, 1.0
    %v1107 = vrcp.pop %v1104
    %v1108 = vmul.f32 1.0, %v1107
    %v1109 = vrcp.pop %v1105
    %v1110 = vmul.f32 1.0, %v1109
    %v1111 = vrcp.pop %v1106
    %v1112 = vmul.f32 1.0, %v1111
    %v1113 = vtanh.pop %v1094
    %v1114 = vmul.f32 %v1110, %v807
    %v1115 = vmul.f32 %v1108, %v1113
    %v1116 = vadd.f32 %v1114, %v1115
    %v1117 = vtanh.pop %v1116
    %v1118 = vmul.f32 %v1112, %v1117
    %s1119 = scalar_lea.vmem [#allocation3], 8
    %1120 = vst [vmem:[%s1119] sm:$0xff] %v1118
    %s1121 = scalar_lea.vmem [#allocation2], 64
    %v1122 = vld [vmem:[%s1121] sm:$0xff]
    %v1123 = vld [vmem:[%s1121 + $0x8] sm:$0xff]
    %v1124 = vld [vmem:[%s1121 + $0x10] sm:$0xff]
    %v1125 = vld [vmem:[%s1121 + $0x18] sm:$0xff]
    %v1126 = vpack.c.bf16 %v1118, %v1118
    %v1127 = vld [vmem:[#allocation9] sm:$0xff]
    %v1128 = vld [vmem:[#allocation9 + $0x8] sm:$0xff]
    %v1129 = vld [vmem:[#allocation9 + $0x10] sm:$0xff]
    %v1130 = vld [vmem:[#allocation9 + $0x18] sm:$0xff]
    %v1131 = vld [vmem:[#allocation9 + $0x20] sm:$0xff]
    %v1132 = vld [vmem:[#allocation9 + $0x28] sm:$0xff]
    %v1133 = vld [vmem:[#allocation9 + $0x30] sm:$0xff]
    %v1134 = vld [vmem:[#allocation9 + $0x38] sm:$0xff]
    %v1135 = vld [vmem:[#allocation9 + $0x40] sm:$0xff]
    %v1136 = vld [vmem:[#allocation9 + $0x48] sm:$0xff]
    %v1137 = vld [vmem:[#allocation9 + $0x50] sm:$0xff]
    %v1138 = vld [vmem:[#allocation9 + $0x58] sm:$0xff]
    %v1139 = vld [vmem:[#allocation9 + $0x60] sm:$0xff]
    %v1140 = vld [vmem:[#allocation9 + $0x68] sm:$0xff]
    %v1141 = vld [vmem:[#allocation9 + $0x70] sm:$0xff]
    %v1142 = vld [vmem:[#allocation9 + $0x78] sm:$0xff]
    %v1143 = vld [vmem:[#allocation9 + $0x80] sm:$0xff]
    %v1144 = vld [vmem:[#allocation9 + $0x88] sm:$0xff]
    %v1145 = vld [vmem:[#allocation9 + $0x90] sm:$0xff]
    %v1146 = vld [vmem:[#allocation9 + $0x98] sm:$0xff]
    %v1147 = vld [vmem:[#allocation9 + $0xa0] sm:$0xff]
    %v1148 = vld [vmem:[#allocation9 + $0xa8] sm:$0xff]
    %v1149 = vld [vmem:[#allocation9 + $0xb0] sm:$0xff]
    %v1150 = vld [vmem:[#allocation9 + $0xb8] sm:$0xff]
    %v1151 = vld [vmem:[#allocation9 + $0xc0] sm:$0xff]
    %v1152 = vld [vmem:[#allocation9 + $0xc8] sm:$0xff]
    %v1153 = vld [vmem:[#allocation9 + $0xd0] sm:$0xff]
    %v1154 = vld [vmem:[#allocation9 + $0xd8] sm:$0xff]
    %v1155 = vld [vmem:[#allocation9 + $0xe0] sm:$0xff]
    %v1156 = vld [vmem:[#allocation9 + $0xe8] sm:$0xff]
    %v1157 = vld [vmem:[#allocation9 + $0xf0] sm:$0xff]
    %v1158 = vld [vmem:[#allocation9 + $0xf8] sm:$0xff]
    %v1191 = vunpack.c.l.b16 %v1127
    %v1192 = vunpack.c.h.b16 %v1127
    %v1193 = vunpack.c.l.b16 %v1128
    %v1194 = vunpack.c.h.b16 %v1128
    %v1195 = vunpack.c.l.b16 %v1129
    %v1196 = vunpack.c.h.b16 %v1129
    %v1197 = vunpack.c.l.b16 %v1130
    %v1198 = vunpack.c.h.b16 %v1130
    %v1199 = vunpack.c.l.b16 %v1131
    %v1200 = vunpack.c.h.b16 %v1131
    %v1201 = vunpack.c.l.b16 %v1132
    %v1202 = vunpack.c.h.b16 %v1132
    %v1203 = vunpack.c.l.b16 %v1133
    %v1204 = vunpack.c.h.b16 %v1133
    %v1205 = vunpack.c.l.b16 %v1134
    %v1206 = vunpack.c.h.b16 %v1134
    %v1207 = vunpack.c.l.b16 %v1135
    %v1208 = vunpack.c.h.b16 %v1135
    %v1209 = vunpack.c.l.b16 %v1136
    %v1210 = vunpack.c.h.b16 %v1136
    %v1211 = vunpack.c.l.b16 %v1137
    %v1212 = vunpack.c.h.b16 %v1137
    %v1213 = vunpack.c.l.b16 %v1138
    %v1214 = vunpack.c.h.b16 %v1138
    %v1215 = vunpack.c.l.b16 %v1139
    %v1216 = vunpack.c.h.b16 %v1139
    %v1217 = vunpack.c.l.b16 %v1140
    %v1218 = vunpack.c.h.b16 %v1140
    %v1219 = vunpack.c.l.b16 %v1141
    %v1220 = vunpack.c.h.b16 %v1141
    %v1221 = vunpack.c.l.b16 %v1142
    %v1222 = vunpack.c.h.b16 %v1142
    %v1223 = vunpack.c.l.b16 %v1143
    %v1224 = vunpack.c.h.b16 %v1143
    %v1225 = vunpack.c.l.b16 %v1144
    %v1226 = vunpack.c.h.b16 %v1144
    %v1227 = vunpack.c.l.b16 %v1145
    %v1228 = vunpack.c.h.b16 %v1145
    %v1229 = vunpack.c.l.b16 %v1146
    %v1230 = vunpack.c.h.b16 %v1146
    %v1231 = vunpack.c.l.b16 %v1147
    %v1232 = vunpack.c.h.b16 %v1147
    %v1233 = vunpack.c.l.b16 %v1148
    %v1234 = vunpack.c.h.b16 %v1148
    %v1235 = vunpack.c.l.b16 %v1149
    %v1236 = vunpack.c.h.b16 %v1149
    %v1237 = vunpack.c.l.b16 %v1150
    %v1238 = vunpack.c.h.b16 %v1150
    %v1239 = vunpack.c.l.b16 %v1151
    %v1240 = vunpack.c.h.b16 %v1151
    %v1241 = vunpack.c.l.b16 %v1152
    %v1242 = vunpack.c.h.b16 %v1152
    %v1243 = vunpack.c.l.b16 %v1153
    %v1244 = vunpack.c.h.b16 %v1153
    %v1245 = vunpack.c.l.b16 %v1154
    %v1246 = vunpack.c.h.b16 %v1154
    %v1247 = vunpack.c.l.b16 %v1155
    %v1248 = vunpack.c.h.b16 %v1155
    %v1249 = vunpack.c.l.b16 %v1156
    %v1250 = vunpack.c.h.b16 %v1156
    %v1251 = vunpack.c.l.b16 %v1157
    %v1252 = vunpack.c.h.b16 %v1157
    %v1253 = vunpack.c.l.b16 %v1158
    %v1254 = vunpack.c.h.b16 %v1158
    %v1255 = vpack.c.b16 %v1195, %v1191
    %v1256 = vpack.c.b16 %v1196, %v1192
    %v1257 = vpack.c.b16 %v1197, %v1193
    %v1258 = vpack.c.b16 %v1198, %v1194
    %v1259 = vpack.c.b16 %v1203, %v1199
    %v1260 = vpack.c.b16 %v1204, %v1200
    %v1261 = vpack.c.b16 %v1205, %v1201
    %v1262 = vpack.c.b16 %v1206, %v1202
    %v1263 = vpack.c.b16 %v1211, %v1207
    %v1264 = vpack.c.b16 %v1212, %v1208
    %v1265 = vpack.c.b16 %v1213, %v1209
    %v1266 = vpack.c.b16 %v1214, %v1210
    %v1267 = vpack.c.b16 %v1219, %v1215
    %v1268 = vpack.c.b16 %v1220, %v1216
    %v1269 = vpack.c.b16 %v1221, %v1217
    %v1270 = vpack.c.b16 %v1222, %v1218
    %v1271 = vpack.c.b16 %v1227, %v1223
    %v1272 = vpack.c.b16 %v1228, %v1224
    %v1273 = vpack.c.b16 %v1229, %v1225
    %v1274 = vpack.c.b16 %v1230, %v1226
    %v1275 = vpack.c.b16 %v1235, %v1231
    %v1276 = vpack.c.b16 %v1236, %v1232
    %v1277 = vpack.c.b16 %v1237, %v1233
    %v1278 = vpack.c.b16 %v1238, %v1234
    %v1279 = vpack.c.b16 %v1243, %v1239
    %v1280 = vpack.c.b16 %v1244, %v1240
    %v1281 = vpack.c.b16 %v1245, %v1241
    %v1282 = vpack.c.b16 %v1246, %v1242
    %v1283 = vpack.c.b16 %v1251, %v1247
    %v1284 = vpack.c.b16 %v1252, %v1248
    %v1285 = vpack.c.b16 %v1253, %v1249
    %v1286 = vpack.c.b16 %v1254, %v1250
    %1319 = vmatprep.subr.bf16.mxu0 %v1256
    %1320 = vmatpush1.bf16.msra.mxu0 %v1255
    %1321 = vmatprep.subr.bf16.mxu0 %v1260
    %1322 = vmatpush1.bf16.msra.mxu0 %v1259
    %1323 = vmatprep.subr.bf16.mxu0 %v1264
    %1324 = vmatpush1.bf16.msra.mxu0 %v1263
    %1325 = vmatprep.subr.bf16.mxu0 %v1268
    %1326 = vmatpush1.bf16.msra.mxu0 %v1267
    %1327 = vmatprep.subr.bf16.mxu0 %v1272
    %1328 = vmatpush1.bf16.msra.mxu0 %v1271
    %1329 = vmatprep.subr.bf16.mxu0 %v1276
    %1330 = vmatpush1.bf16.msra.mxu0 %v1275
    %1331 = vmatprep.subr.bf16.mxu0 %v1280
    %1332 = vmatpush1.bf16.msra.mxu0 %v1279
    %1333 = vmatprep.subr.bf16.mxu0 %v1284
    %1334 = vmatpush1.bf16.msra.mxu0 %v1283
    %1335 = vmatprep.subr.bf16.mxu0 0
    %1336 = vmatpush1.bf16.msra.mxu0 0
    %1337 = vmatprep.subr.bf16.mxu0 0
    %1338 = vmatpush1.bf16.msra.mxu0 0
    %1339 = vmatprep.subr.bf16.mxu0 0
    %1340 = vmatpush1.bf16.msra.mxu0 0
    %1341 = vmatprep.subr.bf16.mxu0 0
    %1342 = vmatpush1.bf16.msra.mxu0 0
    %1343 = vmatprep.subr.bf16.mxu0 0
    %1344 = vmatpush1.bf16.msra.mxu0 0
    %1345 = vmatprep.subr.bf16.mxu0 0
    %1346 = vmatpush1.bf16.msra.mxu0 0
    %1347 = vmatprep.subr.bf16.mxu0 0
    %1348 = vmatpush1.bf16.msra.mxu0 0
    %1349 = vmatprep.subr.bf16.mxu0 0
    %1350 = vmatpush1.bf16.msra.mxu0 0
    %1351 = vmatprep.mubr.bf16.mxu0 0
    %1352 = vmatmul.mubr.bf16.gmra.mrb[0].mxu0 %v1126
    %v1353 = vpop.f32.mrb[0].mxu0
    %v1354 = vadd.f32 0.0, %v1353
    %v1355 = vpop.f32.mrb[0].mxu0
    %v1356 = vadd.f32 0.0, %v1355
    %v1357 = vpop.f32.mrb[0].mxu0
    %v1358 = vpop.f32.mrb[0].mxu0
    %1359 = vdwg.mxu0
    %1360 = vmatprep.subr.bf16.mxu0 %v1258
    %1361 = vmatpush1.bf16.msra.mxu0 %v1257
    %1362 = vmatprep.subr.bf16.mxu0 %v1262
    %1363 = vmatpush1.bf16.msra.mxu0 %v1261
    %1364 = vmatprep.subr.bf16.mxu0 %v1266
    %1365 = vmatpush1.bf16.msra.mxu0 %v1265
    %1366 = vmatprep.subr.bf16.mxu0 %v1270
    %1367 = vmatpush1.bf16.msra.mxu0 %v1269
    %1368 = vmatprep.subr.bf16.mxu0 %v1274
    %1369 = vmatpush1.bf16.msra.mxu0 %v1273
    %1370 = vmatprep.subr.bf16.mxu0 %v1278
    %1371 = vmatpush1.bf16.msra.mxu0 %v1277
    %1372 = vmatprep.subr.bf16.mxu0 %v1282
    %1373 = vmatpush1.bf16.msra.mxu0 %v1281
    %1374 = vmatprep.subr.bf16.mxu0 %v1286
    %1375 = vmatpush1.bf16.msra.mxu0 %v1285
    %1376 = vmatprep.subr.bf16.mxu0 0
    %1377 = vmatpush1.bf16.msra.mxu0 0
    %1378 = vmatprep.subr.bf16.mxu0 0
    %1379 = vmatpush1.bf16.msra.mxu0 0
    %1380 = vmatprep.subr.bf16.mxu0 0
    %1381 = vmatpush1.bf16.msra.mxu0 0
    %1382 = vmatprep.subr.bf16.mxu0 0
    %1383 = vmatpush1.bf16.msra.mxu0 0
    %1384 = vmatprep.subr.bf16.mxu0 0
    %1385 = vmatpush1.bf16.msra.mxu0 0
    %1386 = vmatprep.subr.bf16.mxu0 0
    %1387 = vmatpush1.bf16.msra.mxu0 0
    %1388 = vmatprep.subr.bf16.mxu0 0
    %1389 = vmatpush1.bf16.msra.mxu0 0
    %1390 = vmatprep.subr.bf16.mxu0 0
    %1391 = vmatpush1.bf16.msra.mxu0 0
    %1392 = vmatprep.mubr.bf16.mxu0 0
    %1393 = vmatmul.mubr.bf16.gmra.mrb[0].mxu0 %v1126
    %v1394 = vpop.f32.mrb[0].mxu0
    %v1395 = vadd.f32 0.0, %v1394
    %v1396 = vpop.f32.mrb[0].mxu0
    %v1397 = vadd.f32 0.0, %v1396
    %v1398 = vpop.f32.mrb[0].mxu0
    %v1399 = vpop.f32.mrb[0].mxu0
    %1400 = vdwg.mxu0
    %v1401 = vadd.f32 %v1122, %v1354
    %v1402 = vadd.f32 %v1123, %v1356
    %v1403 = vadd.f32 %v1124, %v1395
    %v1404 = vadd.f32 %v1125, %v1397
    %v1405 = vxor.u32 %v1401, 2147483648
    %v1406 = vxor.u32 %v1402, 2147483648
    %v1407 = vxor.u32 %v1403, 2147483648
    %v1408 = vmul.f32 %v1405, 1.442695
    %v1409 = vpow.pop %v1408
    %v1410 = vmul.f32 %v1406, 1.442695
    %v1411 = vpow.pop %v1410
    %v1412 = vmul.f32 %v1407, 1.442695
    %v1413 = vpow.pop %v1412
    %v1414 = vadd.f32 %v1409, 1.0
    %v1415 = vadd.f32 %v1411, 1.0
    %v1416 = vadd.f32 %v1413, 1.0
    %v1417 = vrcp.pop %v1414
    %v1418 = vmul.f32 1.0, %v1417
    %v1419 = vrcp.pop %v1415
    %v1420 = vmul.f32 1.0, %v1419
    %v1421 = vrcp.pop %v1416
    %v1422 = vmul.f32 1.0, %v1421
    %v1423 = vtanh.pop %v1404
    %v1424 = vmul.f32 %v1420, %v1116
    %v1425 = vmul.f32 %v1418, %v1423
    %v1426 = vadd.f32 %v1424, %v1425
    %v1427 = vtanh.pop %v1426
    %v1428 = vmul.f32 %v1422, %v1427
    %s1429 = scalar_lea.vmem [#allocation3], 16
    %1430 = vst [vmem:[%s1429] sm:$0xff] %v1428
    %s1431 = scalar_lea.vmem [#allocation2], 96
    %v1432 = vld [vmem:[%s1431] sm:$0xff]
    %v1433 = vld [vmem:[%s1431 + $0x8] sm:$0xff]
    %v1434 = vld [vmem:[%s1431 + $0x10] sm:$0xff]
    %v1435 = vld [vmem:[%s1431 + $0x18] sm:$0xff]
    %v1436 = vpack.c.bf16 %v1428, %v1428
    %v1437 = vld [vmem:[#allocation9] sm:$0xff]
    %v1438 = vld [vmem:[#allocation9 + $0x8] sm:$0xff]
    %v1439 = vld [vmem:[#allocation9 + $0x10] sm:$0xff]
    %v1440 = vld [vmem:[#allocation9 + $0x18] sm:$0xff]
    %v1441 = vld [vmem:[#allocation9 + $0x20] sm:$0xff]
    %v1442 = vld [vmem:[#allocation9 + $0x28] sm:$0xff]
    %v1443 = vld [vmem:[#allocation9 + $0x30] sm:$0xff]
    %v1444 = vld [vmem:[#allocation9 + $0x38] sm:$0xff]
    %v1445 = vld [vmem:[#allocation9 + $0x40] sm:$0xff]
    %v1446 = vld [vmem:[#allocation9 + $0x48] sm:$0xff]
    %v1447 = vld [vmem:[#allocation9 + $0x50] sm:$0xff]
    %v1448 = vld [vmem:[#allocation9 + $0x58] sm:$0xff]
    %v1449 = vld [vmem:[#allocation9 + $0x60] sm:$0xff]
    %v1450 = vld [vmem:[#allocation9 + $0x68] sm:$0xff]
    %v1451 = vld [vmem:[#allocation9 + $0x70] sm:$0xff]
    %v1452 = vld [vmem:[#allocation9 + $0x78] sm:$0xff]
    %v1453 = vld [vmem:[#allocation9 + $0x80] sm:$0xff]
    %v1454 = vld [vmem:[#allocation9 + $0x88] sm:$0xff]
    %v1455 = vld [vmem:[#allocation9 + $0x90] sm:$0xff]
    %v1456 = vld [vmem:[#allocation9 + $0x98] sm:$0xff]
    %v1457 = vld [vmem:[#allocation9 + $0xa0] sm:$0xff]
    %v1458 = vld [vmem:[#allocation9 + $0xa8] sm:$0xff]
    %v1459 = vld [vmem:[#allocation9 + $0xb0] sm:$0xff]
    %v1460 = vld [vmem:[#allocation9 + $0xb8] sm:$0xff]
    %v1461 = vld [vmem:[#allocation9 + $0xc0] sm:$0xff]
    %v1462 = vld [vmem:[#allocation9 + $0xc8] sm:$0xff]
    %v1463 = vld [vmem:[#allocation9 + $0xd0] sm:$0xff]
    %v1464 = vld [vmem:[#allocation9 + $0xd8] sm:$0xff]
    %v1465 = vld [vmem:[#allocation9 + $0xe0] sm:$0xff]
    %v1466 = vld [vmem:[#allocation9 + $0xe8] sm:$0xff]
    %v1467 = vld [vmem:[#allocation9 + $0xf0] sm:$0xff]
    %v1468 = vld [vmem:[#allocation9 + $0xf8] sm:$0xff]
    %v1501 = vunpack.c.l.b16 %v1437
    %v1502 = vunpack.c.h.b16 %v1437
    %v1503 = vunpack.c.l.b16 %v1438
    %v1504 = vunpack.c.h.b16 %v1438
    %v1505 = vunpack.c.l.b16 %v1439
    %v1506 = vunpack.c.h.b16 %v1439
    %v1507 = vunpack.c.l.b16 %v1440
    %v1508 = vunpack.c.h.b16 %v1440
    %v1509 = vunpack.c.l.b16 %v1441
    %v1510 = vunpack.c.h.b16 %v1441
    %v1511 = vunpack.c.l.b16 %v1442
    %v1512 = vunpack.c.h.b16 %v1442
    %v1513 = vunpack.c.l.b16 %v1443
    %v1514 = vunpack.c.h.b16 %v1443
    %v1515 = vunpack.c.l.b16 %v1444
    %v1516 = vunpack.c.h.b16 %v1444
    %v1517 = vunpack.c.l.b16 %v1445
    %v1518 = vunpack.c.h.b16 %v1445
    %v1519 = vunpack.c.l.b16 %v1446
    %v1520 = vunpack.c.h.b16 %v1446
    %v1521 = vunpack.c.l.b16 %v1447
    %v1522 = vunpack.c.h.b16 %v1447
    %v1523 = vunpack.c.l.b16 %v1448
    %v1524 = vunpack.c.h.b16 %v1448
    %v1525 = vunpack.c.l.b16 %v1449
    %v1526 = vunpack.c.h.b16 %v1449
    %v1527 = vunpack.c.l.b16 %v1450
    %v1528 = vunpack.c.h.b16 %v1450
    %v1529 = vunpack.c.l.b16 %v1451
    %v1530 = vunpack.c.h.b16 %v1451
    %v1531 = vunpack.c.l.b16 %v1452
    %v1532 = vunpack.c.h.b16 %v1452
    %v1533 = vunpack.c.l.b16 %v1453
    %v1534 = vunpack.c.h.b16 %v1453
    %v1535 = vunpack.c.l.b16 %v1454
    %v1536 = vunpack.c.h.b16 %v1454
    %v1537 = vunpack.c.l.b16 %v1455
    %v1538 = vunpack.c.h.b16 %v1455
    %v1539 = vunpack.c.l.b16 %v1456
    %v1540 = vunpack.c.h.b16 %v1456
    %v1541 = vunpack.c.l.b16 %v1457
    %v1542 = vunpack.c.h.b16 %v1457
    %v1543 = vunpack.c.l.b16 %v1458
    %v1544 = vunpack.c.h.b16 %v1458
    %v1545 = vunpack.c.l.b16 %v1459
    %v1546 = vunpack.c.h.b16 %v1459
    %v1547 = vunpack.c.l.b16 %v1460
    %v1548 = vunpack.c.h.b16 %v1460
    %v1549 = vunpack.c.l.b16 %v1461
    %v1550 = vunpack.c.h.b16 %v1461
    %v1551 = vunpack.c.l.b16 %v1462
    %v1552 = vunpack.c.h.b16 %v1462
    %v1553 = vunpack.c.l.b16 %v1463
    %v1554 = vunpack.c.h.b16 %v1463
    %v1555 = vunpack.c.l.b16 %v1464
    %v1556 = vunpack.c.h.b16 %v1464
    %v1557 = vunpack.c.l.b16 %v1465
    %v1558 = vunpack.c.h.b16 %v1465
    %v1559 = vunpack.c.l.b16 %v1466
    %v1560 = vunpack.c.h.b16 %v1466
    %v1561 = vunpack.c.l.b16 %v1467
    %v1562 = vunpack.c.h.b16 %v1467
    %v1563 = vunpack.c.l.b16 %v1468
    %v1564 = vunpack.c.h.b16 %v1468
    %v1565 = vpack.c.b16 %v1505, %v1501
    %v1566 = vpack.c.b16 %v1506, %v1502
    %v1567 = vpack.c.b16 %v1507, %v1503
    %v1568 = vpack.c.b16 %v1508, %v1504
    %v1569 = vpack.c.b16 %v1513, %v1509
    %v1570 = vpack.c.b16 %v1514, %v1510
    %v1571 = vpack.c.b16 %v1515, %v1511
    %v1572 = vpack.c.b16 %v1516, %v1512
    %v1573 = vpack.c.b16 %v1521, %v1517
    %v1574 = vpack.c.b16 %v1522, %v1518
    %v1575 = vpack.c.b16 %v1523, %v1519
    %v1576 = vpack.c.b16 %v1524, %v1520
    %v1577 = vpack.c.b16 %v1529, %v1525
    %v1578 = vpack.c.b16 %v1530, %v1526
    %v1579 = vpack.c.b16 %v1531, %v1527
    %v1580 = vpack.c.b16 %v1532, %v1528
    %v1581 = vpack.c.b16 %v1537, %v1533
    %v1582 = vpack.c.b16 %v1538, %v1534
    %v1583 = vpack.c.b16 %v1539, %v1535
    %v1584 = vpack.c.b16 %v1540, %v1536
    %v1585 = vpack.c.b16 %v1545, %v1541
    %v1586 = vpack.c.b16 %v1546, %v1542
    %v1587 = vpack.c.b16 %v1547, %v1543
    %v1588 = vpack.c.b16 %v1548, %v1544
    %v1589 = vpack.c.b16 %v1553, %v1549
    %v1590 = vpack.c.b16 %v1554, %v1550
    %v1591 = vpack.c.b16 %v1555, %v1551
    %v1592 = vpack.c.b16 %v1556, %v1552
    %v1593 = vpack.c.b16 %v1561, %v1557
    %v1594 = vpack.c.b16 %v1562, %v1558
    %v1595 = vpack.c.b16 %v1563, %v1559
    %v1596 = vpack.c.b16 %v1564, %v1560
    %1629 = vmatprep.subr.bf16.mxu0 %v1566
    %1630 = vmatpush1.bf16.msra.mxu0 %v1565
    %1631 = vmatprep.subr.bf16.mxu0 %v1570
    %1632 = vmatpush1.bf16.msra.mxu0 %v1569
    %1633 = vmatprep.subr.bf16.mxu0 %v1574
    %1634 = vmatpush1.bf16.msra.mxu0 %v1573
    %1635 = vmatprep.subr.bf16.mxu0 %v1578
    %1636 = vmatpush1.bf16.msra.mxu0 %v1577
    %1637 = vmatprep.subr.bf16.mxu0 %v1582
    %1638 = vmatpush1.bf16.msra.mxu0 %v1581
    %1639 = vmatprep.subr.bf16.mxu0 %v1586
    %1640 = vmatpush1.bf16.msra.mxu0 %v1585
    %1641 = vmatprep.subr.bf16.mxu0 %v1590
    %1642 = vmatpush1.bf16.msra.mxu0 %v1589
    %1643 = vmatprep.subr.bf16.mxu0 %v1594
    %1644 = vmatpush1.bf16.msra.mxu0 %v1593
    %1645 = vmatprep.subr.bf16.mxu0 0
    %1646 = vmatpush1.bf16.msra.mxu0 0
    %1647 = vmatprep.subr.bf16.mxu0 0
    %1648 = vmatpush1.bf16.msra.mxu0 0
    %1649 = vmatprep.subr.bf16.mxu0 0
    %1650 = vmatpush1.bf16.msra.mxu0 0
    %1651 = vmatprep.subr.bf16.mxu0 0
    %1652 = vmatpush1.bf16.msra.mxu0 0
    %1653 = vmatprep.subr.bf16.mxu0 0
    %1654 = vmatpush1.bf16.msra.mxu0 0
    %1655 = vmatprep.subr.bf16.mxu0 0
    %1656 = vmatpush1.bf16.msra.mxu0 0
    %1657 = vmatprep.subr.bf16.mxu0 0
    %1658 = vmatpush1.bf16.msra.mxu0 0
    %1659 = vmatprep.subr.bf16.mxu0 0
    %1660 = vmatpush1.bf16.msra.mxu0 0
    %1661 = vmatprep.mubr.bf16.mxu0 0
    %1662 = vmatmul.mubr.bf16.gmra.mrb[0].mxu0 %v1436
    %v1663 = vpop.f32.mrb[0].mxu0
    %v1664 = vadd.f32 0.0, %v1663
    %v1665 = vpop.f32.mrb[0].mxu0
    %v1666 = vadd.f32 0.0, %v1665
    %v1667 = vpop.f32.mrb[0].mxu0
    %v1668 = vpop.f32.mrb[0].mxu0
    %1669 = vdwg.mxu0
    %1670 = vmatprep.subr.bf16.mxu0 %v1568
    %1671 = vmatpush1.bf16.msra.mxu0 %v1567
    %1672 = vmatprep.subr.bf16.mxu0 %v1572
    %1673 = vmatpush1.bf16.msra.mxu0 %v1571
    %1674 = vmatprep.subr.bf16.mxu0 %v1576
    %1675 = vmatpush1.bf16.msra.mxu0 %v1575
    %1676 = vmatprep.subr.bf16.mxu0 %v1580
    %1677 = vmatpush1.bf16.msra.mxu0 %v1579
    %1678 = vmatprep.subr.bf16.mxu0 %v1584
    %1679 = vmatpush1.bf16.msra.mxu0 %v1583
    %1680 = vmatprep.subr.bf16.mxu0 %v1588
    %1681 = vmatpush1.bf16.msra.mxu0 %v1587
    %1682 = vmatprep.subr.bf16.mxu0 %v1592
    %1683 = vmatpush1.bf16.msra.mxu0 %v1591
    %1684 = vmatprep.subr.bf16.mxu0 %v1596
    %1685 = vmatpush1.bf16.msra.mxu0 %v1595
    %1686 = vmatprep.subr.bf16.mxu0 0
    %1687 = vmatpush1.bf16.msra.mxu0 0
    %1688 = vmatprep.subr.bf16.mxu0 0
    %1689 = vmatpush1.bf16.msra.mxu0 0
    %1690 = vmatprep.subr.bf16.mxu0 0
    %1691 = vmatpush1.bf16.msra.mxu0 0
    %1692 = vmatprep.subr.bf16.mxu0 0
    %1693 = vmatpush1.bf16.msra.mxu0 0
    %1694 = vmatprep.subr.bf16.mxu0 0
    %1695 = vmatpush1.bf16.msra.mxu0 0
    %1696 = vmatprep.subr.bf16.mxu0 0
    %1697 = vmatpush1.bf16.msra.mxu0 0
    %1698 = vmatprep.subr.bf16.mxu0 0
    %1699 = vmatpush1.bf16.msra.mxu0 0
    %1700 = vmatprep.subr.bf16.mxu0 0
    %1701 = vmatpush1.bf16.msra.mxu0 0
    %1702 = vmatprep.mubr.bf16.mxu0 0
    %1703 = vmatmul.mubr.bf16.gmra.mrb[0].mxu0 %v1436
    %v1704 = vpop.f32.mrb[0].mxu0
    %v1705 = vadd.f32 0.0, %v1704
    %v1706 = vpop.f32.mrb[0].mxu0
    %v1707 = vadd.f32 0.0, %v1706
    %v1708 = vpop.f32.mrb[0].mxu0
    %v1709 = vpop.f32.mrb[0].mxu0
    %1710 = vdwg.mxu0
    %v1711 = vadd.f32 %v1432, %v1664
    %v1712 = vadd.f32 %v1433, %v1666
    %v1713 = vadd.f32 %v1434, %v1705
    %v1714 = vadd.f32 %v1435, %v1707
    %v1715 = vxor.u32 %v1711, 2147483648
    %v1716 = vxor.u32 %v1712, 2147483648
    %v1717 = vxor.u32 %v1713, 2147483648
    %v1718 = vmul.f32 %v1715, 1.442695
    %v1719 = vpow.pop %v1718
    %v1720 = vmul.f32 %v1716, 1.442695
    %v1721 = vpow.pop %v1720
    %v1722 = vmul.f32 %v1717, 1.442695
    %v1723 = vpow.pop %v1722
    %v1724 = vadd.f32 %v1719, 1.0
    %v1725 = vadd.f32 %v1721, 1.0
    %v1726 = vadd.f32 %v1723, 1.0
    %v1727 = vrcp.pop %v1724
    %v1728 = vmul.f32 1.0, %v1727
    %v1729 = vrcp.pop %v1725
    %v1730 = vmul.f32 1.0, %v1729
    %v1731 = vrcp.pop %v1726
    %v1732 = vmul.f32 1.0, %v1731
    %v1733 = vtanh.pop %v1714
    %v1734 = vmul.f32 %v1730, %v1426
    %v1735 = vmul.f32 %v1728, %v1733
    %v1736 = vadd.f32 %v1734, %v1735
    %v1737 = vtanh.pop %v1736
    %v1738 = vmul.f32 %v1732, %v1737
    %s1739 = scalar_lea.vmem [#allocation3], 24
    %1740 = vst [vmem:[%s1739] sm:$0xff] %v1738
    %s1741 = scalar_lea.vmem [#allocation2], 128
    %v1742 = vld [vmem:[%s1741] sm:$0xff]
    %v1743 = vld [vmem:[%s1741 + $0x8] sm:$0xff]
    %v1744 = vld [vmem:[%s1741 + $0x10] sm:$0xff]
    %v1745 = vld [vmem:[%s1741 + $0x18] sm:$0xff]
    %v1746 = vpack.c.bf16 %v1738, %v1738
    %v1747 = vld [vmem:[#allocation9] sm:$0xff]
    %v1748 = vld [vmem:[#allocation9 + $0x8] sm:$0xff]
    %v1749 = vld [vmem:[#allocation9 + $0x10] sm:$0xff]
    %v1750 = vld [vmem:[#allocation9 + $0x18] sm:$0xff]
    %v1751 = vld [vmem:[#allocation9 + $0x20] sm:$0xff]
    %v1752 = vld [vmem:[#allocation9 + $0x28] sm:$0xff]
    %v1753 = vld [vmem:[#allocation9 + $0x30] sm:$0xff]
    %v1754 = vld [vmem:[#allocation9 + $0x38] sm:$0xff]
    %v1755 = vld [vmem:[#allocation9 + $0x40] sm:$0xff]
    %v1756 = vld [vmem:[#allocation9 + $0x48] sm:$0xff]
    %v1757 = vld [vmem:[#allocation9 + $0x50] sm:$0xff]
    %v1758 = vld [vmem:[#allocation9 + $0x58] sm:$0xff]
    %v1759 = vld [vmem:[#allocation9 + $0x60] sm:$0xff]
    %v1760 = vld [vmem:[#allocation9 + $0x68] sm:$0xff]
    %v1761 = vld [vmem:[#allocation9 + $0x70] sm:$0xff]
    %v1762 = vld [vmem:[#allocation9 + $0x78] sm:$0xff]
    %v1763 = vld [vmem:[#allocation9 + $0x80] sm:$0xff]
    %v1764 = vld [vmem:[#allocation9 + $0x88] sm:$0xff]
    %v1765 = vld [vmem:[#allocation9 + $0x90] sm:$0xff]
    %v1766 = vld [vmem:[#allocation9 + $0x98] sm:$0xff]
    %v1767 = vld [vmem:[#allocation9 + $0xa0] sm:$0xff]
    %v1768 = vld [vmem:[#allocation9 + $0xa8] sm:$0xff]
    %v1769 = vld [vmem:[#allocation9 + $0xb0] sm:$0xff]
    %v1770 = vld [vmem:[#allocation9 + $0xb8] sm:$0xff]
    %v1771 = vld [vmem:[#allocation9 + $0xc0] sm:$0xff]
    %v1772 = vld [vmem:[#allocation9 + $0xc8] sm:$0xff]
    %v1773 = vld [vmem:[#allocation9 + $0xd0] sm:$0xff]
    %v1774 = vld [vmem:[#allocation9 + $0xd8] sm:$0xff]
    %v1775 = vld [vmem:[#allocation9 + $0xe0] sm:$0xff]
    %v1776 = vld [vmem:[#allocation9 + $0xe8] sm:$0xff]
    %v1777 = vld [vmem:[#allocation9 + $0xf0] sm:$0xff]
    %v1778 = vld [vmem:[#allocation9 + $0xf8] sm:$0xff]
    %v1811 = vunpack.c.l.b16 %v1747
    %v1812 = vunpack.c.h.b16 %v1747
    %v1813 = vunpack.c.l.b16 %v1748
    %v1814 = vunpack.c.h.b16 %v1748
    %v1815 = vunpack.c.l.b16 %v1749
    %v1816 = vunpack.c.h.b16 %v1749
    %v1817 = vunpack.c.l.b16 %v1750
    %v1818 = vunpack.c.h.b16 %v1750
    %v1819 = vunpack.c.l.b16 %v1751
    %v1820 = vunpack.c.h.b16 %v1751
    %v1821 = vunpack.c.l.b16 %v1752
    %v1822 = vunpack.c.h.b16 %v1752
    %v1823 = vunpack.c.l.b16 %v1753
    %v1824 = vunpack.c.h.b16 %v1753
    %v1825 = vunpack.c.l.b16 %v1754
    %v1826 = vunpack.c.h.b16 %v1754
    %v1827 = vunpack.c.l.b16 %v1755
    %v1828 = vunpack.c.h.b16 %v1755
    %v1829 = vunpack.c.l.b16 %v1756
    %v1830 = vunpack.c.h.b16 %v1756
    %v1831 = vunpack.c.l.b16 %v1757
    %v1832 = vunpack.c.h.b16 %v1757
    %v1833 = vunpack.c.l.b16 %v1758
    %v1834 = vunpack.c.h.b16 %v1758
    %v1835 = vunpack.c.l.b16 %v1759
    %v1836 = vunpack.c.h.b16 %v1759
    %v1837 = vunpack.c.l.b16 %v1760
    %v1838 = vunpack.c.h.b16 %v1760
    %v1839 = vunpack.c.l.b16 %v1761
    %v1840 = vunpack.c.h.b16 %v1761
    %v1841 = vunpack.c.l.b16 %v1762
    %v1842 = vunpack.c.h.b16 %v1762
    %v1843 = vunpack.c.l.b16 %v1763
    %v1844 = vunpack.c.h.b16 %v1763
    %v1845 = vunpack.c.l.b16 %v1764
    %v1846 = vunpack.c.h.b16 %v1764
    %v1847 = vunpack.c.l.b16 %v1765
    %v1848 = vunpack.c.h.b16 %v1765
    %v1849 = vunpack.c.l.b16 %v1766
    %v1850 = vunpack.c.h.b16 %v1766
    %v1851 = vunpack.c.l.b16 %v1767
    %v1852 = vunpack.c.h.b16 %v1767
    %v1853 = vunpack.c.l.b16 %v1768
    %v1854 = vunpack.c.h.b16 %v1768
    %v1855 = vunpack.c.l.b16 %v1769
    %v1856 = vunpack.c.h.b16 %v1769
    %v1857 = vunpack.c.l.b16 %v1770
    %v1858 = vunpack.c.h.b16 %v1770
    %v1859 = vunpack.c.l.b16 %v1771
    %v1860 = vunpack.c.h.b16 %v1771
    %v1861 = vunpack.c.l.b16 %v1772
    %v1862 = vunpack.c.h.b16 %v1772
    %v1863 = vunpack.c.l.b16 %v1773
    %v1864 = vunpack.c.h.b16 %v1773
    %v1865 = vunpack.c.l.b16 %v1774
    %v1866 = vunpack.c.h.b16 %v1774
    %v1867 = vunpack.c.l.b16 %v1775
    %v1868 = vunpack.c.h.b16 %v1775
    %v1869 = vunpack.c.l.b16 %v1776
    %v1870 = vunpack.c.h.b16 %v1776
    %v1871 = vunpack.c.l.b16 %v1777
    %v1872 = vunpack.c.h.b16 %v1777
    %v1873 = vunpack.c.l.b16 %v1778
    %v1874 = vunpack.c.h.b16 %v1778
    %v1875 = vpack.c.b16 %v1815, %v1811
    %v1876 = vpack.c.b16 %v1816, %v1812
    %v1877 = vpack.c.b16 %v1817, %v1813
    %v1878 = vpack.c.b16 %v1818, %v1814
    %v1879 = vpack.c.b16 %v1823, %v1819
    %v1880 = vpack.c.b16 %v1824, %v1820
    %v1881 = vpack.c.b16 %v1825, %v1821
    %v1882 = vpack.c.b16 %v1826, %v1822
    %v1883 = vpack.c.b16 %v1831, %v1827
    %v1884 = vpack.c.b16 %v1832, %v1828
    %v1885 = vpack.c.b16 %v1833, %v1829
    %v1886 = vpack.c.b16 %v1834, %v1830
    %v1887 = vpack.c.b16 %v1839, %v1835
    %v1888 = vpack.c.b16 %v1840, %v1836
    %v1889 = vpack.c.b16 %v1841, %v1837
    %v1890 = vpack.c.b16 %v1842, %v1838
    %v1891 = vpack.c.b16 %v1847, %v1843
    %v1892 = vpack.c.b16 %v1848, %v1844
    %v1893 = vpack.c.b16 %v1849, %v1845
    %v1894 = vpack.c.b16 %v1850, %v1846
    %v1895 = vpack.c.b16 %v1855, %v1851
    %v1896 = vpack.c.b16 %v1856, %v1852
    %v1897 = vpack.c.b16 %v1857, %v1853
    %v1898 = vpack.c.b16 %v1858, %v1854
    %v1899 = vpack.c.b16 %v1863, %v1859
    %v1900 = vpack.c.b16 %v1864, %v1860
    %v1901 = vpack.c.b16 %v1865, %v1861
    %v1902 = vpack.c.b16 %v1866, %v1862
    %v1903 = vpack.c.b16 %v1871, %v1867
    %v1904 = vpack.c.b16 %v1872, %v1868
    %v1905 = vpack.c.b16 %v1873, %v1869
    %v1906 = vpack.c.b16 %v1874, %v1870
    %1939 = vmatprep.subr.bf16.mxu0 %v1876
    %1940 = vmatpush1.bf16.msra.mxu0 %v1875
    %1941 = vmatprep.subr.bf16.mxu0 %v1880
    %1942 = vmatpush1.bf16.msra.mxu0 %v1879
    %1943 = vmatprep.subr.bf16.mxu0 %v1884
    %1944 = vmatpush1.bf16.msra.mxu0 %v1883
    %1945 = vmatprep.subr.bf16.mxu0 %v1888
    %1946 = vmatpush1.bf16.msra.mxu0 %v1887
    %1947 = vmatprep.subr.bf16.mxu0 %v1892
    %1948 = vmatpush1.bf16.msra.mxu0 %v1891
    %1949 = vmatprep.subr.bf16.mxu0 %v1896
    %1950 = vmatpush1.bf16.msra.mxu0 %v1895
    %1951 = vmatprep.subr.bf16.mxu0 %v1900
    %1952 = vmatpush1.bf16.msra.mxu0 %v1899
    %1953 = vmatprep.subr.bf16.mxu0 %v1904
    %1954 = vmatpush1.bf16.msra.mxu0 %v1903
    %1955 = vmatprep.subr.bf16.mxu0 0
    %1956 = vmatpush1.bf16.msra.mxu0 0
    %1957 = vmatprep.subr.bf16.mxu0 0
    %1958 = vmatpush1.bf16.msra.mxu0 0
    %1959 = vmatprep.subr.bf16.mxu0 0
    %1960 = vmatpush1.bf16.msra.mxu0 0
    %1961 = vmatprep.subr.bf16.mxu0 0
    %1962 = vmatpush1.bf16.msra.mxu0 0
    %1963 = vmatprep.subr.bf16.mxu0 0
    %1964 = vmatpush1.bf16.msra.mxu0 0
    %1965 = vmatprep.subr.bf16.mxu0 0
    %1966 = vmatpush1.bf16.msra.mxu0 0
    %1967 = vmatprep.subr.bf16.mxu0 0
    %1968 = vmatpush1.bf16.msra.mxu0 0
    %1969 = vmatprep.subr.bf16.mxu0 0
    %1970 = vmatpush1.bf16.msra.mxu0 0
    %1971 = vmatprep.mubr.bf16.mxu0 0
    %1972 = vmatmul.mubr.bf16.gmra.mrb[0].mxu0 %v1746
    %v1973 = vpop.f32.mrb[0].mxu0
    %v1974 = vadd.f32 0.0, %v1973
    %v1975 = vpop.f32.mrb[0].mxu0
    %v1976 = vadd.f32 0.0, %v1975
    %v1977 = vpop.f32.mrb[0].mxu0
    %v1978 = vpop.f32.mrb[0].mxu0
    %1979 = vdwg.mxu0
    %1980 = vmatprep.subr.bf16.mxu0 %v1878
    %1981 = vmatpush1.bf16.msra.mxu0 %v1877
    %1982 = vmatprep.subr.bf16.mxu0 %v1882
    %1983 = vmatpush1.bf16.msra.mxu0 %v1881
    %1984 = vmatprep.subr.bf16.mxu0 %v1886
    %1985 = vmatpush1.bf16.msra.mxu0 %v1885
    %1986 = vmatprep.subr.bf16.mxu0 %v1890
    %1987 = vmatpush1.bf16.msra.mxu0 %v1889
    %1988 = vmatprep.subr.bf16.mxu0 %v1894
    %1989 = vmatpush1.bf16.msra.mxu0 %v1893
    %1990 = vmatprep.subr.bf16.mxu0 %v1898
    %1991 = vmatpush1.bf16.msra.mxu0 %v1897
    %1992 = vmatprep.subr.bf16.mxu0 %v1902
    %1993 = vmatpush1.bf16.msra.mxu0 %v1901
    %1994 = vmatprep.subr.bf16.mxu0 %v1906
    %1995 = vmatpush1.bf16.msra.mxu0 %v1905
    %1996 = vmatprep.subr.bf16.mxu0 0
    %1997 = vmatpush1.bf16.msra.mxu0 0
    %1998 = vmatprep.subr.bf16.mxu0 0
    %1999 = vmatpush1.bf16.msra.mxu0 0
    %2000 = vmatprep.subr.bf16.mxu0 0
    %2001 = vmatpush1.bf16.msra.mxu0 0
    %2002 = vmatprep.subr.bf16.mxu0 0
    %2003 = vmatpush1.bf16.msra.mxu0 0
    %2004 = vmatprep.subr.bf16.mxu0 0
    %2005 = vmatpush1.bf16.msra.mxu0 0
    %2006 = vmatprep.subr.bf16.mxu0 0
    %2007 = vmatpush1.bf16.msra.mxu0 0
    %2008 = vmatprep.subr.bf16.mxu0 0
    %2009 = vmatpush1.bf16.msra.mxu0 0
    %2010 = vmatprep.subr.bf16.mxu0 0
    %2011 = vmatpush1.bf16.msra.mxu0 0
    %2012 = vmatprep.mubr.bf16.mxu0 0
    %2013 = vmatmul.mubr.bf16.gmra.mrb[0].mxu0 %v1746
    %v2014 = vpop.f32.mrb[0].mxu0
    %v2015 = vadd.f32 0.0, %v2014
    %v2016 = vpop.f32.mrb[0].mxu0
    %v2017 = vadd.f32 0.0, %v2016
    %v2018 = vpop.f32.mrb[0].mxu0
    %v2019 = vpop.f32.mrb[0].mxu0
    %2020 = vdwg.mxu0
    %v2021 = vadd.f32 %v1742, %v1974
    %v2022 = vadd.f32 %v1743, %v1976
    %v2023 = vadd.f32 %v1744, %v2015
    %v2024 = vadd.f32 %v1745, %v2017
    %v2025 = vxor.u32 %v2021, 2147483648
    %v2026 = vxor.u32 %v2022, 2147483648
    %v2027 = vxor.u32 %v2023, 2147483648
    %v2028 = vmul.f32 %v2025, 1.442695
    %v2029 = vpow.pop %v2028
    %v2030 = vmul.f32 %v2026, 1.442695
    %v2031 = vpow.pop %v2030
    %v2032 = vmul.f32 %v2027, 1.442695
    %v2033 = vpow.pop %v2032
    %v2034 = vadd.f32 %v2029, 1.0
    %v2035 = vadd.f32 %v2031, 1.0
    %v2036 = vadd.f32 %v2033, 1.0
    %v2037 = vrcp.pop %v2034
    %v2038 = vmul.f32 1.0, %v2037
    %v2039 = vrcp.pop %v2035
    %v2040 = vmul.f32 1.0, %v2039
    %v2041 = vrcp.pop %v2036
    %v2042 = vmul.f32 1.0, %v2041
    %v2043 = vtanh.pop %v2024
    %v2044 = vmul.f32 %v2040, %v1736
    %v2045 = vmul.f32 %v2038, %v2043
    %v2046 = vadd.f32 %v2044, %v2045
    %v2047 = vtanh.pop %v2046
    %v2048 = vmul.f32 %v2042, %v2047
    %s2049 = scalar_lea.vmem [#allocation3], 32
    %2050 = vst [vmem:[%s2049] sm:$0xff] %v2048
    %s2051 = scalar_lea.vmem [#allocation2], 160
    %v2052 = vld [vmem:[%s2051] sm:$0xff]
    %v2053 = vld [vmem:[%s2051 + $0x8] sm:$0xff]
    %v2054 = vld [vmem:[%s2051 + $0x10] sm:$0xff]
    %v2055 = vld [vmem:[%s2051 + $0x18] sm:$0xff]
    %v2056 = vpack.c.bf16 %v2048, %v2048
    %v2057 = vld [vmem:[#allocation9] sm:$0xff]
    %v2058 = vld [vmem:[#allocation9 + $0x8] sm:$0xff]
    %v2059 = vld [vmem:[#allocation9 + $0x10] sm:$0xff]
    %v2060 = vld [vmem:[#allocation9 + $0x18] sm:$0xff]
    %v2061 = vld [vmem:[#allocation9 + $0x20] sm:$0xff]
    %v2062 = vld [vmem:[#allocation9 + $0x28] sm:$0xff]
    %v2063 = vld [vmem:[#allocation9 + $0x30] sm:$0xff]
    %v2064 = vld [vmem:[#allocation9 + $0x38] sm:$0xff]
    %v2065 = vld [vmem:[#allocation9 + $0x40] sm:$0xff]
    %v2066 = vld [vmem:[#allocation9 + $0x48] sm:$0xff]
    %v2067 = vld [vmem:[#allocation9 + $0x50] sm:$0xff]
    %v2068 = vld [vmem:[#allocation9 + $0x58] sm:$0xff]
    %v2069 = vld [vmem:[#allocation9 + $0x60] sm:$0xff]
    %v2070 = vld [vmem:[#allocation9 + $0x68] sm:$0xff]
    %v2071 = vld [vmem:[#allocation9 + $0x70] sm:$0xff]
    %v2072 = vld [vmem:[#allocation9 + $0x78] sm:$0xff]
    %v2073 = vld [vmem:[#allocation9 + $0x80] sm:$0xff]
    %v2074 = vld [vmem:[#allocation9 + $0x88] sm:$0xff]
    %v2075 = vld [vmem:[#allocation9 + $0x90] sm:$0xff]
    %v2076 = vld [vmem:[#allocation9 + $0x98] sm:$0xff]
    %v2077 = vld [vmem:[#allocation9 + $0xa0] sm:$0xff]
    %v2078 = vld [vmem:[#allocation9 + $0xa8] sm:$0xff]
    %v2079 = vld [vmem:[#allocation9 + $0xb0] sm:$0xff]
    %v2080 = vld [vmem:[#allocation9 + $0xb8] sm:$0xff]
    %v2081 = vld [vmem:[#allocation9 + $0xc0] sm:$0xff]
    %v2082 = vld [vmem:[#allocation9 + $0xc8] sm:$0xff]
    %v2083 = vld [vmem:[#allocation9 + $0xd0] sm:$0xff]
    %v2084 = vld [vmem:[#allocation9 + $0xd8] sm:$0xff]
    %v2085 = vld [vmem:[#allocation9 + $0xe0] sm:$0xff]
    %v2086 = vld [vmem:[#allocation9 + $0xe8] sm:$0xff]
    %v2087 = vld [vmem:[#allocation9 + $0xf0] sm:$0xff]
    %v2088 = vld [vmem:[#allocation9 + $0xf8] sm:$0xff]
    %v2121 = vunpack.c.l.b16 %v2057
    %v2122 = vunpack.c.h.b16 %v2057
    %v2123 = vunpack.c.l.b16 %v2058
    %v2124 = vunpack.c.h.b16 %v2058
    %v2125 = vunpack.c.l.b16 %v2059
    %v2126 = vunpack.c.h.b16 %v2059
    %v2127 = vunpack.c.l.b16 %v2060
    %v2128 = vunpack.c.h.b16 %v2060
    %v2129 = vunpack.c.l.b16 %v2061
    %v2130 = vunpack.c.h.b16 %v2061
    %v2131 = vunpack.c.l.b16 %v2062
    %v2132 = vunpack.c.h.b16 %v2062
    %v2133 = vunpack.c.l.b16 %v2063
    %v2134 = vunpack.c.h.b16 %v2063
    %v2135 = vunpack.c.l.b16 %v2064
    %v2136 = vunpack.c.h.b16 %v2064
    %v2137 = vunpack.c.l.b16 %v2065
    %v2138 = vunpack.c.h.b16 %v2065
    %v2139 = vunpack.c.l.b16 %v2066
    %v2140 = vunpack.c.h.b16 %v2066
    %v2141 = vunpack.c.l.b16 %v2067
    %v2142 = vunpack.c.h.b16 %v2067
    %v2143 = vunpack.c.l.b16 %v2068
    %v2144 = vunpack.c.h.b16 %v2068
    %v2145 = vunpack.c.l.b16 %v2069
    %v2146 = vunpack.c.h.b16 %v2069
    %v2147 = vunpack.c.l.b16 %v2070
    %v2148 = vunpack.c.h.b16 %v2070
    %v2149 = vunpack.c.l.b16 %v2071
    %v2150 = vunpack.c.h.b16 %v2071
    %v2151 = vunpack.c.l.b16 %v2072
    %v2152 = vunpack.c.h.b16 %v2072
    %v2153 = vunpack.c.l.b16 %v2073
    %v2154 = vunpack.c.h.b16 %v2073
    %v2155 = vunpack.c.l.b16 %v2074
    %v2156 = vunpack.c.h.b16 %v2074
    %v2157 = vunpack.c.l.b16 %v2075
    %v2158 = vunpack.c.h.b16 %v2075
    %v2159 = vunpack.c.l.b16 %v2076
    %v2160 = vunpack.c.h.b16 %v2076
    %v2161 = vunpack.c.l.b16 %v2077
    %v2162 = vunpack.c.h.b16 %v2077
    %v2163 = vunpack.c.l.b16 %v2078
    %v2164 = vunpack.c.h.b16 %v2078
    %v2165 = vunpack.c.l.b16 %v2079
    %v2166 = vunpack.c.h.b16 %v2079
    %v2167 = vunpack.c.l.b16 %v2080
    %v2168 = vunpack.c.h.b16 %v2080
    %v2169 = vunpack.c.l.b16 %v2081
    %v2170 = vunpack.c.h.b16 %v2081
    %v2171 = vunpack.c.l.b16 %v2082
    %v2172 = vunpack.c.h.b16 %v2082
    %v2173 = vunpack.c.l.b16 %v2083
    %v2174 = vunpack.c.h.b16 %v2083
    %v2175 = vunpack.c.l.b16 %v2084
    %v2176 = vunpack.c.h.b16 %v2084
    %v2177 = vunpack.c.l.b16 %v2085
    %v2178 = vunpack.c.h.b16 %v2085
    %v2179 = vunpack.c.l.b16 %v2086
    %v2180 = vunpack.c.h.b16 %v2086
    %v2181 = vunpack.c.l.b16 %v2087
    %v2182 = vunpack.c.h.b16 %v2087
    %v2183 = vunpack.c.l.b16 %v2088
    %v2184 = vunpack.c.h.b16 %v2088
    %v2185 = vpack.c.b16 %v2125, %v2121
    %v2186 = vpack.c.b16 %v2126, %v2122
    %v2187 = vpack.c.b16 %v2127, %v2123
    %v2188 = vpack.c.b16 %v2128, %v2124
    %v2189 = vpack.c.b16 %v2133, %v2129
    %v2190 = vpack.c.b16 %v2134, %v2130
    %v2191 = vpack.c.b16 %v2135, %v2131
    %v2192 = vpack.c.b16 %v2136, %v2132
    %v2193 = vpack.c.b16 %v2141, %v2137
    %v2194 = vpack.c.b16 %v2142, %v2138
    %v2195 = vpack.c.b16 %v2143, %v2139
    %v2196 = vpack.c.b16 %v2144, %v2140
    %v2197 = vpack.c.b16 %v2149, %v2145
    %v2198 = vpack.c.b16 %v2150, %v2146
    %v2199 = vpack.c.b16 %v2151, %v2147
    %v2200 = vpack.c.b16 %v2152, %v2148
    %v2201 = vpack.c.b16 %v2157, %v2153
    %v2202 = vpack.c.b16 %v2158, %v2154
    %v2203 = vpack.c.b16 %v2159, %v2155
    %v2204 = vpack.c.b16 %v2160, %v2156
    %v2205 = vpack.c.b16 %v2165, %v2161
    %v2206 = vpack.c.b16 %v2166, %v2162
    %v2207 = vpack.c.b16 %v2167, %v2163
    %v2208 = vpack.c.b16 %v2168, %v2164
    %v2209 = vpack.c.b16 %v2173, %v2169
    %v2210 = vpack.c.b16 %v2174, %v2170
    %v2211 = vpack.c.b16 %v2175, %v2171
    %v2212 = vpack.c.b16 %v2176, %v2172
    %v2213 = vpack.c.b16 %v2181, %v2177
    %v2214 = vpack.c.b16 %v2182, %v2178
    %v2215 = vpack.c.b16 %v2183, %v2179
    %v2216 = vpack.c.b16 %v2184, %v2180
    %2249 = vmatprep.subr.bf16.mxu0 %v2186
    %2250 = vmatpush1.bf16.msra.mxu0 %v2185
    %2251 = vmatprep.subr.bf16.mxu0 %v2190
    %2252 = vmatpush1.bf16.msra.mxu0 %v2189
    %2253 = vmatprep.subr.bf16.mxu0 %v2194
    %2254 = vmatpush1.bf16.msra.mxu0 %v2193
    %2255 = vmatprep.subr.bf16.mxu0 %v2198
    %2256 = vmatpush1.bf16.msra.mxu0 %v2197
    %2257 = vmatprep.subr.bf16.mxu0 %v2202
    %2258 = vmatpush1.bf16.msra.mxu0 %v2201
    %2259 = vmatprep.subr.bf16.mxu0 %v2206
    %2260 = vmatpush1.bf16.msra.mxu0 %v2205
    %2261 = vmatprep.subr.bf16.mxu0 %v2210
    %2262 = vmatpush1.bf16.msra.mxu0 %v2209
    %2263 = vmatprep.subr.bf16.mxu0 %v2214
    %2264 = vmatpush1.bf16.msra.mxu0 %v2213
    %2265 = vmatprep.subr.bf16.mxu0 0
    %2266 = vmatpush1.bf16.msra.mxu0 0
    %2267 = vmatprep.subr.bf16.mxu0 0
    %2268 = vmatpush1.bf16.msra.mxu0 0
    %2269 = vmatprep.subr.bf16.mxu0 0
    %2270 = vmatpush1.bf16.msra.mxu0 0
    %2271 = vmatprep.subr.bf16.mxu0 0
    %2272 = vmatpush1.bf16.msra.mxu0 0
    %2273 = vmatprep.subr.bf16.mxu0 0
    %2274 = vmatpush1.bf16.msra.mxu0 0
    %2275 = vmatprep.subr.bf16.mxu0 0
    %2276 = vmatpush1.bf16.msra.mxu0 0
    %2277 = vmatprep.subr.bf16.mxu0 0
    %2278 = vmatpush1.bf16.msra.mxu0 0
    %2279 = vmatprep.subr.bf16.mxu0 0
    %2280 = vmatpush1.bf16.msra.mxu0 0
    %2281 = vmatprep.mubr.bf16.mxu0 0
    %2282 = vmatmul.mubr.bf16.gmra.mrb[0].mxu0 %v2056
    %v2283 = vpop.f32.mrb[0].mxu0
    %v2284 = vadd.f32 0.0, %v2283
    %v2285 = vpop.f32.mrb[0].mxu0
    %v2286 = vadd.f32 0.0, %v2285
    %v2287 = vpop.f32.mrb[0].mxu0
    %v2288 = vpop.f32.mrb[0].mxu0
    %2289 = vdwg.mxu0
    %2290 = vmatprep.subr.bf16.mxu0 %v2188
    %2291 = vmatpush1.bf16.msra.mxu0 %v2187
    %2292 = vmatprep.subr.bf16.mxu0 %v2192
    %2293 = vmatpush1.bf16.msra.mxu0 %v2191
    %2294 = vmatprep.subr.bf16.mxu0 %v2196
    %2295 = vmatpush1.bf16.msra.mxu0 %v2195
    %2296 = vmatprep.subr.bf16.mxu0 %v2200
    %2297 = vmatpush1.bf16.msra.mxu0 %v2199
    %2298 = vmatprep.subr.bf16.mxu0 %v2204
    %2299 = vmatpush1.bf16.msra.mxu0 %v2203
    %2300 = vmatprep.subr.bf16.mxu0 %v2208
    %2301 = vmatpush1.bf16.msra.mxu0 %v2207
    %2302 = vmatprep.subr.bf16.mxu0 %v2212
    %2303 = vmatpush1.bf16.msra.mxu0 %v2211
    %2304 = vmatprep.subr.bf16.mxu0 %v2216
    %2305 = vmatpush1.bf16.msra.mxu0 %v2215
    %2306 = vmatprep.subr.bf16.mxu0 0
    %2307 = vmatpush1.bf16.msra.mxu0 0
    %2308 = vmatprep.subr.bf16.mxu0 0
    %2309 = vmatpush1.bf16.msra.mxu0 0
    %2310 = vmatprep.subr.bf16.mxu0 0
    %2311 = vmatpush1.bf16.msra.mxu0 0
    %2312 = vmatprep.subr.bf16.mxu0 0
    %2313 = vmatpush1.bf16.msra.mxu0 0
    %2314 = vmatprep.subr.bf16.mxu0 0
    %2315 = vmatpush1.bf16.msra.mxu0 0
    %2316 = vmatprep.subr.bf16.mxu0 0
    %2317 = vmatpush1.bf16.msra.mxu0 0
    %2318 = vmatprep.subr.bf16.mxu0 0
    %2319 = vmatpush1.bf16.msra.mxu0 0
    %2320 = vmatprep.subr.bf16.mxu0 0
    %2321 = vmatpush1.bf16.msra.mxu0 0
    %2322 = vmatprep.mubr.bf16.mxu0 0
    %2323 = vmatmul.mubr.bf16.gmra.mrb[0].mxu0 %v2056
    %v2324 = vpop.f32.mrb[0].mxu0
    %v2325 = vadd.f32 0.0, %v2324
    %v2326 = vpop.f32.mrb[0].mxu0
    %v2327 = vadd.f32 0.0, %v2326
    %v2328 = vpop.f32.mrb[0].mxu0
    %v2329 = vpop.f32.mrb[0].mxu0
    %2330 = vdwg.mxu0
    %v2331 = vadd.f32 %v2052, %v2284
    %v2332 = vadd.f32 %v2053, %v2286
    %v2333 = vadd.f32 %v2054, %v2325
    %v2334 = vadd.f32 %v2055, %v2327
    %v2335 = vxor.u32 %v2331, 2147483648
    %v2336 = vxor.u32 %v2332, 2147483648
    %v2337 = vxor.u32 %v2333, 2147483648
    %v2338 = vmul.f32 %v2335, 1.442695
    %v2339 = vpow.pop %v2338
    %v2340 = vmul.f32 %v2336, 1.442695
    %v2341 = vpow.pop %v2340
    %v2342 = vmul.f32 %v2337, 1.442695
    %v2343 = vpow.pop %v2342
    %v2344 = vadd.f32 %v2339, 1.0
    %v2345 = vadd.f32 %v2341, 1.0
    %v2346 = vadd.f32 %v2343, 1.0
    %v2347 = vrcp.pop %v2344
    %v2348 = vmul.f32 1.0, %v2347
    %v2349 = vrcp.pop %v2345
    %v2350 = vmul.f32 1.0, %v2349
    %v2351 = vrcp.pop %v2346
    %v2352 = vmul.f32 1.0, %v2351
    %v2353 = vtanh.pop %v2334
    %v2354 = vmul.f32 %v2350, %v2046
    %v2355 = vmul.f32 %v2348, %v2353
    %v2356 = vadd.f32 %v2354, %v2355
    %v2357 = vtanh.pop %v2356
    %v2358 = vmul.f32 %v2352, %v2357
    %s2359 = scalar_lea.vmem [#allocation3], 40
    %2360 = vst [vmem:[%s2359] sm:$0xff] %v2358
    %s2361 = scalar_lea.vmem [#allocation2], 192
    %v2362 = vld [vmem:[%s2361] sm:$0xff]
    %v2363 = vld [vmem:[%s2361 + $0x8] sm:$0xff]
    %v2364 = vld [vmem:[%s2361 + $0x10] sm:$0xff]
    %v2365 = vld [vmem:[%s2361 + $0x18] sm:$0xff]
    %v2366 = vpack.c.bf16 %v2358, %v2358
    %v2367 = vld [vmem:[#allocation9] sm:$0xff]
    %v2368 = vld [vmem:[#allocation9 + $0x8] sm:$0xff]
    %v2369 = vld [vmem:[#allocation9 + $0x10] sm:$0xff]
    %v2370 = vld [vmem:[#allocation9 + $0x18] sm:$0xff]
    %v2371 = vld [vmem:[#allocation9 + $0x20] sm:$0xff]
    %v2372 = vld [vmem:[#allocation9 + $0x28] sm:$0xff]
    %v2373 = vld [vmem:[#allocation9 + $0x30] sm:$0xff]
    %v2374 = vld [vmem:[#allocation9 + $0x38] sm:$0xff]
    %v2375 = vld [vmem:[#allocation9 + $0x40] sm:$0xff]
    %v2376 = vld [vmem:[#allocation9 + $0x48] sm:$0xff]
    %v2377 = vld [vmem:[#allocation9 + $0x50] sm:$0xff]
    %v2378 = vld [vmem:[#allocation9 + $0x58] sm:$0xff]
    %v2379 = vld [vmem:[#allocation9 + $0x60] sm:$0xff]
    %v2380 = vld [vmem:[#allocation9 + $0x68] sm:$0xff]
    %v2381 = vld [vmem:[#allocation9 + $0x70] sm:$0xff]
    %v2382 = vld [vmem:[#allocation9 + $0x78] sm:$0xff]
    %v2383 = vld [vmem:[#allocation9 + $0x80] sm:$0xff]
    %v2384 = vld [vmem:[#allocation9 + $0x88] sm:$0xff]
    %v2385 = vld [vmem:[#allocation9 + $0x90] sm:$0xff]
    %v2386 = vld [vmem:[#allocation9 + $0x98] sm:$0xff]
    %v2387 = vld [vmem:[#allocation9 + $0xa0] sm:$0xff]
    %v2388 = vld [vmem:[#allocation9 + $0xa8] sm:$0xff]
    %v2389 = vld [vmem:[#allocation9 + $0xb0] sm:$0xff]
    %v2390 = vld [vmem:[#allocation9 + $0xb8] sm:$0xff]
    %v2391 = vld [vmem:[#allocation9 + $0xc0] sm:$0xff]
    %v2392 = vld [vmem:[#allocation9 + $0xc8] sm:$0xff]
    %v2393 = vld [vmem:[#allocation9 + $0xd0] sm:$0xff]
    %v2394 = vld [vmem:[#allocation9 + $0xd8] sm:$0xff]
    %v2395 = vld [vmem:[#allocation9 + $0xe0] sm:$0xff]
    %v2396 = vld [vmem:[#allocation9 + $0xe8] sm:$0xff]
    %v2397 = vld [vmem:[#allocation9 + $0xf0] sm:$0xff]
    %v2398 = vld [vmem:[#allocation9 + $0xf8] sm:$0xff]
    %v2431 = vunpack.c.l.b16 %v2367
    %v2432 = vunpack.c.h.b16 %v2367
    %v2433 = vunpack.c.l.b16 %v2368
    %v2434 = vunpack.c.h.b16 %v2368
    %v2435 = vunpack.c.l.b16 %v2369
    %v2436 = vunpack.c.h.b16 %v2369
    %v2437 = vunpack.c.l.b16 %v2370
    %v2438 = vunpack.c.h.b16 %v2370
    %v2439 = vunpack.c.l.b16 %v2371
    %v2440 = vunpack.c.h.b16 %v2371
    %v2441 = vunpack.c.l.b16 %v2372
    %v2442 = vunpack.c.h.b16 %v2372
    %v2443 = vunpack.c.l.b16 %v2373
    %v2444 = vunpack.c.h.b16 %v2373
    %v2445 = vunpack.c.l.b16 %v2374
    %v2446 = vunpack.c.h.b16 %v2374
    %v2447 = vunpack.c.l.b16 %v2375
    %v2448 = vunpack.c.h.b16 %v2375
    %v2449 = vunpack.c.l.b16 %v2376
    %v2450 = vunpack.c.h.b16 %v2376
    %v2451 = vunpack.c.l.b16 %v2377
    %v2452 = vunpack.c.h.b16 %v2377
    %v2453 = vunpack.c.l.b16 %v2378
    %v2454 = vunpack.c.h.b16 %v2378
    %v2455 = vunpack.c.l.b16 %v2379
    %v2456 = vunpack.c.h.b16 %v2379
    %v2457 = vunpack.c.l.b16 %v2380
    %v2458 = vunpack.c.h.b16 %v2380
    %v2459 = vunpack.c.l.b16 %v2381
    %v2460 = vunpack.c.h.b16 %v2381
    %v2461 = vunpack.c.l.b16 %v2382
    %v2462 = vunpack.c.h.b16 %v2382
    %v2463 = vunpack.c.l.b16 %v2383
    %v2464 = vunpack.c.h.b16 %v2383
    %v2465 = vunpack.c.l.b16 %v2384
    %v2466 = vunpack.c.h.b16 %v2384
    %v2467 = vunpack.c.l.b16 %v2385
    %v2468 = vunpack.c.h.b16 %v2385
    %v2469 = vunpack.c.l.b16 %v2386
    %v2470 = vunpack.c.h.b16 %v2386
    %v2471 = vunpack.c.l.b16 %v2387
    %v2472 = vunpack.c.h.b16 %v2387
    %v2473 = vunpack.c.l.b16 %v2388
    %v2474 = vunpack.c.h.b16 %v2388
    %v2475 = vunpack.c.l.b16 %v2389
    %v2476 = vunpack.c.h.b16 %v2389
    %v2477 = vunpack.c.l.b16 %v2390
    %v2478 = vunpack.c.h.b16 %v2390
    %v2479 = vunpack.c.l.b16 %v2391
    %v2480 = vunpack.c.h.b16 %v2391
    %v2481 = vunpack.c.l.b16 %v2392
    %v2482 = vunpack.c.h.b16 %v2392
    %v2483 = vunpack.c.l.b16 %v2393
    %v2484 = vunpack.c.h.b16 %v2393
    %v2485 = vunpack.c.l.b16 %v2394
    %v2486 = vunpack.c.h.b16 %v2394
    %v2487 = vunpack.c.l.b16 %v2395
    %v2488 = vunpack.c.h.b16 %v2395
    %v2489 = vunpack.c.l.b16 %v2396
    %v2490 = vunpack.c.h.b16 %v2396
    %v2491 = vunpack.c.l.b16 %v2397
    %v2492 = vunpack.c.h.b16 %v2397
    %v2493 = vunpack.c.l.b16 %v2398
    %v2494 = vunpack.c.h.b16 %v2398
    %v2495 = vpack.c.b16 %v2435, %v2431
    %v2496 = vpack.c.b16 %v2436, %v2432
    %v2497 = vpack.c.b16 %v2437, %v2433
    %v2498 = vpack.c.b16 %v2438, %v2434
    %v2499 = vpack.c.b16 %v2443, %v2439
    %v2500 = vpack.c.b16 %v2444, %v2440
    %v2501 = vpack.c.b16 %v2445, %v2441
    %v2502 = vpack.c.b16 %v2446, %v2442
    %v2503 = vpack.c.b16 %v2451, %v2447
    %v2504 = vpack.c.b16 %v2452, %v2448
    %v2505 = vpack.c.b16 %v2453, %v2449
    %v2506 = vpack.c.b16 %v2454, %v2450
    %v2507 = vpack.c.b16 %v2459, %v2455
    %v2508 = vpack.c.b16 %v2460, %v2456
    %v2509 = vpack.c.b16 %v2461, %v2457
    %v2510 = vpack.c.b16 %v2462, %v2458
    %v2511 = vpack.c.b16 %v2467, %v2463
    %v2512 = vpack.c.b16 %v2468, %v2464
    %v2513 = vpack.c.b16 %v2469, %v2465
    %v2514 = vpack.c.b16 %v2470, %v2466
    %v2515 = vpack.c.b16 %v2475, %v2471
    %v2516 = vpack.c.b16 %v2476, %v2472
    %v2517 = vpack.c.b16 %v2477, %v2473
    %v2518 = vpack.c.b16 %v2478, %v2474
    %v2519 = vpack.c.b16 %v2483, %v2479
    %v2520 = vpack.c.b16 %v2484, %v2480
    %v2521 = vpack.c.b16 %v2485, %v2481
    %v2522 = vpack.c.b16 %v2486, %v2482
    %v2523 = vpack.c.b16 %v2491, %v2487
    %v2524 = vpack.c.b16 %v2492, %v2488
    %v2525 = vpack.c.b16 %v2493, %v2489
    %v2526 = vpack.c.b16 %v2494, %v2490
    %2559 = vmatprep.subr.bf16.mxu0 %v2496
    %2560 = vmatpush1.bf16.msra.mxu0 %v2495
    %2561 = vmatprep.subr.bf16.mxu0 %v2500
    %2562 = vmatpush1.bf16.msra.mxu0 %v2499
    %2563 = vmatprep.subr.bf16.mxu0 %v2504
    %2564 = vmatpush1.bf16.msra.mxu0 %v2503
    %2565 = vmatprep.subr.bf16.mxu0 %v2508
    %2566 = vmatpush1.bf16.msra.mxu0 %v2507
    %2567 = vmatprep.subr.bf16.mxu0 %v2512
    %2568 = vmatpush1.bf16.msra.mxu0 %v2511
    %2569 = vmatprep.subr.bf16.mxu0 %v2516
    %2570 = vmatpush1.bf16.msra.mxu0 %v2515
    %2571 = vmatprep.subr.bf16.mxu0 %v2520
    %2572 = vmatpush1.bf16.msra.mxu0 %v2519
    %2573 = vmatprep.subr.bf16.mxu0 %v2524
    %2574 = vmatpush1.bf16.msra.mxu0 %v2523
    %2575 = vmatprep.subr.bf16.mxu0 0
    %2576 = vmatpush1.bf16.msra.mxu0 0
    %2577 = vmatprep.subr.bf16.mxu0 0
    %2578 = vmatpush1.bf16.msra.mxu0 0
    %2579 = vmatprep.subr.bf16.mxu0 0
    %2580 = vmatpush1.bf16.msra.mxu0 0
    %2581 = vmatprep.subr.bf16.mxu0 0
    %2582 = vmatpush1.bf16.msra.mxu0 0
    %2583 = vmatprep.subr.bf16.mxu0 0
    %2584 = vmatpush1.bf16.msra.mxu0 0
    %2585 = vmatprep.subr.bf16.mxu0 0
    %2586 = vmatpush1.bf16.msra.mxu0 0
    %2587 = vmatprep.subr.bf16.mxu0 0
    %2588 = vmatpush1.bf16.msra.mxu0 0
    %2589 = vmatprep.subr.bf16.mxu0 0
    %2590 = vmatpush1.bf16.msra.mxu0 0
    %2591 = vmatprep.mubr.bf16.mxu0 0
    %2592 = vmatmul.mubr.bf16.gmra.mrb[0].mxu0 %v2366
    %v2593 = vpop.f32.mrb[0].mxu0
    %v2594 = vadd.f32 0.0, %v2593
    %v2595 = vpop.f32.mrb[0].mxu0
    %v2596 = vadd.f32 0.0, %v2595
    %v2597 = vpop.f32.mrb[0].mxu0
    %v2598 = vpop.f32.mrb[0].mxu0
    %2599 = vdwg.mxu0
    %2600 = vmatprep.subr.bf16.mxu0 %v2498
    %2601 = vmatpush1.bf16.msra.mxu0 %v2497
    %2602 = vmatprep.subr.bf16.mxu0 %v2502
    %2603 = vmatpush1.bf16.msra.mxu0 %v2501
    %2604 = vmatprep.subr.bf16.mxu0 %v2506
    %2605 = vmatpush1.bf16.msra.mxu0 %v2505
    %2606 = vmatprep.subr.bf16.mxu0 %v2510
    %2607 = vmatpush1.bf16.msra.mxu0 %v2509
    %2608 = vmatprep.subr.bf16.mxu0 %v2514
    %2609 = vmatpush1.bf16.msra.mxu0 %v2513
    %2610 = vmatprep.subr.bf16.mxu0 %v2518
    %2611 = vmatpush1.bf16.msra.mxu0 %v2517
    %2612 = vmatprep.subr.bf16.mxu0 %v2522
    %2613 = vmatpush1.bf16.msra.mxu0 %v2521
    %2614 = vmatprep.subr.bf16.mxu0 %v2526
    %2615 = vmatpush1.bf16.msra.mxu0 %v2525
    %2616 = vmatprep.subr.bf16.mxu0 0
    %2617 = vmatpush1.bf16.msra.mxu0 0
    %2618 = vmatprep.subr.bf16.mxu0 0
    %2619 = vmatpush1.bf16.msra.mxu0 0
    %2620 = vmatprep.subr.bf16.mxu0 0
    %2621 = vmatpush1.bf16.msra.mxu0 0
    %2622 = vmatprep.subr.bf16.mxu0 0
    %2623 = vmatpush1.bf16.msra.mxu0 0
    %2624 = vmatprep.subr.bf16.mxu0 0
    %2625 = vmatpush1.bf16.msra.mxu0 0
    %2626 = vmatprep.subr.bf16.mxu0 0
    %2627 = vmatpush1.bf16.msra.mxu0 0
    %2628 = vmatprep.subr.bf16.mxu0 0
    %2629 = vmatpush1.bf16.msra.mxu0 0
    %2630 = vmatprep.subr.bf16.mxu0 0
    %2631 = vmatpush1.bf16.msra.mxu0 0
    %2632 = vmatprep.mubr.bf16.mxu0 0
    %2633 = vmatmul.mubr.bf16.gmra.mrb[0].mxu0 %v2366
    %v2634 = vpop.f32.mrb[0].mxu0
    %v2635 = vadd.f32 0.0, %v2634
    %v2636 = vpop.f32.mrb[0].mxu0
    %v2637 = vadd.f32 0.0, %v2636
    %v2638 = vpop.f32.mrb[0].mxu0
    %v2639 = vpop.f32.mrb[0].mxu0
    %2640 = vdwg.mxu0
    %v2641 = vadd.f32 %v2362, %v2594
    %v2642 = vadd.f32 %v2363, %v2596
    %v2643 = vadd.f32 %v2364, %v2635
    %v2644 = vadd.f32 %v2365, %v2637
    %v2645 = vxor.u32 %v2641, 2147483648
    %v2646 = vxor.u32 %v2642, 2147483648
    %v2647 = vxor.u32 %v2643, 2147483648
    %v2648 = vmul.f32 %v2645, 1.442695
    %v2649 = vpow.pop %v2648
    %v2650 = vmul.f32 %v2646, 1.442695
    %v2651 = vpow.pop %v2650
    %v2652 = vmul.f32 %v2647, 1.442695
    %v2653 = vpow.pop %v2652
    %v2654 = vadd.f32 %v2649, 1.0
    %v2655 = vadd.f32 %v2651, 1.0
    %v2656 = vadd.f32 %v2653, 1.0
    %v2657 = vrcp.pop %v2654
    %v2658 = vmul.f32 1.0, %v2657
    %v2659 = vrcp.pop %v2655
    %v2660 = vmul.f32 1.0, %v2659
    %v2661 = vrcp.pop %v2656
    %v2662 = vmul.f32 1.0, %v2661
    %v2663 = vtanh.pop %v2644
    %v2664 = vmul.f32 %v2660, %v2356
    %v2665 = vmul.f32 %v2658, %v2663
    %v2666 = vadd.f32 %v2664, %v2665
    %v2667 = vtanh.pop %v2666
    %v2668 = vmul.f32 %v2662, %v2667
    %s2669 = scalar_lea.vmem [#allocation3], 48
    %2670 = vst [vmem:[%s2669] sm:$0xff] %v2668
    %s2671 = scalar_lea.vmem [#allocation2], 224
    %v2672 = vld [vmem:[%s2671] sm:$0xff]
    %v2673 = vld [vmem:[%s2671 + $0x8] sm:$0xff]
    %v2674 = vld [vmem:[%s2671 + $0x10] sm:$0xff]
    %v2675 = vld [vmem:[%s2671 + $0x18] sm:$0xff]
    %v2676 = vpack.c.bf16 %v2668, %v2668
    %v2677 = vld [vmem:[#allocation9] sm:$0xff]
    %v2678 = vld [vmem:[#allocation9 + $0x8] sm:$0xff]
    %v2679 = vld [vmem:[#allocation9 + $0x10] sm:$0xff]
    %v2680 = vld [vmem:[#allocation9 + $0x18] sm:$0xff]
    %v2681 = vld [vmem:[#allocation9 + $0x20] sm:$0xff]
    %v2682 = vld [vmem:[#allocation9 + $0x28] sm:$0xff]
    %v2683 = vld [vmem:[#allocation9 + $0x30] sm:$0xff]
    %v2684 = vld [vmem:[#allocation9 + $0x38] sm:$0xff]
    %v2685 = vld [vmem:[#allocation9 + $0x40] sm:$0xff]
    %v2686 = vld [vmem:[#allocation9 + $0x48] sm:$0xff]
    %v2687 = vld [vmem:[#allocation9 + $0x50] sm:$0xff]
    %v2688 = vld [vmem:[#allocation9 + $0x58] sm:$0xff]
    %v2689 = vld [vmem:[#allocation9 + $0x60] sm:$0xff]
    %v2690 = vld [vmem:[#allocation9 + $0x68] sm:$0xff]
    %v2691 = vld [vmem:[#allocation9 + $0x70] sm:$0xff]
    %v2692 = vld [vmem:[#allocation9 + $0x78] sm:$0xff]
    %v2693 = vld [vmem:[#allocation9 + $0x80] sm:$0xff]
    %v2694 = vld [vmem:[#allocation9 + $0x88] sm:$0xff]
    %v2695 = vld [vmem:[#allocation9 + $0x90] sm:$0xff]
    %v2696 = vld [vmem:[#allocation9 + $0x98] sm:$0xff]
    %v2697 = vld [vmem:[#allocation9 + $0xa0] sm:$0xff]
    %v2698 = vld [vmem:[#allocation9 + $0xa8] sm:$0xff]
    %v2699 = vld [vmem:[#allocation9 + $0xb0] sm:$0xff]
    %v2700 = vld [vmem:[#allocation9 + $0xb8] sm:$0xff]
    %v2701 = vld [vmem:[#allocation9 + $0xc0] sm:$0xff]
    %v2702 = vld [vmem:[#allocation9 + $0xc8] sm:$0xff]
    %v2703 = vld [vmem:[#allocation9 + $0xd0] sm:$0xff]
    %v2704 = vld [vmem:[#allocation9 + $0xd8] sm:$0xff]
    %v2705 = vld [vmem:[#allocation9 + $0xe0] sm:$0xff]
    %v2706 = vld [vmem:[#allocation9 + $0xe8] sm:$0xff]
    %v2707 = vld [vmem:[#allocation9 + $0xf0] sm:$0xff]
    %v2708 = vld [vmem:[#allocation9 + $0xf8] sm:$0xff]
    %v2741 = vunpack.c.l.b16 %v2677
    %v2742 = vunpack.c.h.b16 %v2677
    %v2743 = vunpack.c.l.b16 %v2678
    %v2744 = vunpack.c.h.b16 %v2678
    %v2745 = vunpack.c.l.b16 %v2679
    %v2746 = vunpack.c.h.b16 %v2679
    %v2747 = vunpack.c.l.b16 %v2680
    %v2748 = vunpack.c.h.b16 %v2680
    %v2749 = vunpack.c.l.b16 %v2681
    %v2750 = vunpack.c.h.b16 %v2681
    %v2751 = vunpack.c.l.b16 %v2682
    %v2752 = vunpack.c.h.b16 %v2682
    %v2753 = vunpack.c.l.b16 %v2683
    %v2754 = vunpack.c.h.b16 %v2683
    %v2755 = vunpack.c.l.b16 %v2684
    %v2756 = vunpack.c.h.b16 %v2684
    %v2757 = vunpack.c.l.b16 %v2685
    %v2758 = vunpack.c.h.b16 %v2685
    %v2759 = vunpack.c.l.b16 %v2686
    %v2760 = vunpack.c.h.b16 %v2686
    %v2761 = vunpack.c.l.b16 %v2687
    %v2762 = vunpack.c.h.b16 %v2687
    %v2763 = vunpack.c.l.b16 %v2688
    %v2764 = vunpack.c.h.b16 %v2688
    %v2765 = vunpack.c.l.b16 %v2689
    %v2766 = vunpack.c.h.b16 %v2689
    %v2767 = vunpack.c.l.b16 %v2690
    %v2768 = vunpack.c.h.b16 %v2690
    %v2769 = vunpack.c.l.b16 %v2691
    %v2770 = vunpack.c.h.b16 %v2691
    %v2771 = vunpack.c.l.b16 %v2692
    %v2772 = vunpack.c.h.b16 %v2692
    %v2773 = vunpack.c.l.b16 %v2693
    %v2774 = vunpack.c.h.b16 %v2693
    %v2775 = vunpack.c.l.b16 %v2694
    %v2776 = vunpack.c.h.b16 %v2694
    %v2777 = vunpack.c.l.b16 %v2695
    %v2778 = vunpack.c.h.b16 %v2695
    %v2779 = vunpack.c.l.b16 %v2696
    %v2780 = vunpack.c.h.b16 %v2696
    %v2781 = vunpack.c.l.b16 %v2697
    %v2782 = vunpack.c.h.b16 %v2697
    %v2783 = vunpack.c.l.b16 %v2698
    %v2784 = vunpack.c.h.b16 %v2698
    %v2785 = vunpack.c.l.b16 %v2699
    %v2786 = vunpack.c.h.b16 %v2699
    %v2787 = vunpack.c.l.b16 %v2700
    %v2788 = vunpack.c.h.b16 %v2700
    %v2789 = vunpack.c.l.b16 %v2701
    %v2790 = vunpack.c.h.b16 %v2701
    %v2791 = vunpack.c.l.b16 %v2702
    %v2792 = vunpack.c.h.b16 %v2702
    %v2793 = vunpack.c.l.b16 %v2703
    %v2794 = vunpack.c.h.b16 %v2703
    %v2795 = vunpack.c.l.b16 %v2704
    %v2796 = vunpack.c.h.b16 %v2704
    %v2797 = vunpack.c.l.b16 %v2705
    %v2798 = vunpack.c.h.b16 %v2705
    %v2799 = vunpack.c.l.b16 %v2706
    %v2800 = vunpack.c.h.b16 %v2706
    %v2801 = vunpack.c.l.b16 %v2707
    %v2802 = vunpack.c.h.b16 %v2707
    %v2803 = vunpack.c.l.b16 %v2708
    %v2804 = vunpack.c.h.b16 %v2708
    %v2805 = vpack.c.b16 %v2745, %v2741
    %v2806 = vpack.c.b16 %v2746, %v2742
    %v2807 = vpack.c.b16 %v2747, %v2743
    %v2808 = vpack.c.b16 %v2748, %v2744
    %v2809 = vpack.c.b16 %v2753, %v2749
    %v2810 = vpack.c.b16 %v2754, %v2750
    %v2811 = vpack.c.b16 %v2755, %v2751
    %v2812 = vpack.c.b16 %v2756, %v2752
    %v2813 = vpack.c.b16 %v2761, %v2757
    %v2814 = vpack.c.b16 %v2762, %v2758
    %v2815 = vpack.c.b16 %v2763, %v2759
    %v2816 = vpack.c.b16 %v2764, %v2760
    %v2817 = vpack.c.b16 %v2769, %v2765
    %v2818 = vpack.c.b16 %v2770, %v2766
    %v2819 = vpack.c.b16 %v2771, %v2767
    %v2820 = vpack.c.b16 %v2772, %v2768
    %v2821 = vpack.c.b16 %v2777, %v2773
    %v2822 = vpack.c.b16 %v2778, %v2774
    %v2823 = vpack.c.b16 %v2779, %v2775
    %v2824 = vpack.c.b16 %v2780, %v2776
    %v2825 = vpack.c.b16 %v2785, %v2781
    %v2826 = vpack.c.b16 %v2786, %v2782
    %v2827 = vpack.c.b16 %v2787, %v2783
    %v2828 = vpack.c.b16 %v2788, %v2784
    %v2829 = vpack.c.b16 %v2793, %v2789
    %v2830 = vpack.c.b16 %v2794, %v2790
    %v2831 = vpack.c.b16 %v2795, %v2791
    %v2832 = vpack.c.b16 %v2796, %v2792
    %v2833 = vpack.c.b16 %v2801, %v2797
    %v2834 = vpack.c.b16 %v2802, %v2798
    %v2835 = vpack.c.b16 %v2803, %v2799
    %v2836 = vpack.c.b16 %v2804, %v2800
    %2869 = vmatprep.subr.bf16.mxu0 %v2806
    %2870 = vmatpush1.bf16.msra.mxu0 %v2805
    %2871 = vmatprep.subr.bf16.mxu0 %v2810
    %2872 = vmatpush1.bf16.msra.mxu0 %v2809
    %2873 = vmatprep.subr.bf16.mxu0 %v2814
    %2874 = vmatpush1.bf16.msra.mxu0 %v2813
    %2875 = vmatprep.subr.bf16.mxu0 %v2818
    %2876 = vmatpush1.bf16.msra.mxu0 %v2817
    %2877 = vmatprep.subr.bf16.mxu0 %v2822
    %2878 = vmatpush1.bf16.msra.mxu0 %v2821
    %2879 = vmatprep.subr.bf16.mxu0 %v2826
    %2880 = vmatpush1.bf16.msra.mxu0 %v2825
    %2881 = vmatprep.subr.bf16.mxu0 %v2830
    %2882 = vmatpush1.bf16.msra.mxu0 %v2829
    %2883 = vmatprep.subr.bf16.mxu0 %v2834
    %2884 = vmatpush1.bf16.msra.mxu0 %v2833
    %2885 = vmatprep.subr.bf16.mxu0 0
    %2886 = vmatpush1.bf16.msra.mxu0 0
    %2887 = vmatprep.subr.bf16.mxu0 0
    %2888 = vmatpush1.bf16.msra.mxu0 0
    %2889 = vmatprep.subr.bf16.mxu0 0
    %2890 = vmatpush1.bf16.msra.mxu0 0
    %2891 = vmatprep.subr.bf16.mxu0 0
    %2892 = vmatpush1.bf16.msra.mxu0 0
    %2893 = vmatprep.subr.bf16.mxu0 0
    %2894 = vmatpush1.bf16.msra.mxu0 0
    %2895 = vmatprep.subr.bf16.mxu0 0
    %2896 = vmatpush1.bf16.msra.mxu0 0
    %2897 = vmatprep.subr.bf16.mxu0 0
    %2898 = vmatpush1.bf16.msra.mxu0 0
    %2899 = vmatprep.subr.bf16.mxu0 0
    %2900 = vmatpush1.bf16.msra.mxu0 0
    %2901 = vmatprep.mubr.bf16.mxu0 0
    %2902 = vmatmul.mubr.bf16.gmra.mrb[0].mxu0 %v2676
    %v2903 = vpop.f32.mrb[0].mxu0
    %v2904 = vadd.f32 0.0, %v2903
    %v2905 = vpop.f32.mrb[0].mxu0
    %v2906 = vadd.f32 0.0, %v2905
    %v2907 = vpop.f32.mrb[0].mxu0
    %v2908 = vpop.f32.mrb[0].mxu0
    %2909 = vdwg.mxu0
    %2910 = vmatprep.subr.bf16.mxu0 %v2808
    %2911 = vmatpush1.bf16.msra.mxu0 %v2807
    %2912 = vmatprep.subr.bf16.mxu0 %v2812
    %2913 = vmatpush1.bf16.msra.mxu0 %v2811
    %2914 = vmatprep.subr.bf16.mxu0 %v2816
    %2915 = vmatpush1.bf16.msra.mxu0 %v2815
    %2916 = vmatprep.subr.bf16.mxu0 %v2820
    %2917 = vmatpush1.bf16.msra.mxu0 %v2819
    %2918 = vmatprep.subr.bf16.mxu0 %v2824
    %2919 = vmatpush1.bf16.msra.mxu0 %v2823
    %2920 = vmatprep.subr.bf16.mxu0 %v2828
    %2921 = vmatpush1.bf16.msra.mxu0 %v2827
    %2922 = vmatprep.subr.bf16.mxu0 %v2832
    %2923 = vmatpush1.bf16.msra.mxu0 %v2831
    %2924 = vmatprep.subr.bf16.mxu0 %v2836
    %2925 = vmatpush1.bf16.msra.mxu0 %v2835
    %2926 = vmatprep.subr.bf16.mxu0 0
    %2927 = vmatpush1.bf16.msra.mxu0 0
    %2928 = vmatprep.subr.bf16.mxu0 0
    %2929 = vmatpush1.bf16.msra.mxu0 0
    %2930 = vmatprep.subr.bf16.mxu0 0
    %2931 = vmatpush1.bf16.msra.mxu0 0
    %2932 = vmatprep.subr.bf16.mxu0 0
    %2933 = vmatpush1.bf16.msra.mxu0 0
    %2934 = vmatprep.subr.bf16.mxu0 0
    %2935 = vmatpush1.bf16.msra.mxu0 0
    %2936 = vmatprep.subr.bf16.mxu0 0
    %2937 = vmatpush1.bf16.msra.mxu0 0
    %2938 = vmatprep.subr.bf16.mxu0 0
    %2939 = vmatpush1.bf16.msra.mxu0 0
    %2940 = vmatprep.subr.bf16.mxu0 0
    %2941 = vmatpush1.bf16.msra.mxu0 0
    %2942 = vmatprep.mubr.bf16.mxu0 0
    %2943 = vmatmul.mubr.bf16.gmra.mrb[0].mxu0 %v2676
    %v2944 = vpop.f32.mrb[0].mxu0
    %v2945 = vadd.f32 0.0, %v2944
    %v2946 = vpop.f32.mrb[0].mxu0
    %v2947 = vadd.f32 0.0, %v2946
    %v2948 = vpop.f32.mrb[0].mxu0
    %v2949 = vpop.f32.mrb[0].mxu0
    %2950 = vdwg.mxu0
    %v2951 = vadd.f32 %v2672, %v2904
    %v2952 = vadd.f32 %v2673, %v2906
    %v2953 = vadd.f32 %v2674, %v2945
    %v2954 = vadd.f32 %v2675, %v2947
    %v2955 = vxor.u32 %v2951, 2147483648
    %v2956 = vxor.u32 %v2952, 2147483648
    %v2957 = vxor.u32 %v2953, 2147483648
    %v2958 = vmul.f32 %v2955, 1.442695
    %v2959 = vpow.pop %v2958
    %v2960 = vmul.f32 %v2956, 1.442695
    %v2961 = vpow.pop %v2960
    %v2962 = vmul.f32 %v2957, 1.442695
    %v2963 = vpow.pop %v2962
    %v2964 = vadd.f32 %v2959, 1.0
    %v2965 = vadd.f32 %v2961, 1.0
    %v2966 = vadd.f32 %v2963, 1.0
    %v2967 = vrcp.pop %v2964
    %v2968 = vmul.f32 1.0, %v2967
    %v2969 = vrcp.pop %v2965
    %v2970 = vmul.f32 1.0, %v2969
    %v2971 = vrcp.pop %v2966
    %v2972 = vmul.f32 1.0, %v2971
    %v2973 = vtanh.pop %v2954
    %v2974 = vmul.f32 %v2970, %v2666
    %v2975 = vmul.f32 %v2968, %v2973
    %v2976 = vadd.f32 %v2974, %v2975
    %v2977 = vtanh.pop %v2976
    %v2978 = vmul.f32 %v2972, %v2977
    %s2979 = scalar_lea.vmem [#allocation3], 56
    %2980 = vst [vmem:[%s2979] sm:$0xff] %v2978
    %v2981 = vld [vmem:[#allocation3] sm:$0xff]
    %v2982 = vld [vmem:[#allocation3 + $0x8] sm:$0xff]
    %v2983 = vld [vmem:[#allocation3 + $0x10] sm:$0xff]
    %v2984 = vld [vmem:[#allocation3 + $0x18] sm:$0xff]
    %v2985 = vld [vmem:[#allocation3 + $0x20] sm:$0xff]
    %v2986 = vld [vmem:[#allocation3 + $0x28] sm:$0xff]
    %v2987 = vld [vmem:[#allocation3 + $0x30] sm:$0xff]
    %v2988 = vld [vmem:[#allocation3 + $0x38] sm:$0xff]
    %v2989 = vpack.c.bf16 %v2981, %v2981
    %v2990 = vpack.c.bf16 %v2982, %v2982
    %v2991 = vpack.c.bf16 %v2983, %v2983
    %v2992 = vpack.c.bf16 %v2984, %v2984
    %v2993 = vpack.c.bf16 %v2985, %v2985
    %v2994 = vpack.c.bf16 %v2986, %v2986
    %v2995 = vpack.c.bf16 %v2987, %v2987
    %v2996 = vpack.c.bf16 %v2988, %v2988
    %s2997 = scalar_lea.vmem [#allocation7], 256
    %v2998 = vld [vmem:[%s2997] sm:$0xff]
    %v2999 = vld [vmem:[%s2997 + $0x8] sm:$0xff]
    %v3000 = vld [vmem:[%s2997 + $0x10] sm:$0xff]
    %v3001 = vld [vmem:[%s2997 + $0x18] sm:$0xff]
    %v3002 = vld [vmem:[%s2997 + $0x20] sm:$0xff]
    %v3003 = vld [vmem:[%s2997 + $0x28] sm:$0xff]
    %v3004 = vld [vmem:[%s2997 + $0x30] sm:$0xff]
    %v3005 = vld [vmem:[%s2997 + $0x38] sm:$0xff]
    %v3006 = vld [vmem:[%s2997 + $0x40] sm:$0xff]
    %v3007 = vld [vmem:[%s2997 + $0x48] sm:$0xff]
    %v3008 = vld [vmem:[%s2997 + $0x50] sm:$0xff]
    %v3009 = vld [vmem:[%s2997 + $0x58] sm:$0xff]
    %v3010 = vld [vmem:[%s2997 + $0x60] sm:$0xff]
    %v3011 = vld [vmem:[%s2997 + $0x68] sm:$0xff]
    %v3012 = vld [vmem:[%s2997 + $0x70] sm:$0xff]
    %v3013 = vld [vmem:[%s2997 + $0x78] sm:$0xff]
    %v3014 = vld [vmem:[%s2997 + $0x80] sm:$0xff]
    %v3015 = vld [vmem:[%s2997 + $0x88] sm:$0xff]
    %v3016 = vld [vmem:[%s2997 + $0x90] sm:$0xff]
    %v3017 = vld [vmem:[%s2997 + $0x98] sm:$0xff]
    %v3018 = vld [vmem:[%s2997 + $0xa0] sm:$0xff]
    %v3019 = vld [vmem:[%s2997 + $0xa8] sm:$0xff]
    %v3020 = vld [vmem:[%s2997 + $0xb0] sm:$0xff]
    %v3021 = vld [vmem:[%s2997 + $0xb8] sm:$0xff]
    %v3022 = vld [vmem:[%s2997 + $0xc0] sm:$0xff]
    %v3023 = vld [vmem:[%s2997 + $0xc8] sm:$0xff]
    %v3024 = vld [vmem:[%s2997 + $0xd0] sm:$0xff]
    %v3025 = vld [vmem:[%s2997 + $0xd8] sm:$0xff]
    %v3026 = vld [vmem:[%s2997 + $0xe0] sm:$0xff]
    %v3027 = vld [vmem:[%s2997 + $0xe8] sm:$0xff]
    %v3028 = vld [vmem:[%s2997 + $0xf0] sm:$0xff]
    %v3029 = vld [vmem:[%s2997 + $0xf8] sm:$0xff]
    %s3030 = scalar_lea.vmem %s3, 4
    %v3031 = vld [vmem:[%s3030] sm:$0xf]
    %v3033 = vlaneseq
    %v3034 = vshrl.u32 %v3033, 7
    %v3035 = vsub.s32 0, %v3034
    %v3036 = vrot.slane %v3031, %v3035
    %v3037 = vlaneseq
    %v3038 = vshrl.u32 %v3037, 7
    %v3039 = vsub.s32 1, %v3038
    %v3040 = vrot.slane %v3031, %v3039
    %v3041 = vlaneseq
    %v3042 = vshrl.u32 %v3041, 7
    %v3043 = vsub.s32 2, %v3042
    %v3044 = vrot.slane %v3031, %v3043
    %v3045 = vlaneseq
    %v3046 = vshrl.u32 %v3045, 7
    %v3047 = vsub.s32 3, %v3046
    %v3048 = vrot.slane %v3031, %v3047
    %v3061 = vunpack.c.l.b16 %v2989
    %v3062 = vunpack.c.l.b16 %v2990
    %v3063 = vunpack.c.l.b16 %v2991
    %v3064 = vunpack.c.l.b16 %v2992
    %v3065 = vunpack.c.l.b16 %v2993
    %v3066 = vunpack.c.l.b16 %v2994
    %v3067 = vunpack.c.l.b16 %v2995
    %v3068 = vunpack.c.l.b16 %v2996
    %v3069 = vpack.c.b16 %v3062, %v3061
    %v3070 = vpack.c.b16 %v3064, %v3063
    %v3071 = vpack.c.b16 %v3066, %v3065
    %v3072 = vpack.c.b16 %v3068, %v3067
    %v3109 = vunpack.c.l.b16 %v2998
    %v3110 = vunpack.c.h.b16 %v2998
    %v3111 = vunpack.c.l.b16 %v2999
    %v3112 = vunpack.c.h.b16 %v2999
    %v3113 = vunpack.c.l.b16 %v3000
    %v3114 = vunpack.c.h.b16 %v3000
    %v3115 = vunpack.c.l.b16 %v3001
    %v3116 = vunpack.c.h.b16 %v3001
    %v3117 = vunpack.c.l.b16 %v3002
    %v3118 = vunpack.c.h.b16 %v3002
    %v3119 = vunpack.c.l.b16 %v3003
    %v3120 = vunpack.c.h.b16 %v3003
    %v3121 = vunpack.c.l.b16 %v3004
    %v3122 = vunpack.c.h.b16 %v3004
    %v3123 = vunpack.c.l.b16 %v3005
    %v3124 = vunpack.c.h.b16 %v3005
    %v3125 = vunpack.c.l.b16 %v3006
    %v3126 = vunpack.c.h.b16 %v3006
    %v3127 = vunpack.c.l.b16 %v3007
    %v3128 = vunpack.c.h.b16 %v3007
    %v3129 = vunpack.c.l.b16 %v3008
    %v3130 = vunpack.c.h.b16 %v3008
    %v3131 = vunpack.c.l.b16 %v3009
    %v3132 = vunpack.c.h.b16 %v3009
    %v3133 = vunpack.c.l.b16 %v3010
    %v3134 = vunpack.c.h.b16 %v3010
    %v3135 = vunpack.c.l.b16 %v3011
    %v3136 = vunpack.c.h.b16 %v3011
    %v3137 = vunpack.c.l.b16 %v3012
    %v3138 = vunpack.c.h.b16 %v3012
    %v3139 = vunpack.c.l.b16 %v3013
    %v3140 = vunpack.c.h.b16 %v3013
    %v3141 = vunpack.c.l.b16 %v3014
    %v3142 = vunpack.c.h.b16 %v3014
    %v3143 = vunpack.c.l.b16 %v3015
    %v3144 = vunpack.c.h.b16 %v3015
    %v3145 = vunpack.c.l.b16 %v3016
    %v3146 = vunpack.c.h.b16 %v3016
    %v3147 = vunpack.c.l.b16 %v3017
    %v3148 = vunpack.c.h.b16 %v3017
    %v3149 = vunpack.c.l.b16 %v3018
    %v3150 = vunpack.c.h.b16 %v3018
    %v3151 = vunpack.c.l.b16 %v3019
    %v3152 = vunpack.c.h.b16 %v3019
    %v3153 = vunpack.c.l.b16 %v3020
    %v3154 = vunpack.c.h.b16 %v3020
    %v3155 = vunpack.c.l.b16 %v3021
    %v3156 = vunpack.c.h.b16 %v3021
    %v3157 = vunpack.c.l.b16 %v3022
    %v3158 = vunpack.c.h.b16 %v3022
    %v3159 = vunpack.c.l.b16 %v3023
    %v3160 = vunpack.c.h.b16 %v3023
    %v3161 = vunpack.c.l.b16 %v3024
    %v3162 = vunpack.c.h.b16 %v3024
    %v3163 = vunpack.c.l.b16 %v3025
    %v3164 = vunpack.c.h.b16 %v3025
    %v3165 = vunpack.c.l.b16 %v3026
    %v3166 = vunpack.c.h.b16 %v3026
    %v3167 = vunpack.c.l.b16 %v3027
    %v3168 = vunpack.c.h.b16 %v3027
    %v3169 = vunpack.c.l.b16 %v3028
    %v3170 = vunpack.c.h.b16 %v3028
    %v3171 = vunpack.c.l.b16 %v3029
    %v3172 = vunpack.c.h.b16 %v3029
    %v3173 = vpack.c.b16 %v3113, %v3109
    %v3174 = vpack.c.b16 %v3114, %v3110
    %v3175 = vpack.c.b16 %v3115, %v3111
    %v3176 = vpack.c.b16 %v3116, %v3112
    %v3177 = vpack.c.b16 %v3121, %v3117
    %v3178 = vpack.c.b16 %v3122, %v3118
    %v3179 = vpack.c.b16 %v3123, %v3119
    %v3180 = vpack.c.b16 %v3124, %v3120
    %v3181 = vpack.c.b16 %v3129, %v3125
    %v3182 = vpack.c.b16 %v3130, %v3126
    %v3183 = vpack.c.b16 %v3131, %v3127
    %v3184 = vpack.c.b16 %v3132, %v3128
    %v3185 = vpack.c.b16 %v3137, %v3133
    %v3186 = vpack.c.b16 %v3138, %v3134
    %v3187 = vpack.c.b16 %v3139, %v3135
    %v3188 = vpack.c.b16 %v3140, %v3136
    %v3189 = vpack.c.b16 %v3145, %v3141
    %v3190 = vpack.c.b16 %v3146, %v3142
    %v3191 = vpack.c.b16 %v3147, %v3143
    %v3192 = vpack.c.b16 %v3148, %v3144
    %v3193 = vpack.c.b16 %v3153, %v3149
    %v3194 = vpack.c.b16 %v3154, %v3150
    %v3195 = vpack.c.b16 %v3155, %v3151
    %v3196 = vpack.c.b16 %v3156, %v3152
    %v3197 = vpack.c.b16 %v3161, %v3157
    %v3198 = vpack.c.b16 %v3162, %v3158
    %v3199 = vpack.c.b16 %v3163, %v3159
    %v3200 = vpack.c.b16 %v3164, %v3160
    %v3201 = vpack.c.b16 %v3169, %v3165
    %v3202 = vpack.c.b16 %v3170, %v3166
    %v3203 = vpack.c.b16 %v3171, %v3167
    %v3204 = vpack.c.b16 %v3172, %v3168
    %3237 = vmatprep.subr.bf16.mxu0 %v3174
    %3238 = vmatpush1.bf16.msra.mxu0 %v3173
    %3239 = vmatprep.subr.bf16.mxu0 %v3178
    %3240 = vmatpush1.bf16.msra.mxu0 %v3177
    %3241 = vmatprep.subr.bf16.mxu0 %v3182
    %3242 = vmatpush1.bf16.msra.mxu0 %v3181
    %3243 = vmatprep.subr.bf16.mxu0 %v3186
    %3244 = vmatpush1.bf16.msra.mxu0 %v3185
    %3245 = vmatprep.subr.bf16.mxu0 %v3190
    %3246 = vmatpush1.bf16.msra.mxu0 %v3189
    %3247 = vmatprep.subr.bf16.mxu0 %v3194
    %3248 = vmatpush1.bf16.msra.mxu0 %v3193
    %3249 = vmatprep.subr.bf16.mxu0 %v3198
    %3250 = vmatpush1.bf16.msra.mxu0 %v3197
    %3251 = vmatprep.subr.bf16.mxu0 %v3202
    %3252 = vmatpush1.bf16.msra.mxu0 %v3201
    %3253 = vmatprep.subr.bf16.mxu0 0
    %3254 = vmatpush1.bf16.msra.mxu0 0
    %3255 = vmatprep.subr.bf16.mxu0 0
    %3256 = vmatpush1.bf16.msra.mxu0 0
    %3257 = vmatprep.subr.bf16.mxu0 0
    %3258 = vmatpush1.bf16.msra.mxu0 0
    %3259 = vmatprep.subr.bf16.mxu0 0
    %3260 = vmatpush1.bf16.msra.mxu0 0
    %3261 = vmatprep.subr.bf16.mxu0 0
    %3262 = vmatpush1.bf16.msra.mxu0 0
    %3263 = vmatprep.subr.bf16.mxu0 0
    %3264 = vmatpush1.bf16.msra.mxu0 0
    %3265 = vmatprep.subr.bf16.mxu0 0
    %3266 = vmatpush1.bf16.msra.mxu0 0
    %3267 = vmatprep.subr.bf16.mxu0 0
    %3268 = vmatpush1.bf16.msra.mxu0 0
    %3269 = vmatprep.mubr.bf16.mxu0 0
    %3270 = vmatmul.mubr.bf16.gmra.mrb[0].mxu0 %v3069
    %v3271 = vpop.f32.mrb[0].mxu0
    %v3272 = vadd.f32 %v3036, %v3271
    %v3273 = vpop.f32.mrb[0].mxu0
    %v3274 = vadd.f32 %v3040, %v3273
    %v3275 = vpop.f32.mrb[0].mxu0
    %v3276 = vadd.f32 %v3036, %v3275
    %v3277 = vpop.f32.mrb[0].mxu0
    %v3278 = vadd.f32 %v3040, %v3277
    %3279 = vmatprep.mubr.bf16.mxu0 0
    %3280 = vmatmul.mubr.bf16.gmra.mrb[0].mxu0 %v3070
    %v3281 = vpop.f32.mrb[0].mxu0
    %v3282 = vadd.f32 %v3036, %v3281
    %v3283 = vpop.f32.mrb[0].mxu0
    %v3284 = vadd.f32 %v3040, %v3283
    %v3285 = vpop.f32.mrb[0].mxu0
    %v3286 = vadd.f32 %v3036, %v3285
    %v3287 = vpop.f32.mrb[0].mxu0
    %v3288 = vadd.f32 %v3040, %v3287
    %3289 = vmatprep.mubr.bf16.mxu0 0
    %3290 = vmatmul.mubr.bf16.gmra.mrb[0].mxu0 %v3071
    %v3291 = vpop.f32.mrb[0].mxu0
    %v3292 = vadd.f32 %v3036, %v3291
    %v3293 = vpop.f32.mrb[0].mxu0
    %v3294 = vadd.f32 %v3040, %v3293
    %v3295 = vpop.f32.mrb[0].mxu0
    %v3296 = vadd.f32 %v3036, %v3295
    %v3297 = vpop.f32.mrb[0].mxu0
    %v3298 = vadd.f32 %v3040, %v3297
    %3299 = vmatprep.mubr.bf16.mxu0 0
    %3300 = vmatmul.mubr.bf16.gmra.mrb[0].mxu0 %v3072
    %v3301 = vpop.f32.mrb[0].mxu0
    %v3302 = vadd.f32 %v3036, %v3301
    %v3303 = vpop.f32.mrb[0].mxu0
    %v3304 = vadd.f32 %v3040, %v3303
    %v3305 = vpop.f32.mrb[0].mxu0
    %v3306 = vadd.f32 %v3036, %v3305
    %v3307 = vpop.f32.mrb[0].mxu0
    %v3308 = vadd.f32 %v3040, %v3307
    %3309 = vdwg.mxu0
    %3310 = vmatprep.subr.bf16.mxu0 %v3176
    %3311 = vmatpush1.bf16.msra.mxu0 %v3175
    %3312 = vmatprep.subr.bf16.mxu0 %v3180
    %3313 = vmatpush1.bf16.msra.mxu0 %v3179
    %3314 = vmatprep.subr.bf16.mxu0 %v3184
    %3315 = vmatpush1.bf16.msra.mxu0 %v3183
    %3316 = vmatprep.subr.bf16.mxu0 %v3188
    %3317 = vmatpush1.bf16.msra.mxu0 %v3187
    %3318 = vmatprep.subr.bf16.mxu0 %v3192
    %3319 = vmatpush1.bf16.msra.mxu0 %v3191
    %3320 = vmatprep.subr.bf16.mxu0 %v3196
    %3321 = vmatpush1.bf16.msra.mxu0 %v3195
    %3322 = vmatprep.subr.bf16.mxu0 %v3200
    %3323 = vmatpush1.bf16.msra.mxu0 %v3199
    %3324 = vmatprep.subr.bf16.mxu0 %v3204
    %3325 = vmatpush1.bf16.msra.mxu0 %v3203
    %3326 = vmatprep.subr.bf16.mxu0 0
    %3327 = vmatpush1.bf16.msra.mxu0 0
    %3328 = vmatprep.subr.bf16.mxu0 0
    %3329 = vmatpush1.bf16.msra.mxu0 0
    %3330 = vmatprep.subr.bf16.mxu0 0
    %3331 = vmatpush1.bf16.msra.mxu0 0
    %3332 = vmatprep.subr.bf16.mxu0 0
    %3333 = vmatpush1.bf16.msra.mxu0 0
    %3334 = vmatprep.subr.bf16.mxu0 0
    %3335 = vmatpush1.bf16.msra.mxu0 0
    %3336 = vmatprep.subr.bf16.mxu0 0
    %3337 = vmatpush1.bf16.msra.mxu0 0
    %3338 = vmatprep.subr.bf16.mxu0 0
    %3339 = vmatpush1.bf16.msra.mxu0 0
    %3340 = vmatprep.subr.bf16.mxu0 0
    %3341 = vmatpush1.bf16.msra.mxu0 0
    %3342 = vmatprep.mubr.bf16.mxu0 0
    %3343 = vmatmul.mubr.bf16.gmra.mrb[0].mxu0 %v3069
    %v3344 = vpop.f32.mrb[0].mxu0
    %v3345 = vadd.f32 %v3044, %v3344
    %v3346 = vpop.f32.mrb[0].mxu0
    %v3347 = vadd.f32 %v3048, %v3346
    %v3348 = vpop.f32.mrb[0].mxu0
    %v3349 = vadd.f32 %v3044, %v3348
    %v3350 = vpop.f32.mrb[0].mxu0
    %v3351 = vadd.f32 %v3048, %v3350
    %3352 = vmatprep.mubr.bf16.mxu0 0
    %3353 = vmatmul.mubr.bf16.gmra.mrb[0].mxu0 %v3070
    %v3354 = vpop.f32.mrb[0].mxu0
    %v3355 = vadd.f32 %v3044, %v3354
    %v3356 = vpop.f32.mrb[0].mxu0
    %v3357 = vadd.f32 %v3048, %v3356
    %v3358 = vpop.f32.mrb[0].mxu0
    %v3359 = vadd.f32 %v3044, %v3358
    %v3360 = vpop.f32.mrb[0].mxu0
    %v3361 = vadd.f32 %v3048, %v3360
    %3362 = vmatprep.mubr.bf16.mxu0 0
    %3363 = vmatmul.mubr.bf16.gmra.mrb[0].mxu0 %v3071
    %v3364 = vpop.f32.mrb[0].mxu0
    %v3365 = vadd.f32 %v3044, %v3364
    %v3366 = vpop.f32.mrb[0].mxu0
    %v3367 = vadd.f32 %v3048, %v3366
    %v3368 = vpop.f32.mrb[0].mxu0
    %v3369 = vadd.f32 %v3044, %v3368
    %v3370 = vpop.f32.mrb[0].mxu0
    %v3371 = vadd.f32 %v3048, %v3370
    %3372 = vmatprep.mubr.bf16.mxu0 0
    %3373 = vmatmul.mubr.bf16.gmra.mrb[0].mxu0 %v3072
    %v3374 = vpop.f32.mrb[0].mxu0
    %v3375 = vadd.f32 %v3044, %v3374
    %v3376 = vpop.f32.mrb[0].mxu0
    %v3377 = vadd.f32 %v3048, %v3376
    %v3378 = vpop.f32.mrb[0].mxu0
    %v3379 = vadd.f32 %v3044, %v3378
    %v3380 = vpop.f32.mrb[0].mxu0
    %v3381 = vadd.f32 %v3048, %v3380
    %3382 = vdwg.mxu0
    %3383 = vst [vmem:[#allocation2] sm:$0xff] %v3272
    %3384 = vst [vmem:[#allocation2 + $0x8] sm:$0xff] %v3274
    %3385 = vst [vmem:[#allocation2 + $0x10] sm:$0xff] %v3345
    %3386 = vst [vmem:[#allocation2 + $0x18] sm:$0xff] %v3347
    %3387 = vst [vmem:[#allocation2 + $0x20] sm:$0xff] %v3276
    %3388 = vst [vmem:[#allocation2 + $0x28] sm:$0xff] %v3278
    %3389 = vst [vmem:[#allocation2 + $0x30] sm:$0xff] %v3349
    %3390 = vst [vmem:[#allocation2 + $0x38] sm:$0xff] %v3351
    %3391 = vst [vmem:[#allocation2 + $0x40] sm:$0xff] %v3282
    %3392 = vst [vmem:[#allocation2 + $0x48] sm:$0xff] %v3284
    %3393 = vst [vmem:[#allocation2 + $0x50] sm:$0xff] %v3355
    %3394 = vst [vmem:[#allocation2 + $0x58] sm:$0xff] %v3357
    %3395 = vst [vmem:[#allocation2 + $0x60] sm:$0xff] %v3286
    %3396 = vst [vmem:[#allocation2 + $0x68] sm:$0xff] %v3288
    %3397 = vst [vmem:[#allocation2 + $0x70] sm:$0xff] %v3359
    %3398 = vst [vmem:[#allocation2 + $0x78] sm:$0xff] %v3361
    %3399 = vst [vmem:[#allocation2 + $0x80] sm:$0xff] %v3292
    %3400 = vst [vmem:[#allocation2 + $0x88] sm:$0xff] %v3294
    %3401 = vst [vmem:[#allocation2 + $0x90] sm:$0xff] %v3365
    %3402 = vst [vmem:[#allocation2 + $0x98] sm:$0xff] %v3367
    %3403 = vst [vmem:[#allocation2 + $0xa0] sm:$0xff] %v3296
    %3404 = vst [vmem:[#allocation2 + $0xa8] sm:$0xff] %v3298
    %3405 = vst [vmem:[#allocation2 + $0xb0] sm:$0xff] %v3369
    %3406 = vst [vmem:[#allocation2 + $0xb8] sm:$0xff] %v3371
    %3407 = vst [vmem:[#allocation2 + $0xc0] sm:$0xff] %v3302
    %3408 = vst [vmem:[#allocation2 + $0xc8] sm:$0xff] %v3304
    %3409 = vst [vmem:[#allocation2 + $0xd0] sm:$0xff] %v3375
    %3410 = vst [vmem:[#allocation2 + $0xd8] sm:$0xff] %v3377
    %3411 = vst [vmem:[#allocation2 + $0xe0] sm:$0xff] %v3306
    %3412 = vst [vmem:[#allocation2 + $0xe8] sm:$0xff] %v3308
    %3413 = vst [vmem:[#allocation2 + $0xf0] sm:$0xff] %v3379
    %3414 = vst [vmem:[#allocation2 + $0xf8] sm:$0xff] %v3381
    %v3415 = vld [vmem:[#allocation2] sm:$0xff]
    %v3416 = vld [vmem:[#allocation2 + $0x8] sm:$0xff]
    %v3417 = vld [vmem:[#allocation2 + $0x10] sm:$0xff]
    %v3418 = vld [vmem:[#allocation2 + $0x18] sm:$0xff]
    %s3419 = scalar_lea.vmem [#allocation9], 256
    %v3420 = vld [vmem:[%s3419] sm:$0xff]
    %v3421 = vld [vmem:[%s3419 + $0x8] sm:$0xff]
    %v3422 = vld [vmem:[%s3419 + $0x10] sm:$0xff]
    %v3423 = vld [vmem:[%s3419 + $0x18] sm:$0xff]
    %v3424 = vld [vmem:[%s3419 + $0x20] sm:$0xff]
    %v3425 = vld [vmem:[%s3419 + $0x28] sm:$0xff]
    %v3426 = vld [vmem:[%s3419 + $0x30] sm:$0xff]
    %v3427 = vld [vmem:[%s3419 + $0x38] sm:$0xff]
    %v3428 = vld [vmem:[%s3419 + $0x40] sm:$0xff]
    %v3429 = vld [vmem:[%s3419 + $0x48] sm:$0xff]
    %v3430 = vld [vmem:[%s3419 + $0x50] sm:$0xff]
    %v3431 = vld [vmem:[%s3419 + $0x58] sm:$0xff]
    %v3432 = vld [vmem:[%s3419 + $0x60] sm:$0xff]
    %v3433 = vld [vmem:[%s3419 + $0x68] sm:$0xff]
    %v3434 = vld [vmem:[%s3419 + $0x70] sm:$0xff]
    %v3435 = vld [vmem:[%s3419 + $0x78] sm:$0xff]
    %v3436 = vld [vmem:[%s3419 + $0x80] sm:$0xff]
    %v3437 = vld [vmem:[%s3419 + $0x88] sm:$0xff]
    %v3438 = vld [vmem:[%s3419 + $0x90] sm:$0xff]
    %v3439 = vld [vmem:[%s3419 + $0x98] sm:$0xff]
    %v3440 = vld [vmem:[%s3419 + $0xa0] sm:$0xff]
    %v3441 = vld [vmem:[%s3419 + $0xa8] sm:$0xff]
    %v3442 = vld [vmem:[%s3419 + $0xb0] sm:$0xff]
    %v3443 = vld [vmem:[%s3419 + $0xb8] sm:$0xff]
    %v3444 = vld [vmem:[%s3419 + $0xc0] sm:$0xff]
    %v3445 = vld [vmem:[%s3419 + $0xc8] sm:$0xff]
    %v3446 = vld [vmem:[%s3419 + $0xd0] sm:$0xff]
    %v3447 = vld [vmem:[%s3419 + $0xd8] sm:$0xff]
    %v3448 = vld [vmem:[%s3419 + $0xe0] sm:$0xff]
    %v3449 = vld [vmem:[%s3419 + $0xe8] sm:$0xff]
    %v3450 = vld [vmem:[%s3419 + $0xf0] sm:$0xff]
    %v3451 = vld [vmem:[%s3419 + $0xf8] sm:$0xff]
    %v3484 = vunpack.c.l.b16 %v3420
    %v3485 = vunpack.c.h.b16 %v3420
    %v3486 = vunpack.c.l.b16 %v3421
    %v3487 = vunpack.c.h.b16 %v3421
    %v3488 = vunpack.c.l.b16 %v3422
    %v3489 = vunpack.c.h.b16 %v3422
    %v3490 = vunpack.c.l.b16 %v3423
    %v3491 = vunpack.c.h.b16 %v3423
    %v3492 = vunpack.c.l.b16 %v3424
    %v3493 = vunpack.c.h.b16 %v3424
    %v3494 = vunpack.c.l.b16 %v3425
    %v3495 = vunpack.c.h.b16 %v3425
    %v3496 = vunpack.c.l.b16 %v3426
    %v3497 = vunpack.c.h.b16 %v3426
    %v3498 = vunpack.c.l.b16 %v3427
    %v3499 = vunpack.c.h.b16 %v3427
    %v3500 = vunpack.c.l.b16 %v3428
    %v3501 = vunpack.c.h.b16 %v3428
    %v3502 = vunpack.c.l.b16 %v3429
    %v3503 = vunpack.c.h.b16 %v3429
    %v3504 = vunpack.c.l.b16 %v3430
    %v3505 = vunpack.c.h.b16 %v3430
    %v3506 = vunpack.c.l.b16 %v3431
    %v3507 = vunpack.c.h.b16 %v3431
    %v3508 = vunpack.c.l.b16 %v3432
    %v3509 = vunpack.c.h.b16 %v3432
    %v3510 = vunpack.c.l.b16 %v3433
    %v3511 = vunpack.c.h.b16 %v3433
    %v3512 = vunpack.c.l.b16 %v3434
    %v3513 = vunpack.c.h.b16 %v3434
    %v3514 = vunpack.c.l.b16 %v3435
    %v3515 = vunpack.c.h.b16 %v3435
    %v3516 = vunpack.c.l.b16 %v3436
    %v3517 = vunpack.c.h.b16 %v3436
    %v3518 = vunpack.c.l.b16 %v3437
    %v3519 = vunpack.c.h.b16 %v3437
    %v3520 = vunpack.c.l.b16 %v3438
    %v3521 = vunpack.c.h.b16 %v3438
    %v3522 = vunpack.c.l.b16 %v3439
    %v3523 = vunpack.c.h.b16 %v3439
    %v3524 = vunpack.c.l.b16 %v3440
    %v3525 = vunpack.c.h.b16 %v3440
    %v3526 = vunpack.c.l.b16 %v3441
    %v3527 = vunpack.c.h.b16 %v3441
    %v3528 = vunpack.c.l.b16 %v3442
    %v3529 = vunpack.c.h.b16 %v3442
    %v3530 = vunpack.c.l.b16 %v3443
    %v3531 = vunpack.c.h.b16 %v3443
    %v3532 = vunpack.c.l.b16 %v3444
    %v3533 = vunpack.c.h.b16 %v3444
    %v3534 = vunpack.c.l.b16 %v3445
    %v3535 = vunpack.c.h.b16 %v3445
    %v3536 = vunpack.c.l.b16 %v3446
    %v3537 = vunpack.c.h.b16 %v3446
    %v3538 = vunpack.c.l.b16 %v3447
    %v3539 = vunpack.c.h.b16 %v3447
    %v3540 = vunpack.c.l.b16 %v3448
    %v3541 = vunpack.c.h.b16 %v3448
    %v3542 = vunpack.c.l.b16 %v3449
    %v3543 = vunpack.c.h.b16 %v3449
    %v3544 = vunpack.c.l.b16 %v3450
    %v3545 = vunpack.c.h.b16 %v3450
    %v3546 = vunpack.c.l.b16 %v3451
    %v3547 = vunpack.c.h.b16 %v3451
    %v3548 = vpack.c.b16 %v3488, %v3484
    %v3549 = vpack.c.b16 %v3489, %v3485
    %v3550 = vpack.c.b16 %v3490, %v3486
    %v3551 = vpack.c.b16 %v3491, %v3487
    %v3552 = vpack.c.b16 %v3496, %v3492
    %v3553 = vpack.c.b16 %v3497, %v3493
    %v3554 = vpack.c.b16 %v3498, %v3494
    %v3555 = vpack.c.b16 %v3499, %v3495
    %v3556 = vpack.c.b16 %v3504, %v3500
    %v3557 = vpack.c.b16 %v3505, %v3501
    %v3558 = vpack.c.b16 %v3506, %v3502
    %v3559 = vpack.c.b16 %v3507, %v3503
    %v3560 = vpack.c.b16 %v3512, %v3508
    %v3561 = vpack.c.b16 %v3513, %v3509
    %v3562 = vpack.c.b16 %v3514, %v3510
    %v3563 = vpack.c.b16 %v3515, %v3511
    %v3564 = vpack.c.b16 %v3520, %v3516
    %v3565 = vpack.c.b16 %v3521, %v3517
    %v3566 = vpack.c.b16 %v3522, %v3518
    %v3567 = vpack.c.b16 %v3523, %v3519
    %v3568 = vpack.c.b16 %v3528, %v3524
    %v3569 = vpack.c.b16 %v3529, %v3525
    %v3570 = vpack.c.b16 %v3530, %v3526
    %v3571 = vpack.c.b16 %v3531, %v3527
    %v3572 = vpack.c.b16 %v3536, %v3532
    %v3573 = vpack.c.b16 %v3537, %v3533
    %v3574 = vpack.c.b16 %v3538, %v3534
    %v3575 = vpack.c.b16 %v3539, %v3535
    %v3576 = vpack.c.b16 %v3544, %v3540
    %v3577 = vpack.c.b16 %v3545, %v3541
    %v3578 = vpack.c.b16 %v3546, %v3542
    %v3579 = vpack.c.b16 %v3547, %v3543
    %3612 = vmatprep.subr.bf16.mxu0 %v3549
    %3613 = vmatpush1.bf16.msra.mxu0 %v3548
    %3614 = vmatprep.subr.bf16.mxu0 %v3553
    %3615 = vmatpush1.bf16.msra.mxu0 %v3552
    %3616 = vmatprep.subr.bf16.mxu0 %v3557
    %3617 = vmatpush1.bf16.msra.mxu0 %v3556
    %3618 = vmatprep.subr.bf16.mxu0 %v3561
    %3619 = vmatpush1.bf16.msra.mxu0 %v3560
    %3620 = vmatprep.subr.bf16.mxu0 %v3565
    %3621 = vmatpush1.bf16.msra.mxu0 %v3564
    %3622 = vmatprep.subr.bf16.mxu0 %v3569
    %3623 = vmatpush1.bf16.msra.mxu0 %v3568
    %3624 = vmatprep.subr.bf16.mxu0 %v3573
    %3625 = vmatpush1.bf16.msra.mxu0 %v3572
    %3626 = vmatprep.subr.bf16.mxu0 %v3577
    %3627 = vmatpush1.bf16.msra.mxu0 %v3576
    %3628 = vmatprep.subr.bf16.mxu0 0
    %3629 = vmatpush1.bf16.msra.mxu0 0
    %3630 = vmatprep.subr.bf16.mxu0 0
    %3631 = vmatpush1.bf16.msra.mxu0 0
    %3632 = vmatprep.subr.bf16.mxu0 0
    %3633 = vmatpush1.bf16.msra.mxu0 0
    %3634 = vmatprep.subr.bf16.mxu0 0
    %3635 = vmatpush1.bf16.msra.mxu0 0
    %3636 = vmatprep.subr.bf16.mxu0 0
    %3637 = vmatpush1.bf16.msra.mxu0 0
    %3638 = vmatprep.subr.bf16.mxu0 0
    %3639 = vmatpush1.bf16.msra.mxu0 0
    %3640 = vmatprep.subr.bf16.mxu0 0
    %3641 = vmatpush1.bf16.msra.mxu0 0
    %3642 = vmatprep.subr.bf16.mxu0 0
    %3643 = vmatpush1.bf16.msra.mxu0 0
    %3644 = vmatprep.mubr.bf16.mxu0 0
    %3645 = vmatmul.mubr.bf16.gmra.mrb[0].mxu0 0
    %v3646 = vpop.f32.mrb[0].mxu0
    %v3647 = vadd.f32 0.0, %v3646
    %v3648 = vpop.f32.mrb[0].mxu0
    %v3649 = vadd.f32 0.0, %v3648
    %v3650 = vpop.f32.mrb[0].mxu0
    %v3651 = vpop.f32.mrb[0].mxu0
    %3652 = vdwg.mxu0
    %3653 = vmatprep.subr.bf16.mxu0 %v3551
    %3654 = vmatpush1.bf16.msra.mxu0 %v3550
    %3655 = vmatprep.subr.bf16.mxu0 %v3555
    %3656 = vmatpush1.bf16.msra.mxu0 %v3554
    %3657 = vmatprep.subr.bf16.mxu0 %v3559
    %3658 = vmatpush1.bf16.msra.mxu0 %v3558
    %3659 = vmatprep.subr.bf16.mxu0 %v3563
    %3660 = vmatpush1.bf16.msra.mxu0 %v3562
    %3661 = vmatprep.subr.bf16.mxu0 %v3567
    %3662 = vmatpush1.bf16.msra.mxu0 %v3566
    %3663 = vmatprep.subr.bf16.mxu0 %v3571
    %3664 = vmatpush1.bf16.msra.mxu0 %v3570
    %3665 = vmatprep.subr.bf16.mxu0 %v3575
    %3666 = vmatpush1.bf16.msra.mxu0 %v3574
    %3667 = vmatprep.subr.bf16.mxu0 %v3579
    %3668 = vmatpush1.bf16.msra.mxu0 %v3578
    %3669 = vmatprep.subr.bf16.mxu0 0
    %3670 = vmatpush1.bf16.msra.mxu0 0
    %3671 = vmatprep.subr.bf16.mxu0 0
    %3672 = vmatpush1.bf16.msra.mxu0 0
    %3673 = vmatprep.subr.bf16.mxu0 0
    %3674 = vmatpush1.bf16.msra.mxu0 0
    %3675 = vmatprep.subr.bf16.mxu0 0
    %3676 = vmatpush1.bf16.msra.mxu0 0
    %3677 = vmatprep.subr.bf16.mxu0 0
    %3678 = vmatpush1.bf16.msra.mxu0 0
    %3679 = vmatprep.subr.bf16.mxu0 0
    %3680 = vmatpush1.bf16.msra.mxu0 0
    %3681 = vmatprep.subr.bf16.mxu0 0
    %3682 = vmatpush1.bf16.msra.mxu0 0
    %3683 = vmatprep.subr.bf16.mxu0 0
    %3684 = vmatpush1.bf16.msra.mxu0 0
    %3685 = vmatprep.mubr.bf16.mxu0 0
    %3686 = vmatmul.mubr.bf16.gmra.mrb[0].mxu0 0
    %v3687 = vpop.f32.mrb[0].mxu0
    %v3688 = vadd.f32 0.0, %v3687
    %v3689 = vpop.f32.mrb[0].mxu0
    %v3690 = vadd.f32 0.0, %v3689
    %v3691 = vpop.f32.mrb[0].mxu0
    %v3692 = vpop.f32.mrb[0].mxu0
    %3693 = vdwg.mxu0
    %v3694 = vadd.f32 %v3415, %v3647
    %v3695 = vadd.f32 %v3416, %v3649
    %v3696 = vadd.f32 %v3417, %v3688
    %v3697 = vadd.f32 %v3418, %v3690
    %v3698 = vxor.u32 %v3694, 2147483648
    %v3699 = vxor.u32 %v3695, 2147483648
    %v3700 = vxor.u32 %v3696, 2147483648
    %v3701 = vmul.f32 %v3698, 1.442695
    %v3702 = vpow.pop %v3701
    %v3703 = vmul.f32 %v3699, 1.442695
    %v3704 = vpow.pop %v3703
    %v3705 = vmul.f32 %v3700, 1.442695
    %v3706 = vpow.pop %v3705
    %v3707 = vadd.f32 %v3702, 1.0
    %v3708 = vadd.f32 %v3704, 1.0
    %v3709 = vadd.f32 %v3706, 1.0
    %v3710 = vrcp.pop %v3707
    %v3711 = vmul.f32 1.0, %v3710
    %v3712 = vrcp.pop %v3708
    %v3713 = vmul.f32 1.0, %v3712
    %v3714 = vrcp.pop %v3709
    %v3715 = vmul.f32 1.0, %v3714
    %v3716 = vtanh.pop %v3697
    %v3717 = vmul.f32 %v3713, 0.0
    %v3718 = vmul.f32 %v3711, %v3716
    %v3719 = vadd.f32 %v3717, %v3718
    %v3720 = vtanh.pop %v3719
    %v3721 = vmul.f32 %v3715, %v3720
    %v3722 = vld [vmem:[%s811] sm:$0xff]
    %v3723 = vld [vmem:[%s811 + $0x8] sm:$0xff]
    %v3724 = vld [vmem:[%s811 + $0x10] sm:$0xff]
    %v3725 = vld [vmem:[%s811 + $0x18] sm:$0xff]
    %v3726 = vpack.c.bf16 %v3721, %v3721
    %3727 = vmatprep.subr.bf16.mxu0 %v3549
    %3728 = vmatpush1.bf16.msra.mxu0 %v3548
    %3729 = vmatprep.subr.bf16.mxu0 %v3553
    %3730 = vmatpush1.bf16.msra.mxu0 %v3552
    %3731 = vmatprep.subr.bf16.mxu0 %v3557
    %3732 = vmatpush1.bf16.msra.mxu0 %v3556
    %3733 = vmatprep.subr.bf16.mxu0 %v3561
    %3734 = vmatpush1.bf16.msra.mxu0 %v3560
    %3735 = vmatprep.subr.bf16.mxu0 %v3565
    %3736 = vmatpush1.bf16.msra.mxu0 %v3564
    %3737 = vmatprep.subr.bf16.mxu0 %v3569
    %3738 = vmatpush1.bf16.msra.mxu0 %v3568
    %3739 = vmatprep.subr.bf16.mxu0 %v3573
    %3740 = vmatpush1.bf16.msra.mxu0 %v3572
    %3741 = vmatprep.subr.bf16.mxu0 %v3577
    %3742 = vmatpush1.bf16.msra.mxu0 %v3576
    %3743 = vmatprep.subr.bf16.mxu0 0
    %3744 = vmatpush1.bf16.msra.mxu0 0
    %3745 = vmatprep.subr.bf16.mxu0 0
    %3746 = vmatpush1.bf16.msra.mxu0 0
    %3747 = vmatprep.subr.bf16.mxu0 0
    %3748 = vmatpush1.bf16.msra.mxu0 0
    %3749 = vmatprep.subr.bf16.mxu0 0
    %3750 = vmatpush1.bf16.msra.mxu0 0
    %3751 = vmatprep.subr.bf16.mxu0 0
    %3752 = vmatpush1.bf16.msra.mxu0 0
    %3753 = vmatprep.subr.bf16.mxu0 0
    %3754 = vmatpush1.bf16.msra.mxu0 0
    %3755 = vmatprep.subr.bf16.mxu0 0
    %3756 = vmatpush1.bf16.msra.mxu0 0
    %3757 = vmatprep.subr.bf16.mxu0 0
    %3758 = vmatpush1.bf16.msra.mxu0 0
    %3759 = vmatprep.mubr.bf16.mxu0 0
    %3760 = vmatmul.mubr.bf16.gmra.mrb[0].mxu0 %v3726
    %v3761 = vpop.f32.mrb[0].mxu0
    %v3762 = vadd.f32 0.0, %v3761
    %v3763 = vpop.f32.mrb[0].mxu0
    %v3764 = vadd.f32 0.0, %v3763
    %v3765 = vpop.f32.mrb[0].mxu0
    %v3766 = vpop.f32.mrb[0].mxu0
    %3767 = vdwg.mxu0
    %3768 = vmatprep.subr.bf16.mxu0 %v3551
    %3769 = vmatpush1.bf16.msra.mxu0 %v3550
    %3770 = vmatprep.subr.bf16.mxu0 %v3555
    %3771 = vmatpush1.bf16.msra.mxu0 %v3554
    %3772 = vmatprep.subr.bf16.mxu0 %v3559
    %3773 = vmatpush1.bf16.msra.mxu0 %v3558
    %3774 = vmatprep.subr.bf16.mxu0 %v3563
    %3775 = vmatpush1.bf16.msra.mxu0 %v3562
    %3776 = vmatprep.subr.bf16.mxu0 %v3567
    %3777 = vmatpush1.bf16.msra.mxu0 %v3566
    %3778 = vmatprep.subr.bf16.mxu0 %v3571
    %3779 = vmatpush1.bf16.msra.mxu0 %v3570
    %3780 = vmatprep.subr.bf16.mxu0 %v3575
    %3781 = vmatpush1.bf16.msra.mxu0 %v3574
    %3782 = vmatprep.subr.bf16.mxu0 %v3579
    %3783 = vmatpush1.bf16.msra.mxu0 %v3578
    %3784 = vmatprep.subr.bf16.mxu0 0
    %3785 = vmatpush1.bf16.msra.mxu0 0
    %3786 = vmatprep.subr.bf16.mxu0 0
    %3787 = vmatpush1.bf16.msra.mxu0 0
    %3788 = vmatprep.subr.bf16.mxu0 0
    %3789 = vmatpush1.bf16.msra.mxu0 0
    %3790 = vmatprep.subr.bf16.mxu0 0
    %3791 = vmatpush1.bf16.msra.mxu0 0
    %3792 = vmatprep.subr.bf16.mxu0 0
    %3793 = vmatpush1.bf16.msra.mxu0 0
    %3794 = vmatprep.subr.bf16.mxu0 0
    %3795 = vmatpush1.bf16.msra.mxu0 0
    %3796 = vmatprep.subr.bf16.mxu0 0
    %3797 = vmatpush1.bf16.msra.mxu0 0
    %3798 = vmatprep.subr.bf16.mxu0 0
    %3799 = vmatpush1.bf16.msra.mxu0 0
    %3800 = vmatprep.mubr.bf16.mxu0 0
    %3801 = vmatmul.mubr.bf16.gmra.mrb[0].mxu0 %v3726
    %v3802 = vpop.f32.mrb[0].mxu0
    %v3803 = vadd.f32 0.0, %v3802
    %v3804 = vpop.f32.mrb[0].mxu0
    %v3805 = vadd.f32 0.0, %v3804
    %v3806 = vpop.f32.mrb[0].mxu0
    %v3807 = vpop.f32.mrb[0].mxu0
    %3808 = vdwg.mxu0
    %v3809 = vadd.f32 %v3722, %v3762
    %v3810 = vadd.f32 %v3723, %v3764
    %v3811 = vadd.f32 %v3724, %v3803
    %v3812 = vadd.f32 %v3725, %v3805
    %v3813 = vxor.u32 %v3809, 2147483648
    %v3814 = vxor.u32 %v3810, 2147483648
    %v3815 = vxor.u32 %v3811, 2147483648
    %v3816 = vmul.f32 %v3813, 1.442695
    %v3817 = vpow.pop %v3816
    %v3818 = vmul.f32 %v3814, 1.442695
    %v3819 = vpow.pop %v3818
    %v3820 = vmul.f32 %v3815, 1.442695
    %v3821 = vpow.pop %v3820
    %v3822 = vadd.f32 %v3817, 1.0
    %v3823 = vadd.f32 %v3819, 1.0
    %v3824 = vadd.f32 %v3821, 1.0
    %v3825 = vrcp.pop %v3822
    %v3826 = vmul.f32 1.0, %v3825
    %v3827 = vrcp.pop %v3823
    %v3828 = vmul.f32 1.0, %v3827
    %v3829 = vrcp.pop %v3824
    %v3830 = vmul.f32 1.0, %v3829
    %v3831 = vtanh.pop %v3812
    %v3832 = vmul.f32 %v3828, %v3719
    %v3833 = vmul.f32 %v3826, %v3831
    %v3834 = vadd.f32 %v3832, %v3833
    %v3835 = vtanh.pop %v3834
    %v3836 = vmul.f32 %v3830, %v3835
    %v3837 = vld [vmem:[%s1121] sm:$0xff]
    %v3838 = vld [vmem:[%s1121 + $0x8] sm:$0xff]
    %v3839 = vld [vmem:[%s1121 + $0x10] sm:$0xff]
    %v3840 = vld [vmem:[%s1121 + $0x18] sm:$0xff]
    %v3841 = vpack.c.bf16 %v3836, %v3836
    %3842 = vmatprep.subr.bf16.mxu0 %v3549
    %3843 = vmatpush1.bf16.msra.mxu0 %v3548
    %3844 = vmatprep.subr.bf16.mxu0 %v3553
    %3845 = vmatpush1.bf16.msra.mxu0 %v3552
    %3846 = vmatprep.subr.bf16.mxu0 %v3557
    %3847 = vmatpush1.bf16.msra.mxu0 %v3556
    %3848 = vmatprep.subr.bf16.mxu0 %v3561
    %3849 = vmatpush1.bf16.msra.mxu0 %v3560
    %3850 = vmatprep.subr.bf16.mxu0 %v3565
    %3851 = vmatpush1.bf16.msra.mxu0 %v3564
    %3852 = vmatprep.subr.bf16.mxu0 %v3569
    %3853 = vmatpush1.bf16.msra.mxu0 %v3568
    %3854 = vmatprep.subr.bf16.mxu0 %v3573
    %3855 = vmatpush1.bf16.msra.mxu0 %v3572
    %3856 = vmatprep.subr.bf16.mxu0 %v3577
    %3857 = vmatpush1.bf16.msra.mxu0 %v3576
    %3858 = vmatprep.subr.bf16.mxu0 0
    %3859 = vmatpush1.bf16.msra.mxu0 0
    %3860 = vmatprep.subr.bf16.mxu0 0
    %3861 = vmatpush1.bf16.msra.mxu0 0
    %3862 = vmatprep.subr.bf16.mxu0 0
    %3863 = vmatpush1.bf16.msra.mxu0 0
    %3864 = vmatprep.subr.bf16.mxu0 0
    %3865 = vmatpush1.bf16.msra.mxu0 0
    %3866 = vmatprep.subr.bf16.mxu0 0
    %3867 = vmatpush1.bf16.msra.mxu0 0
    %3868 = vmatprep.subr.bf16.mxu0 0
    %3869 = vmatpush1.bf16.msra.mxu0 0
    %3870 = vmatprep.subr.bf16.mxu0 0
    %3871 = vmatpush1.bf16.msra.mxu0 0
    %3872 = vmatprep.subr.bf16.mxu0 0
    %3873 = vmatpush1.bf16.msra.mxu0 0
    %3874 = vmatprep.mubr.bf16.mxu0 0
    %3875 = vmatmul.mubr.bf16.gmra.mrb[0].mxu0 %v3841
    %v3876 = vpop.f32.mrb[0].mxu0
    %v3877 = vadd.f32 0.0, %v3876
    %v3878 = vpop.f32.mrb[0].mxu0
    %v3879 = vadd.f32 0.0, %v3878
    %v3880 = vpop.f32.mrb[0].mxu0
    %v3881 = vpop.f32.mrb[0].mxu0
    %3882 = vdwg.mxu0
    %3883 = vmatprep.subr.bf16.mxu0 %v3551
    %3884 = vmatpush1.bf16.msra.mxu0 %v3550
    %3885 = vmatprep.subr.bf16.mxu0 %v3555
    %3886 = vmatpush1.bf16.msra.mxu0 %v3554
    %3887 = vmatprep.subr.bf16.mxu0 %v3559
    %3888 = vmatpush1.bf16.msra.mxu0 %v3558
    %3889 = vmatprep.subr.bf16.mxu0 %v3563
    %3890 = vmatpush1.bf16.msra.mxu0 %v3562
    %3891 = vmatprep.subr.bf16.mxu0 %v3567
    %3892 = vmatpush1.bf16.msra.mxu0 %v3566
    %3893 = vmatprep.subr.bf16.mxu0 %v3571
    %3894 = vmatpush1.bf16.msra.mxu0 %v3570
    %3895 = vmatprep.subr.bf16.mxu0 %v3575
    %3896 = vmatpush1.bf16.msra.mxu0 %v3574
    %3897 = vmatprep.subr.bf16.mxu0 %v3579
    %3898 = vmatpush1.bf16.msra.mxu0 %v3578
    %3899 = vmatprep.subr.bf16.mxu0 0
    %3900 = vmatpush1.bf16.msra.mxu0 0
    %3901 = vmatprep.subr.bf16.mxu0 0
    %3902 = vmatpush1.bf16.msra.mxu0 0
    %3903 = vmatprep.subr.bf16.mxu0 0
    %3904 = vmatpush1.bf16.msra.mxu0 0
    %3905 = vmatprep.subr.bf16.mxu0 0
    %3906 = vmatpush1.bf16.msra.mxu0 0
    %3907 = vmatprep.subr.bf16.mxu0 0
    %3908 = vmatpush1.bf16.msra.mxu0 0
    %3909 = vmatprep.subr.bf16.mxu0 0
    %3910 = vmatpush1.bf16.msra.mxu0 0
    %3911 = vmatprep.subr.bf16.mxu0 0
    %3912 = vmatpush1.bf16.msra.mxu0 0
    %3913 = vmatprep.subr.bf16.mxu0 0
    %3914 = vmatpush1.bf16.msra.mxu0 0
    %3915 = vmatprep.mubr.bf16.mxu0 0
    %3916 = vmatmul.mubr.bf16.gmra.mrb[0].mxu0 %v3841
    %v3917 = vpop.f32.mrb[0].mxu0
    %v3918 = vadd.f32 0.0, %v3917
    %v3919 = vpop.f32.mrb[0].mxu0
    %v3920 = vadd.f32 0.0, %v3919
    %v3921 = vpop.f32.mrb[0].mxu0
    %v3922 = vpop.f32.mrb[0].mxu0
    %3923 = vdwg.mxu0
    %v3924 = vadd.f32 %v3837, %v3877
    %v3925 = vadd.f32 %v3838, %v3879
    %v3926 = vadd.f32 %v3839, %v3918
    %v3927 = vadd.f32 %v3840, %v3920
    %v3928 = vxor.u32 %v3924, 2147483648
    %v3929 = vxor.u32 %v3925, 2147483648
    %v3930 = vxor.u32 %v3926, 2147483648
    %v3931 = vmul.f32 %v3928, 1.442695
    %v3932 = vpow.pop %v3931
    %v3933 = vmul.f32 %v3929, 1.442695
    %v3934 = vpow.pop %v3933
    %v3935 = vmul.f32 %v3930, 1.442695
    %v3936 = vpow.pop %v3935
    %v3937 = vadd.f32 %v3932, 1.0
    %v3938 = vadd.f32 %v3934, 1.0
    %v3939 = vadd.f32 %v3936, 1.0
    %v3940 = vrcp.pop %v3937
    %v3941 = vmul.f32 1.0, %v3940
    %v3942 = vrcp.pop %v3938
    %v3943 = vmul.f32 1.0, %v3942
    %v3944 = vrcp.pop %v3939
    %v3945 = vmul.f32 1.0, %v3944
    %v3946 = vtanh.pop %v3927
    %v3947 = vmul.f32 %v3943, %v3834
    %v3948 = vmul.f32 %v3941, %v3946
    %v3949 = vadd.f32 %v3947, %v3948
    %v3950 = vtanh.pop %v3949
    %v3951 = vmul.f32 %v3945, %v3950
    %v3952 = vld [vmem:[%s1431] sm:$0xff]
    %v3953 = vld [vmem:[%s1431 + $0x8] sm:$0xff]
    %v3954 = vld [vmem:[%s1431 + $0x10] sm:$0xff]
    %v3955 = vld [vmem:[%s1431 + $0x18] sm:$0xff]
    %v3956 = vpack.c.bf16 %v3951, %v3951
    %3957 = vmatprep.subr.bf16.mxu0 %v3549
    %3958 = vmatpush1.bf16.msra.mxu0 %v3548
    %3959 = vmatprep.subr.bf16.mxu0 %v3553
    %3960 = vmatpush1.bf16.msra.mxu0 %v3552
    %3961 = vmatprep.subr.bf16.mxu0 %v3557
    %3962 = vmatpush1.bf16.msra.mxu0 %v3556
    %3963 = vmatprep.subr.bf16.mxu0 %v3561
    %3964 = vmatpush1.bf16.msra.mxu0 %v3560
    %3965 = vmatprep.subr.bf16.mxu0 %v3565
    %3966 = vmatpush1.bf16.msra.mxu0 %v3564
    %3967 = vmatprep.subr.bf16.mxu0 %v3569
    %3968 = vmatpush1.bf16.msra.mxu0 %v3568
    %3969 = vmatprep.subr.bf16.mxu0 %v3573
    %3970 = vmatpush1.bf16.msra.mxu0 %v3572
    %3971 = vmatprep.subr.bf16.mxu0 %v3577
    %3972 = vmatpush1.bf16.msra.mxu0 %v3576
    %3973 = vmatprep.subr.bf16.mxu0 0
    %3974 = vmatpush1.bf16.msra.mxu0 0
    %3975 = vmatprep.subr.bf16.mxu0 0
    %3976 = vmatpush1.bf16.msra.mxu0 0
    %3977 = vmatprep.subr.bf16.mxu0 0
    %3978 = vmatpush1.bf16.msra.mxu0 0
    %3979 = vmatprep.subr.bf16.mxu0 0
    %3980 = vmatpush1.bf16.msra.mxu0 0
    %3981 = vmatprep.subr.bf16.mxu0 0
    %3982 = vmatpush1.bf16.msra.mxu0 0
    %3983 = vmatprep.subr.bf16.mxu0 0
    %3984 = vmatpush1.bf16.msra.mxu0 0
    %3985 = vmatprep.subr.bf16.mxu0 0
    %3986 = vmatpush1.bf16.msra.mxu0 0
    %3987 = vmatprep.subr.bf16.mxu0 0
    %3988 = vmatpush1.bf16.msra.mxu0 0
    %3989 = vmatprep.mubr.bf16.mxu0 0
    %3990 = vmatmul.mubr.bf16.gmra.mrb[0].mxu0 %v3956
    %v3991 = vpop.f32.mrb[0].mxu0
    %v3992 = vadd.f32 0.0, %v3991
    %v3993 = vpop.f32.mrb[0].mxu0
    %v3994 = vadd.f32 0.0, %v3993
    %v3995 = vpop.f32.mrb[0].mxu0
    %v3996 = vpop.f32.mrb[0].mxu0
    %3997 = vdwg.mxu0
    %3998 = vmatprep.subr.bf16.mxu0 %v3551
    %3999 = vmatpush1.bf16.msra.mxu0 %v3550
    %4000 = vmatprep.subr.bf16.mxu0 %v3555
    %4001 = vmatpush1.bf16.msra.mxu0 %v3554
    %4002 = vmatprep.subr.bf16.mxu0 %v3559
    %4003 = vmatpush1.bf16.msra.mxu0 %v3558
    %4004 = vmatprep.subr.bf16.mxu0 %v3563
    %4005 = vmatpush1.bf16.msra.mxu0 %v3562
    %4006 = vmatprep.subr.bf16.mxu0 %v3567
    %4007 = vmatpush1.bf16.msra.mxu0 %v3566
    %4008 = vmatprep.subr.bf16.mxu0 %v3571
    %4009 = vmatpush1.bf16.msra.mxu0 %v3570
    %4010 = vmatprep.subr.bf16.mxu0 %v3575
    %4011 = vmatpush1.bf16.msra.mxu0 %v3574
    %4012 = vmatprep.subr.bf16.mxu0 %v3579
    %4013 = vmatpush1.bf16.msra.mxu0 %v3578
    %4014 = vmatprep.subr.bf16.mxu0 0
    %4015 = vmatpush1.bf16.msra.mxu0 0
    %4016 = vmatprep.subr.bf16.mxu0 0
    %4017 = vmatpush1.bf16.msra.mxu0 0
    %4018 = vmatprep.subr.bf16.mxu0 0
    %4019 = vmatpush1.bf16.msra.mxu0 0
    %4020 = vmatprep.subr.bf16.mxu0 0
    %4021 = vmatpush1.bf16.msra.mxu0 0
    %4022 = vmatprep.subr.bf16.mxu0 0
    %4023 = vmatpush1.bf16.msra.mxu0 0
    %4024 = vmatprep.subr.bf16.mxu0 0
    %4025 = vmatpush1.bf16.msra.mxu0 0
    %4026 = vmatprep.subr.bf16.mxu0 0
    %4027 = vmatpush1.bf16.msra.mxu0 0
    %4028 = vmatprep.subr.bf16.mxu0 0
    %4029 = vmatpush1.bf16.msra.mxu0 0
    %4030 = vmatprep.mubr.bf16.mxu0 0
    %4031 = vmatmul.mubr.bf16.gmra.mrb[0].mxu0 %v3956
    %v4032 = vpop.f32.mrb[0].mxu0
    %v4033 = vadd.f32 0.0, %v4032
    %v4034 = vpop.f32.mrb[0].mxu0
    %v4035 = vadd.f32 0.0, %v4034
    %v4036 = vpop.f32.mrb[0].mxu0
    %v4037 = vpop.f32.mrb[0].mxu0
    %4038 = vdwg.mxu0
    %v4039 = vadd.f32 %v3952, %v3992
    %v4040 = vadd.f32 %v3953, %v3994
    %v4041 = vadd.f32 %v3954, %v4033
    %v4042 = vadd.f32 %v3955, %v4035
    %v4043 = vxor.u32 %v4039, 2147483648
    %v4044 = vxor.u32 %v4040, 2147483648
    %v4045 = vxor.u32 %v4041, 2147483648
    %v4046 = vmul.f32 %v4043, 1.442695
    %v4047 = vpow.pop %v4046
    %v4048 = vmul.f32 %v4044, 1.442695
    %v4049 = vpow.pop %v4048
    %v4050 = vmul.f32 %v4045, 1.442695
    %v4051 = vpow.pop %v4050
    %v4052 = vadd.f32 %v4047, 1.0
    %v4053 = vadd.f32 %v4049, 1.0
    %v4054 = vadd.f32 %v4051, 1.0
    %v4055 = vrcp.pop %v4052
    %v4056 = vmul.f32 1.0, %v4055
    %v4057 = vrcp.pop %v4053
    %v4058 = vmul.f32 1.0, %v4057
    %v4059 = vrcp.pop %v4054
    %v4060 = vmul.f32 1.0, %v4059
    %v4061 = vtanh.pop %v4042
    %v4062 = vmul.f32 %v4058, %v3949
    %v4063 = vmul.f32 %v4056, %v4061
    %v4064 = vadd.f32 %v4062, %v4063
    %v4065 = vtanh.pop %v4064
    %v4066 = vmul.f32 %v4060, %v4065
    %v4067 = vld [vmem:[%s1741] sm:$0xff]
    %v4068 = vld [vmem:[%s1741 + $0x8] sm:$0xff]
    %v4069 = vld [vmem:[%s1741 + $0x10] sm:$0xff]
    %v4070 = vld [vmem:[%s1741 + $0x18] sm:$0xff]
    %v4071 = vpack.c.bf16 %v4066, %v4066
    %4072 = vmatprep.subr.bf16.mxu0 %v3549
    %4073 = vmatpush1.bf16.msra.mxu0 %v3548
    %4074 = vmatprep.subr.bf16.mxu0 %v3553
    %4075 = vmatpush1.bf16.msra.mxu0 %v3552
    %4076 = vmatprep.subr.bf16.mxu0 %v3557
    %4077 = vmatpush1.bf16.msra.mxu0 %v3556
    %4078 = vmatprep.subr.bf16.mxu0 %v3561
    %4079 = vmatpush1.bf16.msra.mxu0 %v3560
    %4080 = vmatprep.subr.bf16.mxu0 %v3565
    %4081 = vmatpush1.bf16.msra.mxu0 %v3564
    %4082 = vmatprep.subr.bf16.mxu0 %v3569
    %4083 = vmatpush1.bf16.msra.mxu0 %v3568
    %4084 = vmatprep.subr.bf16.mxu0 %v3573
    %4085 = vmatpush1.bf16.msra.mxu0 %v3572
    %4086 = vmatprep.subr.bf16.mxu0 %v3577
    %4087 = vmatpush1.bf16.msra.mxu0 %v3576
    %4088 = vmatprep.subr.bf16.mxu0 0
    %4089 = vmatpush1.bf16.msra.mxu0 0
    %4090 = vmatprep.subr.bf16.mxu0 0
    %4091 = vmatpush1.bf16.msra.mxu0 0
    %4092 = vmatprep.subr.bf16.mxu0 0
    %4093 = vmatpush1.bf16.msra.mxu0 0
    %4094 = vmatprep.subr.bf16.mxu0 0
    %4095 = vmatpush1.bf16.msra.mxu0 0
    %4096 = vmatprep.subr.bf16.mxu0 0
    %4097 = vmatpush1.bf16.msra.mxu0 0
    %4098 = vmatprep.subr.bf16.mxu0 0
    %4099 = vmatpush1.bf16.msra.mxu0 0
    %4100 = vmatprep.subr.bf16.mxu0 0
    %4101 = vmatpush1.bf16.msra.mxu0 0
    %4102 = vmatprep.subr.bf16.mxu0 0
    %4103 = vmatpush1.bf16.msra.mxu0 0
    %4104 = vmatprep.mubr.bf16.mxu0 0
    %4105 = vmatmul.mubr.bf16.gmra.mrb[0].mxu0 %v4071
    %v4106 = vpop.f32.mrb[0].mxu0
    %v4107 = vadd.f32 0.0, %v4106
    %v4108 = vpop.f32.mrb[0].mxu0
    %v4109 = vadd.f32 0.0, %v4108
    %v4110 = vpop.f32.mrb[0].mxu0
    %v4111 = vpop.f32.mrb[0].mxu0
    %4112 = vdwg.mxu0
    %4113 = vmatprep.subr.bf16.mxu0 %v3551
    %4114 = vmatpush1.bf16.msra.mxu0 %v3550
    %4115 = vmatprep.subr.bf16.mxu0 %v3555
    %4116 = vmatpush1.bf16.msra.mxu0 %v3554
    %4117 = vmatprep.subr.bf16.mxu0 %v3559
    %4118 = vmatpush1.bf16.msra.mxu0 %v3558
    %4119 = vmatprep.subr.bf16.mxu0 %v3563
    %4120 = vmatpush1.bf16.msra.mxu0 %v3562
    %4121 = vmatprep.subr.bf16.mxu0 %v3567
    %4122 = vmatpush1.bf16.msra.mxu0 %v3566
    %4123 = vmatprep.subr.bf16.mxu0 %v3571
    %4124 = vmatpush1.bf16.msra.mxu0 %v3570
    %4125 = vmatprep.subr.bf16.mxu0 %v3575
    %4126 = vmatpush1.bf16.msra.mxu0 %v3574
    %4127 = vmatprep.subr.bf16.mxu0 %v3579
    %4128 = vmatpush1.bf16.msra.mxu0 %v3578
    %4129 = vmatprep.subr.bf16.mxu0 0
    %4130 = vmatpush1.bf16.msra.mxu0 0
    %4131 = vmatprep.subr.bf16.mxu0 0
    %4132 = vmatpush1.bf16.msra.mxu0 0
    %4133 = vmatprep.subr.bf16.mxu0 0
    %4134 = vmatpush1.bf16.msra.mxu0 0
    %4135 = vmatprep.subr.bf16.mxu0 0
    %4136 = vmatpush1.bf16.msra.mxu0 0
    %4137 = vmatprep.subr.bf16.mxu0 0
    %4138 = vmatpush1.bf16.msra.mxu0 0
    %4139 = vmatprep.subr.bf16.mxu0 0
    %4140 = vmatpush1.bf16.msra.mxu0 0
    %4141 = vmatprep.subr.bf16.mxu0 0
    %4142 = vmatpush1.bf16.msra.mxu0 0
    %4143 = vmatprep.subr.bf16.mxu0 0
    %4144 = vmatpush1.bf16.msra.mxu0 0
    %4145 = vmatprep.mubr.bf16.mxu0 0
    %4146 = vmatmul.mubr.bf16.gmra.mrb[0].mxu0 %v4071
    %v4147 = vpop.f32.mrb[0].mxu0
    %v4148 = vadd.f32 0.0, %v4147
    %v4149 = vpop.f32.mrb[0].mxu0
    %v4150 = vadd.f32 0.0, %v4149
    %v4151 = vpop.f32.mrb[0].mxu0
    %v4152 = vpop.f32.mrb[0].mxu0
    %4153 = vdwg.mxu0
    %v4154 = vadd.f32 %v4067, %v4107
    %v4155 = vadd.f32 %v4068, %v4109
    %v4156 = vadd.f32 %v4069, %v4148
    %v4157 = vadd.f32 %v4070, %v4150
    %v4158 = vxor.u32 %v4154, 2147483648
    %v4159 = vxor.u32 %v4155, 2147483648
    %v4160 = vxor.u32 %v4156, 2147483648
    %v4161 = vmul.f32 %v4158, 1.442695
    %v4162 = vpow.pop %v4161
    %v4163 = vmul.f32 %v4159, 1.442695
    %v4164 = vpow.pop %v4163
    %v4165 = vmul.f32 %v4160, 1.442695
    %v4166 = vpow.pop %v4165
    %v4167 = vadd.f32 %v4162, 1.0
    %v4168 = vadd.f32 %v4164, 1.0
    %v4169 = vadd.f32 %v4166, 1.0
    %v4170 = vrcp.pop %v4167
    %v4171 = vmul.f32 1.0, %v4170
    %v4172 = vrcp.pop %v4168
    %v4173 = vmul.f32 1.0, %v4172
    %v4174 = vrcp.pop %v4169
    %v4175 = vmul.f32 1.0, %v4174
    %v4176 = vtanh.pop %v4157
    %v4177 = vmul.f32 %v4173, %v4064
    %v4178 = vmul.f32 %v4171, %v4176
    %v4179 = vadd.f32 %v4177, %v4178
    %v4180 = vtanh.pop %v4179
    %v4181 = vmul.f32 %v4175, %v4180
    %v4182 = vld [vmem:[%s2051] sm:$0xff]
    %v4183 = vld [vmem:[%s2051 + $0x8] sm:$0xff]
    %v4184 = vld [vmem:[%s2051 + $0x10] sm:$0xff]
    %v4185 = vld [vmem:[%s2051 + $0x18] sm:$0xff]
    %v4186 = vpack.c.bf16 %v4181, %v4181
    %4187 = vmatprep.subr.bf16.mxu0 %v3549
    %4188 = vmatpush1.bf16.msra.mxu0 %v3548
    %4189 = vmatprep.subr.bf16.mxu0 %v3553
    %4190 = vmatpush1.bf16.msra.mxu0 %v3552
    %4191 = vmatprep.subr.bf16.mxu0 %v3557
    %4192 = vmatpush1.bf16.msra.mxu0 %v3556
    %4193 = vmatprep.subr.bf16.mxu0 %v3561
    %4194 = vmatpush1.bf16.msra.mxu0 %v3560
    %4195 = vmatprep.subr.bf16.mxu0 %v3565
    %4196 = vmatpush1.bf16.msra.mxu0 %v3564
    %4197 = vmatprep.subr.bf16.mxu0 %v3569
    %4198 = vmatpush1.bf16.msra.mxu0 %v3568
    %4199 = vmatprep.subr.bf16.mxu0 %v3573
    %4200 = vmatpush1.bf16.msra.mxu0 %v3572
    %4201 = vmatprep.subr.bf16.mxu0 %v3577
    %4202 = vmatpush1.bf16.msra.mxu0 %v3576
    %4203 = vmatprep.subr.bf16.mxu0 0
    %4204 = vmatpush1.bf16.msra.mxu0 0
    %4205 = vmatprep.subr.bf16.mxu0 0
    %4206 = vmatpush1.bf16.msra.mxu0 0
    %4207 = vmatprep.subr.bf16.mxu0 0
    %4208 = vmatpush1.bf16.msra.mxu0 0
    %4209 = vmatprep.subr.bf16.mxu0 0
    %4210 = vmatpush1.bf16.msra.mxu0 0
    %4211 = vmatprep.subr.bf16.mxu0 0
    %4212 = vmatpush1.bf16.msra.mxu0 0
    %4213 = vmatprep.subr.bf16.mxu0 0
    %4214 = vmatpush1.bf16.msra.mxu0 0
    %4215 = vmatprep.subr.bf16.mxu0 0
    %4216 = vmatpush1.bf16.msra.mxu0 0
    %4217 = vmatprep.subr.bf16.mxu0 0
    %4218 = vmatpush1.bf16.msra.mxu0 0
    %4219 = vmatprep.mubr.bf16.mxu0 0
    %4220 = vmatmul.mubr.bf16.gmra.mrb[0].mxu0 %v4186
    %v4221 = vpop.f32.mrb[0].mxu0
    %v4222 = vadd.f32 0.0, %v4221
    %v4223 = vpop.f32.mrb[0].mxu0
    %v4224 = vadd.f32 0.0, %v4223
    %v4225 = vpop.f32.mrb[0].mxu0
    %v4226 = vpop.f32.mrb[0].mxu0
    %4227 = vdwg.mxu0
    %4228 = vmatprep.subr.bf16.mxu0 %v3551
    %4229 = vmatpush1.bf16.msra.mxu0 %v3550
    %4230 = vmatprep.subr.bf16.mxu0 %v3555
    %4231 = vmatpush1.bf16.msra.mxu0 %v3554
    %4232 = vmatprep.subr.bf16.mxu0 %v3559
    %4233 = vmatpush1.bf16.msra.mxu0 %v3558
    %4234 = vmatprep.subr.bf16.mxu0 %v3563
    %4235 = vmatpush1.bf16.msra.mxu0 %v3562
    %4236 = vmatprep.subr.bf16.mxu0 %v3567
    %4237 = vmatpush1.bf16.msra.mxu0 %v3566
    %4238 = vmatprep.subr.bf16.mxu0 %v3571
    %4239 = vmatpush1.bf16.msra.mxu0 %v3570
    %4240 = vmatprep.subr.bf16.mxu0 %v3575
    %4241 = vmatpush1.bf16.msra.mxu0 %v3574
    %4242 = vmatprep.subr.bf16.mxu0 %v3579
    %4243 = vmatpush1.bf16.msra.mxu0 %v3578
    %4244 = vmatprep.subr.bf16.mxu0 0
    %4245 = vmatpush1.bf16.msra.mxu0 0
    %4246 = vmatprep.subr.bf16.mxu0 0
    %4247 = vmatpush1.bf16.msra.mxu0 0
    %4248 = vmatprep.subr.bf16.mxu0 0
    %4249 = vmatpush1.bf16.msra.mxu0 0
    %4250 = vmatprep.subr.bf16.mxu0 0
    %4251 = vmatpush1.bf16.msra.mxu0 0
    %4252 = vmatprep.subr.bf16.mxu0 0
    %4253 = vmatpush1.bf16.msra.mxu0 0
    %4254 = vmatprep.subr.bf16.mxu0 0
    %4255 = vmatpush1.bf16.msra.mxu0 0
    %4256 = vmatprep.subr.bf16.mxu0 0
    %4257 = vmatpush1.bf16.msra.mxu0 0
    %4258 = vmatprep.subr.bf16.mxu0 0
    %4259 = vmatpush1.bf16.msra.mxu0 0
    %4260 = vmatprep.mubr.bf16.mxu0 0
    %4261 = vmatmul.mubr.bf16.gmra.mrb[0].mxu0 %v4186
    %v4262 = vpop.f32.mrb[0].mxu0
    %v4263 = vadd.f32 0.0, %v4262
    %v4264 = vpop.f32.mrb[0].mxu0
    %v4265 = vadd.f32 0.0, %v4264
    %v4266 = vpop.f32.mrb[0].mxu0
    %v4267 = vpop.f32.mrb[0].mxu0
    %4268 = vdwg.mxu0
    %v4269 = vadd.f32 %v4182, %v4222
    %v4270 = vadd.f32 %v4183, %v4224
    %v4271 = vadd.f32 %v4184, %v4263
    %v4272 = vadd.f32 %v4185, %v4265
    %v4273 = vxor.u32 %v4269, 2147483648
    %v4274 = vxor.u32 %v4270, 2147483648
    %v4275 = vxor.u32 %v4271, 2147483648
    %v4276 = vmul.f32 %v4273, 1.442695
    %v4277 = vpow.pop %v4276
    %v4278 = vmul.f32 %v4274, 1.442695
    %v4279 = vpow.pop %v4278
    %v4280 = vmul.f32 %v4275, 1.442695
    %v4281 = vpow.pop %v4280
    %v4282 = vadd.f32 %v4277, 1.0
    %v4283 = vadd.f32 %v4279, 1.0
    %v4284 = vadd.f32 %v4281, 1.0
    %v4285 = vrcp.pop %v4282
    %v4286 = vmul.f32 1.0, %v4285
    %v4287 = vrcp.pop %v4283
    %v4288 = vmul.f32 1.0, %v4287
    %v4289 = vrcp.pop %v4284
    %v4290 = vmul.f32 1.0, %v4289
    %v4291 = vtanh.pop %v4272
    %v4292 = vmul.f32 %v4288, %v4179
    %v4293 = vmul.f32 %v4286, %v4291
    %v4294 = vadd.f32 %v4292, %v4293
    %v4295 = vtanh.pop %v4294
    %v4296 = vmul.f32 %v4290, %v4295
    %v4297 = vld [vmem:[%s2361] sm:$0xff]
    %v4298 = vld [vmem:[%s2361 + $0x8] sm:$0xff]
    %v4299 = vld [vmem:[%s2361 + $0x10] sm:$0xff]
    %v4300 = vld [vmem:[%s2361 + $0x18] sm:$0xff]
    %v4301 = vpack.c.bf16 %v4296, %v4296
    %4302 = vmatprep.subr.bf16.mxu0 %v3549
    %4303 = vmatpush1.bf16.msra.mxu0 %v3548
    %4304 = vmatprep.subr.bf16.mxu0 %v3553
    %4305 = vmatpush1.bf16.msra.mxu0 %v3552
    %4306 = vmatprep.subr.bf16.mxu0 %v3557
    %4307 = vmatpush1.bf16.msra.mxu0 %v3556
    %4308 = vmatprep.subr.bf16.mxu0 %v3561
    %4309 = vmatpush1.bf16.msra.mxu0 %v3560
    %4310 = vmatprep.subr.bf16.mxu0 %v3565
    %4311 = vmatpush1.bf16.msra.mxu0 %v3564
    %4312 = vmatprep.subr.bf16.mxu0 %v3569
    %4313 = vmatpush1.bf16.msra.mxu0 %v3568
    %4314 = vmatprep.subr.bf16.mxu0 %v3573
    %4315 = vmatpush1.bf16.msra.mxu0 %v3572
    %4316 = vmatprep.subr.bf16.mxu0 %v3577
    %4317 = vmatpush1.bf16.msra.mxu0 %v3576
    %4318 = vmatprep.subr.bf16.mxu0 0
    %4319 = vmatpush1.bf16.msra.mxu0 0
    %4320 = vmatprep.subr.bf16.mxu0 0
    %4321 = vmatpush1.bf16.msra.mxu0 0
    %4322 = vmatprep.subr.bf16.mxu0 0
    %4323 = vmatpush1.bf16.msra.mxu0 0
    %4324 = vmatprep.subr.bf16.mxu0 0
    %4325 = vmatpush1.bf16.msra.mxu0 0
    %4326 = vmatprep.subr.bf16.mxu0 0
    %4327 = vmatpush1.bf16.msra.mxu0 0
    %4328 = vmatprep.subr.bf16.mxu0 0
    %4329 = vmatpush1.bf16.msra.mxu0 0
    %4330 = vmatprep.subr.bf16.mxu0 0
    %4331 = vmatpush1.bf16.msra.mxu0 0
    %4332 = vmatprep.subr.bf16.mxu0 0
    %4333 = vmatpush1.bf16.msra.mxu0 0
    %4334 = vmatprep.mubr.bf16.mxu0 0
    %4335 = vmatmul.mubr.bf16.gmra.mrb[0].mxu0 %v4301
    %v4336 = vpop.f32.mrb[0].mxu0
    %v4337 = vadd.f32 0.0, %v4336
    %v4338 = vpop.f32.mrb[0].mxu0
    %v4339 = vadd.f32 0.0, %v4338
    %v4340 = vpop.f32.mrb[0].mxu0
    %v4341 = vpop.f32.mrb[0].mxu0
    %4342 = vdwg.mxu0
    %4343 = vmatprep.subr.bf16.mxu0 %v3551
    %4344 = vmatpush1.bf16.msra.mxu0 %v3550
    %4345 = vmatprep.subr.bf16.mxu0 %v3555
    %4346 = vmatpush1.bf16.msra.mxu0 %v3554
    %4347 = vmatprep.subr.bf16.mxu0 %v3559
    %4348 = vmatpush1.bf16.msra.mxu0 %v3558
    %4349 = vmatprep.subr.bf16.mxu0 %v3563
    %4350 = vmatpush1.bf16.msra.mxu0 %v3562
    %4351 = vmatprep.subr.bf16.mxu0 %v3567
    %4352 = vmatpush1.bf16.msra.mxu0 %v3566
    %4353 = vmatprep.subr.bf16.mxu0 %v3571
    %4354 = vmatpush1.bf16.msra.mxu0 %v3570
    %4355 = vmatprep.subr.bf16.mxu0 %v3575
    %4356 = vmatpush1.bf16.msra.mxu0 %v3574
    %4357 = vmatprep.subr.bf16.mxu0 %v3579
    %4358 = vmatpush1.bf16.msra.mxu0 %v3578
    %4359 = vmatprep.subr.bf16.mxu0 0
    %4360 = vmatpush1.bf16.msra.mxu0 0
    %4361 = vmatprep.subr.bf16.mxu0 0
    %4362 = vmatpush1.bf16.msra.mxu0 0
    %4363 = vmatprep.subr.bf16.mxu0 0
    %4364 = vmatpush1.bf16.msra.mxu0 0
    %4365 = vmatprep.subr.bf16.mxu0 0
    %4366 = vmatpush1.bf16.msra.mxu0 0
    %4367 = vmatprep.subr.bf16.mxu0 0
    %4368 = vmatpush1.bf16.msra.mxu0 0
    %4369 = vmatprep.subr.bf16.mxu0 0
    %4370 = vmatpush1.bf16.msra.mxu0 0
    %4371 = vmatprep.subr.bf16.mxu0 0
    %4372 = vmatpush1.bf16.msra.mxu0 0
    %4373 = vmatprep.subr.bf16.mxu0 0
    %4374 = vmatpush1.bf16.msra.mxu0 0
    %4375 = vmatprep.mubr.bf16.mxu0 0
    %4376 = vmatmul.mubr.bf16.gmra.mrb[0].mxu0 %v4301
    %v4377 = vpop.f32.mrb[0].mxu0
    %v4378 = vadd.f32 0.0, %v4377
    %v4379 = vpop.f32.mrb[0].mxu0
    %v4380 = vadd.f32 0.0, %v4379
    %v4381 = vpop.f32.mrb[0].mxu0
    %v4382 = vpop.f32.mrb[0].mxu0
    %4383 = vdwg.mxu0
    %v4384 = vadd.f32 %v4297, %v4337
    %v4385 = vadd.f32 %v4298, %v4339
    %v4386 = vadd.f32 %v4299, %v4378
    %v4387 = vadd.f32 %v4300, %v4380
    %v4388 = vxor.u32 %v4384, 2147483648
    %v4389 = vxor.u32 %v4385, 2147483648
    %v4390 = vxor.u32 %v4386, 2147483648
    %v4391 = vmul.f32 %v4388, 1.442695
    %v4392 = vpow.pop %v4391
    %v4393 = vmul.f32 %v4389, 1.442695
    %v4394 = vpow.pop %v4393
    %v4395 = vmul.f32 %v4390, 1.442695
    %v4396 = vpow.pop %v4395
    %v4397 = vadd.f32 %v4392, 1.0
    %v4398 = vadd.f32 %v4394, 1.0
    %v4399 = vadd.f32 %v4396, 1.0
    %v4400 = vrcp.pop %v4397
    %v4401 = vmul.f32 1.0, %v4400
    %v4402 = vrcp.pop %v4398
    %v4403 = vmul.f32 1.0, %v4402
    %v4404 = vrcp.pop %v4399
    %v4405 = vmul.f32 1.0, %v4404
    %v4406 = vtanh.pop %v4387
    %v4407 = vmul.f32 %v4403, %v4294
    %v4408 = vmul.f32 %v4401, %v4406
    %v4409 = vadd.f32 %v4407, %v4408
    %v4410 = vtanh.pop %v4409
    %v4411 = vmul.f32 %v4405, %v4410
    %v4412 = vld [vmem:[%s2671] sm:$0xff]
    %v4413 = vld [vmem:[%s2671 + $0x8] sm:$0xff]
    %v4414 = vld [vmem:[%s2671 + $0x10] sm:$0xff]
    %v4415 = vld [vmem:[%s2671 + $0x18] sm:$0xff]
    %v4416 = vpack.c.bf16 %v4411, %v4411
    %4417 = vmatprep.subr.bf16.mxu0 %v3549
    %4418 = vmatpush1.bf16.msra.mxu0 %v3548
    %4419 = vmatprep.subr.bf16.mxu0 %v3553
    %4420 = vmatpush1.bf16.msra.mxu0 %v3552
    %4421 = vmatprep.subr.bf16.mxu0 %v3557
    %4422 = vmatpush1.bf16.msra.mxu0 %v3556
    %4423 = vmatprep.subr.bf16.mxu0 %v3561
    %4424 = vmatpush1.bf16.msra.mxu0 %v3560
    %4425 = vmatprep.subr.bf16.mxu0 %v3565
    %4426 = vmatpush1.bf16.msra.mxu0 %v3564
    %4427 = vmatprep.subr.bf16.mxu0 %v3569
    %4428 = vmatpush1.bf16.msra.mxu0 %v3568
    %4429 = vmatprep.subr.bf16.mxu0 %v3573
    %4430 = vmatpush1.bf16.msra.mxu0 %v3572
    %4431 = vmatprep.subr.bf16.mxu0 %v3577
    %4432 = vmatpush1.bf16.msra.mxu0 %v3576
    %4433 = vmatprep.subr.bf16.mxu0 0
    %4434 = vmatpush1.bf16.msra.mxu0 0
    %4435 = vmatprep.subr.bf16.mxu0 0
    %4436 = vmatpush1.bf16.msra.mxu0 0
    %4437 = vmatprep.subr.bf16.mxu0 0
    %4438 = vmatpush1.bf16.msra.mxu0 0
    %4439 = vmatprep.subr.bf16.mxu0 0
    %4440 = vmatpush1.bf16.msra.mxu0 0
    %4441 = vmatprep.subr.bf16.mxu0 0
    %4442 = vmatpush1.bf16.msra.mxu0 0
    %4443 = vmatprep.subr.bf16.mxu0 0
    %4444 = vmatpush1.bf16.msra.mxu0 0
    %4445 = vmatprep.subr.bf16.mxu0 0
    %4446 = vmatpush1.bf16.msra.mxu0 0
    %4447 = vmatprep.subr.bf16.mxu0 0
    %4448 = vmatpush1.bf16.msra.mxu0 0
    %4449 = vmatprep.mubr.bf16.mxu0 0
    %4450 = vmatmul.mubr.bf16.gmra.mrb[0].mxu0 %v4416
    %v4451 = vpop.f32.mrb[0].mxu0
    %v4452 = vadd.f32 0.0, %v4451
    %v4453 = vpop.f32.mrb[0].mxu0
    %v4454 = vadd.f32 0.0, %v4453
    %v4455 = vpop.f32.mrb[0].mxu0
    %v4456 = vpop.f32.mrb[0].mxu0
    %4457 = vdwg.mxu0
    %4458 = vmatprep.subr.bf16.mxu0 %v3551
    %4459 = vmatpush1.bf16.msra.mxu0 %v3550
    %4460 = vmatprep.subr.bf16.mxu0 %v3555
    %4461 = vmatpush1.bf16.msra.mxu0 %v3554
    %4462 = vmatprep.subr.bf16.mxu0 %v3559
    %4463 = vmatpush1.bf16.msra.mxu0 %v3558
    %4464 = vmatprep.subr.bf16.mxu0 %v3563
    %4465 = vmatpush1.bf16.msra.mxu0 %v3562
    %4466 = vmatprep.subr.bf16.mxu0 %v3567
    %4467 = vmatpush1.bf16.msra.mxu0 %v3566
    %4468 = vmatprep.subr.bf16.mxu0 %v3571
    %4469 = vmatpush1.bf16.msra.mxu0 %v3570
    %4470 = vmatprep.subr.bf16.mxu0 %v3575
    %4471 = vmatpush1.bf16.msra.mxu0 %v3574
    %4472 = vmatprep.subr.bf16.mxu0 %v3579
    %4473 = vmatpush1.bf16.msra.mxu0 %v3578
    %4474 = vmatprep.subr.bf16.mxu0 0
    %4475 = vmatpush1.bf16.msra.mxu0 0
    %4476 = vmatprep.subr.bf16.mxu0 0
    %4477 = vmatpush1.bf16.msra.mxu0 0
    %4478 = vmatprep.subr.bf16.mxu0 0
    %4479 = vmatpush1.bf16.msra.mxu0 0
    %4480 = vmatprep.subr.bf16.mxu0 0
    %4481 = vmatpush1.bf16.msra.mxu0 0
    %4482 = vmatprep.subr.bf16.mxu0 0
    %4483 = vmatpush1.bf16.msra.mxu0 0
    %4484 = vmatprep.subr.bf16.mxu0 0
    %4485 = vmatpush1.bf16.msra.mxu0 0
    %4486 = vmatprep.subr.bf16.mxu0 0
    %4487 = vmatpush1.bf16.msra.mxu0 0
    %4488 = vmatprep.subr.bf16.mxu0 0
    %4489 = vmatpush1.bf16.msra.mxu0 0
    %4490 = vmatprep.mubr.bf16.mxu0 0
    %4491 = vmatmul.mubr.bf16.gmra.mrb[0].mxu0 %v4416
    %v4492 = vpop.f32.mrb[0].mxu0
    %v4493 = vadd.f32 0.0, %v4492
    %v4494 = vpop.f32.mrb[0].mxu0
    %v4495 = vadd.f32 0.0, %v4494
    %v4496 = vpop.f32.mrb[0].mxu0
    %v4497 = vpop.f32.mrb[0].mxu0
    %4498 = vdwg.mxu0
    %v4499 = vadd.f32 %v4412, %v4452
    %v4500 = vadd.f32 %v4413, %v4454
    %v4501 = vadd.f32 %v4414, %v4493
    %v4502 = vadd.f32 %v4415, %v4495
    %v4503 = vxor.u32 %v4499, 2147483648
    %v4504 = vxor.u32 %v4500, 2147483648
    %v4505 = vxor.u32 %v4501, 2147483648
    %v4506 = vmul.f32 %v4503, 1.442695
    %v4507 = vpow.pop %v4506
    %v4508 = vmul.f32 %v4504, 1.442695
    %v4509 = vpow.pop %v4508
    %v4510 = vmul.f32 %v4505, 1.442695
    %v4511 = vpow.pop %v4510
    %v4512 = vadd.f32 %v4507, 1.0
    %v4513 = vadd.f32 %v4509, 1.0
    %v4514 = vadd.f32 %v4511, 1.0
    %v4515 = vrcp.pop %v4512
    %v4516 = vmul.f32 1.0, %v4515
    %v4517 = vrcp.pop %v4513
    %v4518 = vmul.f32 1.0, %v4517
    %v4519 = vrcp.pop %v4514
    %v4520 = vmul.f32 1.0, %v4519
    %v4521 = vtanh.pop %v4502
    %v4522 = vmul.f32 %v4518, %v4409
    %v4523 = vmul.f32 %v4516, %v4521
    %v4524 = vadd.f32 %v4522, %v4523
    %v4525 = vtanh.pop %v4524
    %v4526 = vmul.f32 %v4520, %v4525
    %v4527 = vpack.c.bf16 %v4526, %v4526
    %v4528 = vld [vmem:[#allocation10] sm:$0xf]
    %v4529 = vld [vmem:[#allocation10 + $0x4] sm:$0xf]
    %v4530 = vld [vmem:[#allocation10 + $0x8] sm:$0xf]
    %v4531 = vld [vmem:[#allocation10 + $0xc] sm:$0xf]
    %v4532 = vld [vmem:[#allocation10 + $0x10] sm:$0xf]
    %v4533 = vld [vmem:[#allocation10 + $0x14] sm:$0xf]
    %v4534 = vld [vmem:[#allocation10 + $0x18] sm:$0xf]
    %v4535 = vld [vmem:[#allocation10 + $0x1c] sm:$0xf]
    %v4536 = vld [vmem:[#allocation10 + $0x20] sm:$0xf]
    %v4537 = vld [vmem:[#allocation10 + $0x24] sm:$0xf]
    %v4538 = vld [vmem:[#allocation10 + $0x28] sm:$0xf]
    %v4539 = vld [vmem:[#allocation10 + $0x2c] sm:$0xf]
    %v4540 = vld [vmem:[#allocation10 + $0x30] sm:$0xf]
    %v4541 = vld [vmem:[#allocation10 + $0x34] sm:$0xf]
    %v4542 = vld [vmem:[#allocation10 + $0x38] sm:$0xf]
    %v4543 = vld [vmem:[#allocation10 + $0x3c] sm:$0xf]
    %v4544 = vld [vmem:[%s5] sm:$0x1]
    %v4546 = vlaneseq
    %v4547 = vshrl.u32 %v4546, 7
    %v4548 = vsub.s32 0, %v4547
    %v4549 = vrot.slane %v4544, %v4548
    %v4567 = vunpack.c.l.b16 %v4528
    %v4568 = vunpack.c.l.b16 %v4529
    %v4569 = vunpack.c.l.b16 %v4530
    %v4570 = vunpack.c.l.b16 %v4531
    %v4571 = vunpack.c.l.b16 %v4532
    %v4572 = vunpack.c.l.b16 %v4533
    %v4573 = vunpack.c.l.b16 %v4534
    %v4574 = vunpack.c.l.b16 %v4535
    %v4575 = vunpack.c.l.b16 %v4536
    %v4576 = vunpack.c.l.b16 %v4537
    %v4577 = vunpack.c.l.b16 %v4538
    %v4578 = vunpack.c.l.b16 %v4539
    %v4579 = vunpack.c.l.b16 %v4540
    %v4580 = vunpack.c.l.b16 %v4541
    %v4581 = vunpack.c.l.b16 %v4542
    %v4582 = vunpack.c.l.b16 %v4543
    %v4583 = vpack.c.b16 %v4568, %v4567
    %v4584 = vpack.c.b16 %v4570, %v4569
    %v4585 = vpack.c.b16 %v4572, %v4571
    %v4586 = vpack.c.b16 %v4574, %v4573
    %v4587 = vpack.c.b16 %v4576, %v4575
    %v4588 = vpack.c.b16 %v4578, %v4577
    %v4589 = vpack.c.b16 %v4580, %v4579
    %v4590 = vpack.c.b16 %v4582, %v4581
    %4599 = vmatprep.subr.bf16.mxu0 0
    %4600 = vmatpush1.bf16.msra.mxu0 %v4583
    %4601 = vmatprep.subr.bf16.mxu0 0
    %4602 = vmatpush1.bf16.msra.mxu0 %v4584
    %4603 = vmatprep.subr.bf16.mxu0 0
    %4604 = vmatpush1.bf16.msra.mxu0 %v4585
    %4605 = vmatprep.subr.bf16.mxu0 0
    %4606 = vmatpush1.bf16.msra.mxu0 %v4586
    %4607 = vmatprep.subr.bf16.mxu0 0
    %4608 = vmatpush1.bf16.msra.mxu0 %v4587
    %4609 = vmatprep.subr.bf16.mxu0 0
    %4610 = vmatpush1.bf16.msra.mxu0 %v4588
    %4611 = vmatprep.subr.bf16.mxu0 0
    %4612 = vmatpush1.bf16.msra.mxu0 %v4589
    %4613 = vmatprep.subr.bf16.mxu0 0
    %4614 = vmatpush1.bf16.msra.mxu0 %v4590
    %4615 = vmatprep.subr.bf16.mxu0 0
    %4616 = vmatpush1.bf16.msra.mxu0 0
    %4617 = vmatprep.subr.bf16.mxu0 0
    %4618 = vmatpush1.bf16.msra.mxu0 0
    %4619 = vmatprep.subr.bf16.mxu0 0
    %4620 = vmatpush1.bf16.msra.mxu0 0
    %4621 = vmatprep.subr.bf16.mxu0 0
    %4622 = vmatpush1.bf16.msra.mxu0 0
    %4623 = vmatprep.subr.bf16.mxu0 0
    %4624 = vmatpush1.bf16.msra.mxu0 0
    %4625 = vmatprep.subr.bf16.mxu0 0
    %4626 = vmatpush1.bf16.msra.mxu0 0
    %4627 = vmatprep.subr.bf16.mxu0 0
    %4628 = vmatpush1.bf16.msra.mxu0 0
    %4629 = vmatprep.subr.bf16.mxu0 0
    %4630 = vmatpush1.bf16.msra.mxu0 0
    %4631 = vmatprep.mubr.bf16.mxu0 0
    %4632 = vmatmul.mubr.bf16.gmra.mrb[0].mxu0 %v4527
    %v4633 = vpop.f32.mrb[0].mxu0
    %v4634 = vadd.f32 %v4549, %v4633
    %v4635 = vpop.f32.mrb[0].mxu0
    %v4636 = vpop.f32.mrb[0].mxu0
    %v4637 = vpop.f32.mrb[0].mxu0
    %4638 = vdwg.mxu0
    %v4639 = vtanh.pop %v4634
    %4640 = vst [vmem:[#allocation12] sm:$0xff] %v4639
    // Predicated region
    $region42: #{tpu_custom_call.1} parent=1 // pred_check
      _
    $region43: #{tpu_custom_call.1} parent=1 // pred_check_branch
      %4642 = sbr.rel (0) target = $region45
    $region44: #{tpu_custom_call.1} parent=1 // pred_region
      %s4644 = ssub.s32 128, 128
      %4645 = vsyncadd [#allocation6], %s4644
      %s4647 = sshll.u32 [#allocation12], 4
      %s4648 = int_to_ptr.vmem [resolvable:$true] %s4647
      %4650 = dma.vmem_to_hbm [thread:$0]  %s4648, 128, %s6, [#allocation6]
    $region45: #{tpu_custom_call.1} parent=1 // pred_fallthru
      _
    // Predicated region
    $region46: #{tpu_custom_call.1} parent=1 // pred_check
      _
    $region47: #{tpu_custom_call.1} parent=1 // pred_check_branch
      %4652 = sbr.rel (0) target = $region49
    $region48: #{tpu_custom_call.1} parent=1 // pred_region
      %4653 = dma.done [#allocation6], 128
    $region49: #{tpu_custom_call.1} parent=1 // pred_fallthru
      _
    %4654 = vsyncpa [#allocation5], 1
    %4655 = vsyncpa [#allocation8], 1
    %4656 = vsyncpa [#allocation11], 1
    %4657 = vsyncpa [#allocation6], 1

</llo_original>
